<compile_context>
chip_gen: v7x
topology: tpu7x:2x2x1
jax: 0.10.0
libtpu: 0.0.40
codegen_flags: <defaults>
</compile_context>

<pallas_src>
import math

import jax
import jax.numpy as jnp
from jax import lax
from jax.experimental import pallas as pl
from jax.experimental.pallas import tpu as pltpu

# ----------------------------- config ---------------------------------------
B = 2               # batch
S = 8               # sequence length
H = 32              # num_hiddens (= key/query/value size, ffn_num_input)
NUM_HEADS = 4
DH = H // NUM_HEADS
F = 64              # ffn_num_hiddens
T = B * S           # flattened token count
BH = B * NUM_HEADS  # merged (head, batch) dim; index = h * B + b (head-major)
EPS = 1e-5          # nn.LayerNorm default eps
NEG_INF = -1e6      # d2l masked_softmax fill value


def _layer_norm(z, gamma, beta):
    # LayerNorm over the last dim (biased variance, like torch.nn.LayerNorm).
    mean = jnp.mean(z, axis=-1, keepdims=True)
    c = z - mean
    var = jnp.mean(c * c, axis=-1, keepdims=True)
    return c * lax.rsqrt(var + EPS) * gamma + beta


def encoder_block_kernel(
    x2_ref,            # (T, H)        flattened input (residual / FFN path)
    xh_ref,            # (BH, S, H)    input replicated per head (QKV path)
    vl_ref,            # (BH, 1, 1)    int32 valid lens per (head, batch)
    wqkv_ref,          # (BH, H, 3*DH) fused per-head QKV weights (Q pre-scaled)
    wo_ref,            # (BH, DH, H)   per-head slices of the output projection
    g1_ref, be1_ref,   # (1, H)        LayerNorm 1 gamma/beta
    w1_ref, b1_ref,    # (H, F), (1, F) FFN dense1
    w2_ref, b2_ref,    # (F, H), (1, H) FFN dense2
    g2_ref, be2_ref,   # (1, H)        LayerNorm 2 gamma/beta
    out_ref,           # (T, H)
):
    f32 = jnp.float32

    # --- fused QKV projection: ONE batched matmul over all (head, batch) ---
    qkv = jnp.einsum('bsh,bhd->bsd', xh_ref[...], wqkv_ref[...],
                     preferred_element_type=f32)             # (BH, S, 3*DH)
    q = qkv[..., 0:DH]                                        # scale folded in
    k = qkv[..., DH:2 * DH]
    v = qkv[..., 2 * DH:3 * DH]

    # --- scaled-dot-product attention, heads batched (no transpose/concat) ---
    s = jnp.einsum('bqd,bkd->bqk', q, k, preferred_element_type=f32)  # (BH,S,S)
    col = lax.broadcasted_iota(jnp.int32, (BH, S, S), 2)      # key positions
    s = jnp.where(col < vl_ref[...], s, NEG_INF)              # single select
    s = s - jnp.max(s, axis=-1, keepdims=True)
    p = jnp.exp(s)
    p = p * pl.reciprocal(jnp.sum(p, axis=-1, keepdims=True), approx=True)
    o = jnp.einsum('bqk,bkd->bqd', p, v, preferred_element_type=f32)  # (BH,S,DH)

    # --- output projection per head, summed over heads (== concat @ Wo) ---
    proj = jnp.einsum('bqd,bdh->bqh', o, wo_ref[...],
                      preferred_element_type=f32)             # (BH, S, H)
    attn = proj[0:B]
    for h in range(1, NUM_HEADS):                             # static, NH-1 adds
        attn = attn + proj[h * B:(h + 1) * B]                 # (B, S, H)
    attn = attn.reshape(T, H)                                 # collapse leading dims

    # --- AddNorm 1 (dropout = identity at inference) ---
    y = _layer_norm(attn + x2_ref[...], g1_ref[...], be1_ref[...])    # (T, H)

    # --- PositionWiseFFN + AddNorm 2 ---
    hdn = jnp.maximum(
        jnp.dot(y, w1_ref[...], preferred_element_type=f32) + b1_ref[...], 0.0)
    ffn = jnp.dot(hdn, w2_ref[...], preferred_element_type=f32) + b2_ref[...]
    out_ref[...] = _layer_norm(ffn + y, g2_ref[...], be2_ref[...])


@jax.jit
def encoder_block(x, valid_lens, params):
    """x: (B, S, H) float32, valid_lens: (B,) int32."""
    x = x.astype(jnp.float32)
    scale = 1.0 / math.sqrt(DH)

    # ---- host-side layout plumbing (done once, outside the kernel) ----
    def to_heads(w):                       # (H, H) -> (NUM_HEADS, H, DH)
        return w.reshape(H, NUM_HEADS, DH).transpose(1, 0, 2)

    wqkv_h = jnp.concatenate(
        [to_heads(params["wq"] * scale), to_heads(params["wk"]),
         to_heads(params["wv"])], axis=-1)                    # (NH, H, 3*DH)
    wqkv_hb = jnp.repeat(wqkv_h, B, axis=0)                   # (BH, H, 3*DH)
    wo_hb = jnp.repeat(params["wo"].reshape(NUM_HEADS, DH, H), B, axis=0)

    x2 = x.reshape(T, H)                                      # residual path
    xh = jnp.tile(x, (NUM_HEADS, 1, 1))                       # (BH, S, H): xh[h*B+b]=x[b]
    vl = jnp.tile(valid_lens.astype(jnp.int32), NUM_HEADS).reshape(BH, 1, 1)

    # Note: with H=32 (< 128 lanes) a fully lane-dense output would require an
    # in-kernel sublane->lane relayout costing more than the 2 KiB it saves.
    vmem = pl.BlockSpec(memory_space=pltpu.MemorySpace.VMEM)
    out2 = pl.pallas_call(
        encoder_block_kernel,
        out_shape=jax.ShapeDtypeStruct((T, H), jnp.float32),
        in_specs=[vmem] * 13,
        out_specs=vmem,
    )(x2, xh, vl, wqkv_hb, wo_hb,
      params["gamma1"], params["beta1"],
      params["w1"], params["b1"],
      params["w2"], params["b2"],
      params["gamma2"], params["beta2"])
    return out2.reshape(B, S, H)


# ------------------------- pure-JAX reference --------------------------------
def encoder_block_ref(x, valid_lens, p):
    x = x.astype(jnp.float32)

    def ln(z, g, b):
        m = jnp.mean(z, -1, keepdims=True)
        v = jnp.mean((z - m) ** 2, -1, keepdims=True)
        return (z - m) / jnp.sqrt(v + EPS) * g + b

    q = x @ p["wq"]; k = x @ p["wk"]; v = x @ p["wv"]
    rs = lambda t: t.reshape(B, S, NUM_HEADS, DH).transpose(0, 2, 1, 3)
    qh, kh, vh = rs(q), rs(k), rs(v)
    scores = jnp.einsum("bhqd,bhkd->bhqk", qh, kh) / math.sqrt(DH)
    mask = jnp.arange(S)[None, None, None, :] < valid_lens[:, None, None, None]
    scores = jnp.where(mask, scores, NEG_INF)
    attn = jax.nn.softmax(scores, axis=-1)
    o = jnp.einsum("bhqk,bhkd->bhqd", attn, vh).transpose(0, 2, 1, 3).reshape(B, S, H)
    o = o @ p["wo"]
    y = ln(o + x, p["gamma1"], p["beta1"])
    ffn = jnp.maximum(y @ p["w1"] + p["b1"], 0.0) @ p["w2"] + p["b2"]
    return ln(ffn + y, p["gamma2"], p["beta2"])


# ----------------------------- main ------------------------------------------
if __name__ == "__main__":
    key = jax.random.PRNGKey(0)
    ks = jax.random.split(key, 10)

    # Deterministic synthetic parameters (shapes follow the module __init__):
    # attention projections use_bias=False; FFN Linears have bias; LN affine.
    params = {
        "wq": jax.random.normal(ks[0], (H, H), jnp.float32) * 0.1,
        "wk": jax.random.normal(ks[1], (H, H), jnp.float32) * 0.1,
        "wv": jax.random.normal(ks[2], (H, H), jnp.float32) * 0.1,
        "wo": jax.random.normal(ks[3], (H, H), jnp.float32) * 0.1,
        "gamma1": jnp.ones((1, H), jnp.float32),
        "beta1": jnp.zeros((1, H), jnp.float32),
        "w1": jax.random.normal(ks[4], (H, F), jnp.float32) * 0.1,
        "b1": jax.random.normal(ks[5], (1, F), jnp.float32) * 0.01,
        "w2": jax.random.normal(ks[6], (F, H), jnp.float32) * 0.1,
        "b2": jax.random.normal(ks[7], (1, H), jnp.float32) * 0.01,
        "gamma2": jnp.ones((1, H), jnp.float32),
        "beta2": jnp.zeros((1, H), jnp.float32),
    }

    x = jax.random.normal(ks[8], (B, S, H), jnp.float32)
    valid_lens = jnp.array([8, 5], dtype=jnp.int32)   # one per batch element

    out = encoder_block(x, valid_lens, params)
    out = jax.block_until_ready(out)

    ref = encoder_block_ref(x, valid_lens, params)
    assert out.shape == (B, S, H)
    # tolerance loosened slightly vs 1e-4 because the softmax denominator now
    # uses the EUP approximate reciprocal (pl.reciprocal(approx=True)).
    assert jnp.allclose(out, ref, atol=2e-3, rtol=2e-3), "mismatch vs JAX reference"

    print("KERNEL_OK")
</pallas_src>

<mosaic_0001>
module attributes {stable_mosaic.version = 11 : i64} {
  func.func @encoder_block_kernel(%arg0: memref<16x32xf32, #tpu.memory_space<vmem>>, %arg1: memref<8x8x32xf32, #tpu.memory_space<vmem>>, %arg2: memref<8x1x1xi32, #tpu.memory_space<vmem>>, %arg3: memref<8x32x24xf32, #tpu.memory_space<vmem>>, %arg4: memref<8x8x32xf32, #tpu.memory_space<vmem>>, %arg5: memref<1x32xf32, #tpu.memory_space<vmem>>, %arg6: memref<1x32xf32, #tpu.memory_space<vmem>>, %arg7: memref<32x64xf32, #tpu.memory_space<vmem>>, %arg8: memref<1x64xf32, #tpu.memory_space<vmem>>, %arg9: memref<64x32xf32, #tpu.memory_space<vmem>>, %arg10: memref<1x32xf32, #tpu.memory_space<vmem>>, %arg11: memref<1x32xf32, #tpu.memory_space<vmem>>, %arg12: memref<1x32xf32, #tpu.memory_space<vmem>>, %arg13: memref<16x32xf32, #tpu.memory_space<vmem>>) attributes {dimension_semantics = [], scalar_prefetch = 0 : i64, scratch_operands = 0 : i64, tpu.core_type = #tpu.core_type<tc>} {
    %c0 = arith.constant 0 : index
    %c0_0 = arith.constant 0 : index
    %c0_1 = arith.constant 0 : index
    %0 = vector.load %arg1[%c0, %c0_0, %c0_1] : memref<8x8x32xf32, #tpu.memory_space<vmem>>, vector<8x8x32xf32>
    %c0_2 = arith.constant 0 : index
    %c0_3 = arith.constant 0 : index
    %c0_4 = arith.constant 0 : index
    %1 = vector.load %arg3[%c0_2, %c0_3, %c0_4] : memref<8x32x24xf32, #tpu.memory_space<vmem>>, vector<8x32x24xf32>
    "tpu.trace_start"() <{level = 10 : i32, message = "bsh,bhd->bsd"}> : () -> ()
    %cst = arith.constant dense<0.000000e+00> : vector<8x8x24xf32>
    %2 = tpu.matmul %0, %1, %cst {dimension_numbers = #tpu.dot_dimension_numbers<[2], [1], [1], [2], [0, 0, 0, 1, 1, 2], [0], [0]>} : vector<8x8x32xf32>, vector<8x32x24xf32>, vector<8x8x24xf32> -> vector<8x8x24xf32>
    "tpu.trace_stop"() : () -> ()
    %3 = vector.extract_strided_slice %2 {offsets = [0, 0, 0], sizes = [8, 8, 8], strides = [1, 1, 1]} : vector<8x8x24xf32> to vector<8x8x8xf32>
    %4 = vector.extract_strided_slice %2 {offsets = [0, 0, 8], sizes = [8, 8, 8], strides = [1, 1, 1]} : vector<8x8x24xf32> to vector<8x8x8xf32>
    %5 = vector.extract_strided_slice %2 {offsets = [0, 0, 16], sizes = [8, 8, 8], strides = [1, 1, 1]} : vector<8x8x24xf32> to vector<8x8x8xf32>
    "tpu.trace_start"() <{level = 10 : i32, message = "bqd,bkd->bqk"}> : () -> ()
    %cst_5 = arith.constant dense<0.000000e+00> : vector<8x8x8xf32>
    %6 = tpu.matmul %3, %4, %cst_5 {dimension_numbers = #tpu.dot_dimension_numbers<[2], [2], [1], [1], [0, 0, 0, 1, 1, 1], [0], [0]>} : vector<8x8x8xf32>, vector<8x8x8xf32>, vector<8x8x8xf32> -> vector<8x8x8xf32>
    "tpu.trace_stop"() : () -> ()
    %7 = tpu.iota {dimensions = array<i32: 2>} : vector<8x8x8xi32>
    %c0_6 = arith.constant 0 : index
    %c0_7 = arith.constant 0 : index
    %c0_8 = arith.constant 0 : index
    %8 = vector.load %arg2[%c0_6, %c0_7, %c0_8] : memref<8x1x1xi32, #tpu.memory_space<vmem>>, vector<8x1x1xi32>
    %9 = vector.broadcast %8 : vector<8x1x1xi32> to vector<8x8x8xi32>
    %10 = arith.cmpi slt, %7, %9 : vector<8x8x8xi32>
    %cst_9 = arith.constant -1.000000e+06 : f32
    %11 = vector.broadcast %cst_9 : f32 to vector<8x8x8xf32>
    %12 = arith.select %10, %6, %11 : vector<8x8x8xi1>, vector<8x8x8xf32>
    %cst_10 = arith.constant dense<0xFF800000> : vector<8x8xf32>
    %13 = vector.multi_reduction <maximumf>, %12, %cst_10 [2] : vector<8x8x8xf32> to vector<8x8xf32>
    %14 = vector.shape_cast %13 : vector<8x8xf32> to vector<8x8x1xf32>
    %15 = vector.broadcast %14 : vector<8x8x1xf32> to vector<8x8x8xf32>
    %16 = arith.subf %12, %15 : vector<8x8x8xf32>
    %17 = math.exp %16 : vector<8x8x8xf32>
    %cst_11 = arith.constant dense<0.000000e+00> : vector<8x8xf32>
    %18 = vector.multi_reduction <add>, %17, %cst_11 [2] : vector<8x8x8xf32> to vector<8x8xf32>
    %19 = vector.shape_cast %18 : vector<8x8xf32> to vector<8x8x1xf32>
    %20 = tpu.reciprocal %19 {approx = true} : vector<8x8x1xf32> -> vector<8x8x1xf32>
    %21 = vector.broadcast %20 : vector<8x8x1xf32> to vector<8x8x8xf32>
    %22 = arith.mulf %17, %21 : vector<8x8x8xf32>
    "tpu.trace_start"() <{level = 10 : i32, message = "bqk,bkd->bqd"}> : () -> ()
    %cst_12 = arith.constant dense<0.000000e+00> : vector<8x8x8xf32>
    %23 = tpu.matmul %22, %5, %cst_12 {dimension_numbers = #tpu.dot_dimension_numbers<[2], [1], [1], [2], [0, 0, 0, 1, 1, 2], [0], [0]>} : vector<8x8x8xf32>, vector<8x8x8xf32>, vector<8x8x8xf32> -> vector<8x8x8xf32>
    "tpu.trace_stop"() : () -> ()
    %c0_13 = arith.constant 0 : index
    %c0_14 = arith.constant 0 : index
    %c0_15 = arith.constant 0 : index
    %24 = vector.load %arg4[%c0_13, %c0_14, %c0_15] : memref<8x8x32xf32, #tpu.memory_space<vmem>>, vector<8x8x32xf32>
    "tpu.trace_start"() <{level = 10 : i32, message = "bqd,bdh->bqh"}> : () -> ()
    %cst_16 = arith.constant dense<0.000000e+00> : vector<8x8x32xf32>
    %25 = tpu.matmul %23, %24, %cst_16 {dimension_numbers = #tpu.dot_dimension_numbers<[2], [1], [1], [2], [0, 0, 0, 1, 1, 2], [0], [0]>} : vector<8x8x8xf32>, vector<8x8x32xf32>, vector<8x8x32xf32> -> vector<8x8x32xf32>
    "tpu.trace_stop"() : () -> ()
    %26 = vector.extract_strided_slice %25 {offsets = [0, 0, 0], sizes = [2, 8, 32], strides = [1, 1, 1]} : vector<8x8x32xf32> to vector<2x8x32xf32>
    %27 = vector.extract_strided_slice %25 {offsets = [2, 0, 0], sizes = [2, 8, 32], strides = [1, 1, 1]} : vector<8x8x32xf32> to vector<2x8x32xf32>
    %28 = arith.addf %26, %27 : vector<2x8x32xf32>
    %29 = vector.extract_strided_slice %25 {offsets = [4, 0, 0], sizes = [2, 8, 32], strides = [1, 1, 1]} : vector<8x8x32xf32> to vector<2x8x32xf32>
    %30 = arith.addf %28, %29 : vector<2x8x32xf32>
    %31 = vector.extract_strided_slice %25 {offsets = [6, 0, 0], sizes = [2, 8, 32], strides = [1, 1, 1]} : vector<8x8x32xf32> to vector<2x8x32xf32>
    %32 = arith.addf %30, %31 : vector<2x8x32xf32>
    %33 = vector.shape_cast %32 : vector<2x8x32xf32> to vector<16x32xf32>
    %c0_17 = arith.constant 0 : index
    %c0_18 = arith.constant 0 : index
    %34 = vector.load %arg0[%c0_17, %c0_18] : memref<16x32xf32, #tpu.memory_space<vmem>>, vector<16x32xf32>
    %35 = arith.addf %33, %34 : vector<16x32xf32>
    %c0_19 = arith.constant 0 : index
    %c0_20 = arith.constant 0 : index
    %36 = vector.load %arg5[%c0_19, %c0_20] : memref<1x32xf32, #tpu.memory_space<vmem>>, vector<1x32xf32>
    %c0_21 = arith.constant 0 : index
    %c0_22 = arith.constant 0 : index
    %37 = vector.load %arg6[%c0_21, %c0_22] : memref<1x32xf32, #tpu.memory_space<vmem>>, vector<1x32xf32>
    %cst_23 = arith.constant dense<0.000000e+00> : vector<16xf32>
    %38 = vector.multi_reduction <add>, %35, %cst_23 [1] : vector<16x32xf32> to vector<16xf32>
    %39 = vector.shape_cast %38 : vector<16xf32> to vector<16x1xf32>
    %cst_24 = arith.constant 3.200000e+01 : f32
    %40 = vector.broadcast %cst_24 : f32 to vector<16x1xf32>
    %41 = arith.divf %39, %40 : vector<16x1xf32>
    %42 = vector.broadcast %41 : vector<16x1xf32> to vector<16x32xf32>
    %43 = arith.subf %35, %42 : vector<16x32xf32>
    %44 = arith.mulf %43, %43 : vector<16x32xf32>
    %cst_25 = arith.constant dense<0.000000e+00> : vector<16xf32>
    %45 = vector.multi_reduction <add>, %44, %cst_25 [1] : vector<16x32xf32> to vector<16xf32>
    %46 = vector.shape_cast %45 : vector<16xf32> to vector<16x1xf32>
    %cst_26 = arith.constant 3.200000e+01 : f32
    %47 = vector.broadcast %cst_26 : f32 to vector<16x1xf32>
    %48 = arith.divf %46, %47 : vector<16x1xf32>
    %cst_27 = arith.constant 9.99999974E-6 : f32
    %49 = vector.broadcast %cst_27 : f32 to vector<16x1xf32>
    %50 = arith.addf %48, %49 : vector<16x1xf32>
    %51 = math.rsqrt %50 : vector<16x1xf32>
    %52 = vector.broadcast %51 : vector<16x1xf32> to vector<16x32xf32>
    %53 = arith.mulf %43, %52 : vector<16x32xf32>
    %54 = vector.broadcast %36 : vector<1x32xf32> to vector<16x32xf32>
    %55 = arith.mulf %53, %54 : vector<16x32xf32>
    %56 = vector.broadcast %37 : vector<1x32xf32> to vector<16x32xf32>
    %57 = arith.addf %55, %56 : vector<16x32xf32>
    %c0_28 = arith.constant 0 : index
    %c0_29 = arith.constant 0 : index
    %58 = vector.load %arg7[%c0_28, %c0_29] : memref<32x64xf32, #tpu.memory_space<vmem>>, vector<32x64xf32>
    %cst_30 = arith.constant dense<0.000000e+00> : vector<16x64xf32>
    %59 = tpu.matmul %57, %58, %cst_30 {dimension_numbers = #tpu.dot_dimension_numbers<[1], [0], [0], [1], [0, 0, 1, 1], [], []>} : vector<16x32xf32>, vector<32x64xf32>, vector<16x64xf32> -> vector<16x64xf32>
    %c0_31 = arith.constant 0 : index
    %c0_32 = arith.constant 0 : index
    %60 = vector.load %arg8[%c0_31, %c0_32] : memref<1x64xf32, #tpu.memory_space<vmem>>, vector<1x64xf32>
    %61 = vector.broadcast %60 : vector<1x64xf32> to vector<16x64xf32>
    %62 = arith.addf %59, %61 : vector<16x64xf32>
    %cst_33 = arith.constant 0.000000e+00 : f32
    %63 = vector.broadcast %cst_33 : f32 to vector<16x64xf32>
    %64 = arith.maximumf %62, %63 : vector<16x64xf32>
    %c0_34 = arith.constant 0 : index
    %c0_35 = arith.constant 0 : index
    %65 = vector.load %arg9[%c0_34, %c0_35] : memref<64x32xf32, #tpu.memory_space<vmem>>, vector<64x32xf32>
    %cst_36 = arith.constant dense<0.000000e+00> : vector<16x32xf32>
    %66 = tpu.matmul %64, %65, %cst_36 {dimension_numbers = #tpu.dot_dimension_numbers<[1], [0], [0], [1], [0, 0, 1, 1], [], []>} : vector<16x64xf32>, vector<64x32xf32>, vector<16x32xf32> -> vector<16x32xf32>
    %c0_37 = arith.constant 0 : index
    %c0_38 = arith.constant 0 : index
    %67 = vector.load %arg10[%c0_37, %c0_38] : memref<1x32xf32, #tpu.memory_space<vmem>>, vector<1x32xf32>
    %68 = vector.broadcast %67 : vector<1x32xf32> to vector<16x32xf32>
    %69 = arith.addf %66, %68 : vector<16x32xf32>
    %70 = arith.addf %69, %57 : vector<16x32xf32>
    %c0_39 = arith.constant 0 : index
    %c0_40 = arith.constant 0 : index
    %71 = vector.load %arg11[%c0_39, %c0_40] : memref<1x32xf32, #tpu.memory_space<vmem>>, vector<1x32xf32>
    %c0_41 = arith.constant 0 : index
    %c0_42 = arith.constant 0 : index
    %72 = vector.load %arg12[%c0_41, %c0_42] : memref<1x32xf32, #tpu.memory_space<vmem>>, vector<1x32xf32>
    %cst_43 = arith.constant dense<0.000000e+00> : vector<16xf32>
    %73 = vector.multi_reduction <add>, %70, %cst_43 [1] : vector<16x32xf32> to vector<16xf32>
    %74 = vector.shape_cast %73 : vector<16xf32> to vector<16x1xf32>
    %cst_44 = arith.constant 3.200000e+01 : f32
    %75 = vector.broadcast %cst_44 : f32 to vector<16x1xf32>
    %76 = arith.divf %74, %75 : vector<16x1xf32>
    %77 = vector.broadcast %76 : vector<16x1xf32> to vector<16x32xf32>
    %78 = arith.subf %70, %77 : vector<16x32xf32>
    %79 = arith.mulf %78, %78 : vector<16x32xf32>
    %cst_45 = arith.constant dense<0.000000e+00> : vector<16xf32>
    %80 = vector.multi_reduction <add>, %79, %cst_45 [1] : vector<16x32xf32> to vector<16xf32>
    %81 = vector.shape_cast %80 : vector<16xf32> to vector<16x1xf32>
    %cst_46 = arith.constant 3.200000e+01 : f32
    %82 = vector.broadcast %cst_46 : f32 to vector<16x1xf32>
    %83 = arith.divf %81, %82 : vector<16x1xf32>
    %cst_47 = arith.constant 9.99999974E-6 : f32
    %84 = vector.broadcast %cst_47 : f32 to vector<16x1xf32>
    %85 = arith.addf %83, %84 : vector<16x1xf32>
    %86 = math.rsqrt %85 : vector<16x1xf32>
    %87 = vector.broadcast %86 : vector<16x1xf32> to vector<16x32xf32>
    %88 = arith.mulf %78, %87 : vector<16x32xf32>
    %89 = vector.broadcast %71 : vector<1x32xf32> to vector<16x32xf32>
    %90 = arith.mulf %88, %89 : vector<16x32xf32>
    %91 = vector.broadcast %72 : vector<1x32xf32> to vector<16x32xf32>
    %92 = arith.addf %90, %91 : vector<16x32xf32>
    %c0_48 = arith.constant 0 : index
    %c0_49 = arith.constant 0 : index
    %93 = vector.load %arg13[%c0_48, %c0_49] : memref<16x32xf32, #tpu.memory_space<vmem>>, vector<16x32xf32>
    tpu.vector_store %arg13[%c0_48, %c0_49], %92 {strides = array<i32>} : memref<16x32xf32, #tpu.memory_space<vmem>>, vector<16x32xf32>,
    return
  }
}

</mosaic_0001>

<llo_original>
// kernel: tile.18
$region0: #{tile.18}
  #allocation0 [shape = 's32[1]{0}', space=sflag, size = 0x4, scoped, tag = 'scoped memory for tile.18']
  %s0 = inlined_call_operand.vmem [shape: s32[2], index: 0, kind: input, shape index: {}]
  %s1 = inlined_call_operand.vmem [shape: s32[4,2], index: 1, kind: output, shape index: {}]
  // Predicated region
  $region2: #{tile.18} parent=0 // pred_check
    _
  $region3: #{tile.18} parent=0 // pred_check_branch
    %3 = sbr.rel (0) target = $region5
  $region4: #{tile.18} parent=0 // pred_region
    _
  $region5: #{tile.18} parent=0 // pred_fallthru
    _
  %v4 = vld [vmem:[%s0] ss:$0 sm:$0xff]
  %5 = vst [vmem:[%s1] sm:$0xf] %v4

// kernel: tile.0
$region0: #{tile.0}
  %s0 = inlined_call_operand.vmem [shape: s32[4,2], index: 0, kind: input, shape index: {}]
  %s1 = inlined_call_operand.vmem [shape: s32[8,1,1], index: 1, kind: output, shape index: {}]
  $region1: #{tile.0} parent=0
    #allocation0 [shape = 'u8[32768]{0}', space=vmem, size = 0x8000, scoped, tag = 'scoped mem for output reshape']
    #allocation1 [shape = 'u8[4096]{0}', space=vmem, size = 0x1000, scoped, tag = 'scoped mem for input reshape']
    %s3 = sshllo.u32 0, 4
    %v4 = vld [vmem:[%s0] sm:%s3]
    %5 = vst [vmem:[#allocation1] sm:%s3] %v4
    %v6 = vld [vmem:[#allocation1] sm:$0xf]
    %vm7 = vcmask 7168
    %8 = vst.msk [vmem:[#allocation0] ss:$16 sm:$0x3] %vm7, %v6
    %9 = vst.msk [vmem:[#allocation0] ss:$16 sm:$0xc] %vm7, %v6
    %v10 = vld [vmem:[#allocation1] sm:$0xf]
    %11 = vrot.lane.b32.xlu0 %v10, 127
    %v12 = vpop.permute.xlu0 %11
    %vm13 = vcmask 7168
    %s14 = scalar_lea.vmem [#allocation0], 8
    %15 = vst.msk [vmem:[%s14] ss:$16 sm:$0x3] %vm13, %v12
    %s16 = scalar_lea.vmem [#allocation0], 8
    %17 = vst.msk [vmem:[%s16] ss:$16 sm:$0xc] %vm13, %v12
    %s19 = sshllo.u32 0, 1
    %v21 = vld [vmem:[#allocation0] sm:%s19]
    %s22 = sshllo.u32 0, 1
    %23 = vst [vmem:[%s1] sm:%s22] %v21
    %s24 = scalar_lea.vmem [#allocation0], 8
    %v25 = vld [vmem:[%s24] sm:%s19]
    %s26 = sshllo.u32 0, 1
    %s27 = scalar_lea.vmem %s1, 1
    %28 = vst [vmem:[%s27] sm:%s26] %v25
    %s29 = scalar_lea.vmem [#allocation0], 16
    %v30 = vld [vmem:[%s29] sm:%s19]
    %s31 = sshllo.u32 0, 1
    %s32 = smul.addr 1, 2
    %s33 = scalar_lea.vmem %s1, %s32
    %34 = vst [vmem:[%s33] sm:%s31] %v30
    %s35 = scalar_lea.vmem [#allocation0], 24
    %v36 = vld [vmem:[%s35] sm:%s19]
    %s37 = sshllo.u32 0, 1
    %s38 = smul.addr 1, 3
    %s39 = scalar_lea.vmem %s1, %s38
    %40 = vst [vmem:[%s39] sm:%s37] %v36
    %s41 = scalar_lea.vmem [#allocation0], 32
    %v42 = vld [vmem:[%s41] sm:%s19]
    %s43 = sshllo.u32 0, 1
    %s44 = smul.addr 1, 4
    %s45 = scalar_lea.vmem %s1, %s44
    %46 = vst [vmem:[%s45] sm:%s43] %v42
    %s47 = scalar_lea.vmem [#allocation0], 40
    %v48 = vld [vmem:[%s47] sm:%s19]
    %s49 = sshllo.u32 0, 1
    %s50 = smul.addr 1, 5
    %s51 = scalar_lea.vmem %s1, %s50
    %52 = vst [vmem:[%s51] sm:%s49] %v48
    %s53 = scalar_lea.vmem [#allocation0], 48
    %v54 = vld [vmem:[%s53] sm:%s19]
    %s55 = sshllo.u32 0, 1
    %s56 = smul.addr 1, 6
    %s57 = scalar_lea.vmem %s1, %s56
    %58 = vst [vmem:[%s57] sm:%s55] %v54
    %s59 = scalar_lea.vmem [#allocation0], 56
    %v60 = vld [vmem:[%s59] sm:%s19]
    %s61 = sshllo.u32 0, 1
    %s62 = smul.addr 1, 7
    %s63 = scalar_lea.vmem %s1, %s62
    %64 = vst [vmem:[%s63] sm:%s61] %v60

// kernel: encoder_block.1
$region0: #{encoder_block.1}
  #allocation0 [shape = 'u32[]', space=smem, size = 0x4, offset = 0x4, fixed_abs, tag = 'smem constant byte address 0x4 - core index']
  #allocation1 [shape = 'u32[144,128]{1,0:T(1,128)}', space=vmem, size = 0x12000, scoped, tag = 'internal scratch']
  %s0 = inlined_call_operand.vmem [shape: f32[16,32], index: 0, kind: input, shape index: {}]
  %s1 = inlined_call_operand.vmem [shape: f32[8,8,32], index: 1, kind: input, shape index: {}]
  %s2 = inlined_call_operand.vmem [shape: s32[8,1,1], index: 2, kind: input, shape index: {}]
  %s3 = inlined_call_operand.vmem [shape: f32[8,32,24], index: 3, kind: input, shape index: {}]
  %s4 = inlined_call_operand.vmem [shape: f32[8,8,32], index: 4, kind: input, shape index: {}]
  %s5 = inlined_call_operand.vmem [shape: f32[1,32], index: 5, kind: input, shape index: {}]
  %s6 = inlined_call_operand.vmem [shape: f32[1,32], index: 6, kind: input, shape index: {}]
  %s7 = inlined_call_operand.vmem [shape: f32[32,64], index: 7, kind: input, shape index: {}]
  %s8 = inlined_call_operand.vmem [shape: f32[1,64], index: 8, kind: input, shape index: {}]
  %s9 = inlined_call_operand.vmem [shape: f32[64,32], index: 9, kind: input, shape index: {}]
  %s10 = inlined_call_operand.vmem [shape: f32[1,32], index: 10, kind: input, shape index: {}]
  %s11 = inlined_call_operand.vmem [shape: f32[1,32], index: 11, kind: input, shape index: {}]
  %s12 = inlined_call_operand.vmem [shape: f32[1,32], index: 12, kind: input, shape index: {}]
  %s13 = inlined_call_operand.hbm [shape: f32[16,32], index: 13, kind: output, shape index: {}]
  %s14 = sld [smem:[#allocation0]]
  $region62: #{encoder_block.1} parent=0
    _
  %s16 = ssub.s32 1, %s14
  %s17 = scalar_select 0, %s16, %s14
  $region1: #{encoder_block.1} parent=0
    #allocation2 [shape = 'u8[8192]{0}', space=vmem, size = 0x2000, scoped, tag = 'output window, operand 0, single buffered']
    #allocation3 [shape = 's32[1]{0}', space=sflag, size = 0x4, scoped, tag = 'scoped memory for encoder_block.1']
    %18 = vsyncpa [#allocation3], 0
    // Predicated region
    $region2: #{encoder_block.1} parent=1 // pred_check
      _
    $region3: #{encoder_block.1} parent=1 // pred_check_branch
      %20 = sbr.rel (0) target = $region5
    $region4: #{encoder_block.1} parent=1 // pred_region
      _
    $region5: #{encoder_block.1} parent=1 // pred_fallthru
      _
    // Predicated region
    $region6: #{encoder_block.1} parent=1 // pred_check
      _
    $region7: #{encoder_block.1} parent=1 // pred_check_branch
      %22 = sbr.rel (0) target = $region9
    $region8: #{encoder_block.1} parent=1 // pred_region
      _
    $region9: #{encoder_block.1} parent=1 // pred_fallthru
      _
    // Predicated region
    $region10: #{encoder_block.1} parent=1 // pred_check
      _
    $region11: #{encoder_block.1} parent=1 // pred_check_branch
      %24 = sbr.rel (0) target = $region13
    $region12: #{encoder_block.1} parent=1 // pred_region
      _
    $region13: #{encoder_block.1} parent=1 // pred_fallthru
      _
    // Predicated region
    $region14: #{encoder_block.1} parent=1 // pred_check
      _
    $region15: #{encoder_block.1} parent=1 // pred_check_branch
      %26 = sbr.rel (0) target = $region17
    $region16: #{encoder_block.1} parent=1 // pred_region
      _
    $region17: #{encoder_block.1} parent=1 // pred_fallthru
      _
    // Predicated region
    $region18: #{encoder_block.1} parent=1 // pred_check
      _
    $region19: #{encoder_block.1} parent=1 // pred_check_branch
      %28 = sbr.rel (0) target = $region21
    $region20: #{encoder_block.1} parent=1 // pred_region
      _
    $region21: #{encoder_block.1} parent=1 // pred_fallthru
      _
    // Predicated region
    $region22: #{encoder_block.1} parent=1 // pred_check
      _
    $region23: #{encoder_block.1} parent=1 // pred_check_branch
      %30 = sbr.rel (0) target = $region25
    $region24: #{encoder_block.1} parent=1 // pred_region
      _
    $region25: #{encoder_block.1} parent=1 // pred_fallthru
      _
    // Predicated region
    $region26: #{encoder_block.1} parent=1 // pred_check
      _
    $region27: #{encoder_block.1} parent=1 // pred_check_branch
      %32 = sbr.rel (0) target = $region29
    $region28: #{encoder_block.1} parent=1 // pred_region
      _
    $region29: #{encoder_block.1} parent=1 // pred_fallthru
      _
    // Predicated region
    $region30: #{encoder_block.1} parent=1 // pred_check
      _
    $region31: #{encoder_block.1} parent=1 // pred_check_branch
      %34 = sbr.rel (0) target = $region33
    $region32: #{encoder_block.1} parent=1 // pred_region
      _
    $region33: #{encoder_block.1} parent=1 // pred_fallthru
      _
    // Predicated region
    $region34: #{encoder_block.1} parent=1 // pred_check
      _
    $region35: #{encoder_block.1} parent=1 // pred_check_branch
      %36 = sbr.rel (0) target = $region37
    $region36: #{encoder_block.1} parent=1 // pred_region
      _
    $region37: #{encoder_block.1} parent=1 // pred_fallthru
      _
    // Predicated region
    $region38: #{encoder_block.1} parent=1 // pred_check
      _
    $region39: #{encoder_block.1} parent=1 // pred_check_branch
      %38 = sbr.rel (0) target = $region41
    $region40: #{encoder_block.1} parent=1 // pred_region
      _
    $region41: #{encoder_block.1} parent=1 // pred_fallthru
      _
    // Predicated region
    $region42: #{encoder_block.1} parent=1 // pred_check
      _
    $region43: #{encoder_block.1} parent=1 // pred_check_branch
      %40 = sbr.rel (0) target = $region45
    $region44: #{encoder_block.1} parent=1 // pred_region
      _
    $region45: #{encoder_block.1} parent=1 // pred_fallthru
      _
    // Predicated region
    $region46: #{encoder_block.1} parent=1 // pred_check
      _
    $region47: #{encoder_block.1} parent=1 // pred_check_branch
      %42 = sbr.rel (0) target = $region49
    $region48: #{encoder_block.1} parent=1 // pred_region
      _
    $region49: #{encoder_block.1} parent=1 // pred_fallthru
      _
    // Predicated region
    $region50: #{encoder_block.1} parent=1 // pred_check
      _
    $region51: #{encoder_block.1} parent=1 // pred_check_branch
      %44 = sbr.rel (0) target = $region53
    $region52: #{encoder_block.1} parent=1 // pred_region
      _
    $region53: #{encoder_block.1} parent=1 // pred_fallthru
      _
    %v45 = vld [vmem:[%s1] sm:$0xff]
    %v46 = vld [vmem:[%s1 + $0x8] sm:$0xff]
    %v47 = vld [vmem:[%s1 + $0x10] sm:$0xff]
    %v48 = vld [vmem:[%s1 + $0x18] sm:$0xff]
    %v49 = vld [vmem:[%s1 + $0x20] sm:$0xff]
    %v50 = vld [vmem:[%s1 + $0x28] sm:$0xff]
    %v51 = vld [vmem:[%s1 + $0x30] sm:$0xff]
    %v52 = vld [vmem:[%s1 + $0x38] sm:$0xff]
    %v53 = vld [vmem:[%s3] sm:$0xff]
    %v54 = vld [vmem:[%s3 + $0x8] sm:$0xff]
    %v55 = vld [vmem:[%s3 + $0x10] sm:$0xff]
    %v56 = vld [vmem:[%s3 + $0x18] sm:$0xff]
    %v57 = vld [vmem:[%s3 + $0x20] sm:$0xff]
    %v58 = vld [vmem:[%s3 + $0x28] sm:$0xff]
    %v59 = vld [vmem:[%s3 + $0x30] sm:$0xff]
    %v60 = vld [vmem:[%s3 + $0x38] sm:$0xff]
    %v61 = vld [vmem:[%s3 + $0x40] sm:$0xff]
    %v62 = vld [vmem:[%s3 + $0x48] sm:$0xff]
    %v63 = vld [vmem:[%s3 + $0x50] sm:$0xff]
    %v64 = vld [vmem:[%s3 + $0x58] sm:$0xff]
    %v65 = vld [vmem:[%s3 + $0x60] sm:$0xff]
    %v66 = vld [vmem:[%s3 + $0x68] sm:$0xff]
    %v67 = vld [vmem:[%s3 + $0x70] sm:$0xff]
    %v68 = vld [vmem:[%s3 + $0x78] sm:$0xff]
    %v69 = vld [vmem:[%s3 + $0x80] sm:$0xff]
    %v70 = vld [vmem:[%s3 + $0x88] sm:$0xff]
    %v71 = vld [vmem:[%s3 + $0x90] sm:$0xff]
    %v72 = vld [vmem:[%s3 + $0x98] sm:$0xff]
    %v73 = vld [vmem:[%s3 + $0xa0] sm:$0xff]
    %v74 = vld [vmem:[%s3 + $0xa8] sm:$0xff]
    %v75 = vld [vmem:[%s3 + $0xb0] sm:$0xff]
    %v76 = vld [vmem:[%s3 + $0xb8] sm:$0xff]
    %v77 = vld [vmem:[%s3 + $0xc0] sm:$0xff]
    %v78 = vld [vmem:[%s3 + $0xc8] sm:$0xff]
    %v79 = vld [vmem:[%s3 + $0xd0] sm:$0xff]
    %v80 = vld [vmem:[%s3 + $0xd8] sm:$0xff]
    %v81 = vld [vmem:[%s3 + $0xe0] sm:$0xff]
    %v82 = vld [vmem:[%s3 + $0xe8] sm:$0xff]
    %v83 = vld [vmem:[%s3 + $0xf0] sm:$0xff]
    %v84 = vld [vmem:[%s3 + $0xf8] sm:$0xff]
    %vm85 = vcmask 261120
    %v87 = vsel %vm85, %v45, 0
    %89 = vmatprep.subr.mxu0 0.0
    %90 = vmatpush1.msra.mxu0 %v53
    %91 = vmatprep.subr.mxu0 0.0
    %92 = vmatpush1.msra.mxu0 %v54
    %93 = vmatprep.subr.mxu0 0.0
    %94 = vmatpush1.msra.mxu0 %v55
    %95 = vmatprep.subr.mxu0 0.0
    %96 = vmatpush1.msra.mxu0 %v56
    %97 = vmatprep.subr.mxu0 0.0
    %98 = vmatpush1.msra.mxu0 0.0
    %99 = vmatprep.subr.mxu0 0.0
    %100 = vmatpush1.msra.mxu0 0.0
    %101 = vmatprep.subr.mxu0 0.0
    %102 = vmatpush1.msra.mxu0 0.0
    %103 = vmatprep.subr.mxu0 0.0
    %104 = vmatpush1.msra.mxu0 0.0
    %105 = vmatprep.subr.mxu0 0.0
    %106 = vmatpush1.msra.mxu0 0.0
    %107 = vmatprep.subr.mxu0 0.0
    %108 = vmatpush1.msra.mxu0 0.0
    %109 = vmatprep.subr.mxu0 0.0
    %110 = vmatpush1.msra.mxu0 0.0
    %111 = vmatprep.subr.mxu0 0.0
    %112 = vmatpush1.msra.mxu0 0.0
    %113 = vmatprep.subr.mxu0 0.0
    %114 = vmatpush1.msra.mxu0 0.0
    %115 = vmatprep.subr.mxu0 0.0
    %116 = vmatpush1.msra.mxu0 0.0
    %117 = vmatprep.subr.mxu0 0.0
    %118 = vmatpush1.msra.mxu0 0.0
    %119 = vmatprep.subr.mxu0 0.0
    %120 = vmatpush1.msra.mxu0 0.0
    %121 = vmatprep.subr.mxu0 0.0
    %122 = vmatpush1.msra.mxu0 0.0
    %123 = vmatprep.subr.mxu0 0.0
    %124 = vmatpush1.msra.mxu0 0.0
    %125 = vmatprep.subr.mxu0 0.0
    %126 = vmatpush1.msra.mxu0 0.0
    %127 = vmatprep.subr.mxu0 0.0
    %128 = vmatpush1.msra.mxu0 0.0
    %129 = vmatprep.subr.mxu0 0.0
    %130 = vmatpush1.msra.mxu0 0.0
    %131 = vmatprep.subr.mxu0 0.0
    %132 = vmatpush1.msra.mxu0 0.0
    %133 = vmatprep.subr.mxu0 0.0
    %134 = vmatpush1.msra.mxu0 0.0
    %135 = vmatprep.subr.mxu0 0.0
    %136 = vmatpush1.msra.mxu0 0.0
    %137 = vmatprep.subr.mxu0 0.0
    %138 = vmatpush1.msra.mxu0 0.0
    %139 = vmatprep.subr.mxu0 0.0
    %140 = vmatpush1.msra.mxu0 0.0
    %141 = vmatprep.subr.mxu0 0.0
    %142 = vmatpush1.msra.mxu0 0.0
    %143 = vmatprep.subr.mxu0 0.0
    %144 = vmatpush1.msra.mxu0 0.0
    %145 = vmatprep.subr.mxu0 0.0
    %146 = vmatpush1.msra.mxu0 0.0
    %147 = vmatprep.subr.mxu0 0.0
    %148 = vmatpush1.msra.mxu0 0.0
    %149 = vmatprep.subr.mxu0 0.0
    %150 = vmatpush1.msra.mxu0 0.0
    %151 = vmatprep.subr.mxu0 0.0
    %152 = vmatpush1.msra.mxu0 0.0
    %153 = vmatprep.mubr.f32.mxu0 0.0
    %154 = vmatmul.mubr.f32.gmra.mrb[0].mxu0 %v87
    %v155 = vpop.f32.mrb[0].mxu0
    %v156 = vadd.f32 0.0, %v155
    %v157 = vpop.f32.mrb[0].mxu0
    %158 = vdwg.mxu0
    %v160 = vsel %vm85, %v46, 0
    %162 = vmatprep.subr.mxu0 0.0
    %163 = vmatpush1.msra.mxu0 %v57
    %164 = vmatprep.subr.mxu0 0.0
    %165 = vmatpush1.msra.mxu0 %v58
    %166 = vmatprep.subr.mxu0 0.0
    %167 = vmatpush1.msra.mxu0 %v59
    %168 = vmatprep.subr.mxu0 0.0
    %169 = vmatpush1.msra.mxu0 %v60
    %170 = vmatprep.subr.mxu0 0.0
    %171 = vmatpush1.msra.mxu0 0.0
    %172 = vmatprep.subr.mxu0 0.0
    %173 = vmatpush1.msra.mxu0 0.0
    %174 = vmatprep.subr.mxu0 0.0
    %175 = vmatpush1.msra.mxu0 0.0
    %176 = vmatprep.subr.mxu0 0.0
    %177 = vmatpush1.msra.mxu0 0.0
    %178 = vmatprep.subr.mxu0 0.0
    %179 = vmatpush1.msra.mxu0 0.0
    %180 = vmatprep.subr.mxu0 0.0
    %181 = vmatpush1.msra.mxu0 0.0
    %182 = vmatprep.subr.mxu0 0.0
    %183 = vmatpush1.msra.mxu0 0.0
    %184 = vmatprep.subr.mxu0 0.0
    %185 = vmatpush1.msra.mxu0 0.0
    %186 = vmatprep.subr.mxu0 0.0
    %187 = vmatpush1.msra.mxu0 0.0
    %188 = vmatprep.subr.mxu0 0.0
    %189 = vmatpush1.msra.mxu0 0.0
    %190 = vmatprep.subr.mxu0 0.0
    %191 = vmatpush1.msra.mxu0 0.0
    %192 = vmatprep.subr.mxu0 0.0
    %193 = vmatpush1.msra.mxu0 0.0
    %194 = vmatprep.subr.mxu0 0.0
    %195 = vmatpush1.msra.mxu0 0.0
    %196 = vmatprep.subr.mxu0 0.0
    %197 = vmatpush1.msra.mxu0 0.0
    %198 = vmatprep.subr.mxu0 0.0
    %199 = vmatpush1.msra.mxu0 0.0
    %200 = vmatprep.subr.mxu0 0.0
    %201 = vmatpush1.msra.mxu0 0.0
    %202 = vmatprep.subr.mxu0 0.0
    %203 = vmatpush1.msra.mxu0 0.0
    %204 = vmatprep.subr.mxu0 0.0
    %205 = vmatpush1.msra.mxu0 0.0
    %206 = vmatprep.subr.mxu0 0.0
    %207 = vmatpush1.msra.mxu0 0.0
    %208 = vmatprep.subr.mxu0 0.0
    %209 = vmatpush1.msra.mxu0 0.0
    %210 = vmatprep.subr.mxu0 0.0
    %211 = vmatpush1.msra.mxu0 0.0
    %212 = vmatprep.subr.mxu0 0.0
    %213 = vmatpush1.msra.mxu0 0.0
    %214 = vmatprep.subr.mxu0 0.0
    %215 = vmatpush1.msra.mxu0 0.0
    %216 = vmatprep.subr.mxu0 0.0
    %217 = vmatpush1.msra.mxu0 0.0
    %218 = vmatprep.subr.mxu0 0.0
    %219 = vmatpush1.msra.mxu0 0.0
    %220 = vmatprep.subr.mxu0 0.0
    %221 = vmatpush1.msra.mxu0 0.0
    %222 = vmatprep.subr.mxu0 0.0
    %223 = vmatpush1.msra.mxu0 0.0
    %224 = vmatprep.subr.mxu0 0.0
    %225 = vmatpush1.msra.mxu0 0.0
    %226 = vmatprep.mubr.f32.mxu0 0.0
    %227 = vmatmul.mubr.f32.gmra.mrb[0].mxu0 %v160
    %v228 = vpop.f32.mrb[0].mxu0
    %v229 = vadd.f32 0.0, %v228
    %v230 = vpop.f32.mrb[0].mxu0
    %231 = vdwg.mxu0
    %v233 = vsel %vm85, %v47, 0
    %235 = vmatprep.subr.mxu0 0.0
    %236 = vmatpush1.msra.mxu0 %v61
    %237 = vmatprep.subr.mxu0 0.0
    %238 = vmatpush1.msra.mxu0 %v62
    %239 = vmatprep.subr.mxu0 0.0
    %240 = vmatpush1.msra.mxu0 %v63
    %241 = vmatprep.subr.mxu0 0.0
    %242 = vmatpush1.msra.mxu0 %v64
    %243 = vmatprep.subr.mxu0 0.0
    %244 = vmatpush1.msra.mxu0 0.0
    %245 = vmatprep.subr.mxu0 0.0
    %246 = vmatpush1.msra.mxu0 0.0
    %247 = vmatprep.subr.mxu0 0.0
    %248 = vmatpush1.msra.mxu0 0.0
    %249 = vmatprep.subr.mxu0 0.0
    %250 = vmatpush1.msra.mxu0 0.0
    %251 = vmatprep.subr.mxu0 0.0
    %252 = vmatpush1.msra.mxu0 0.0
    %253 = vmatprep.subr.mxu0 0.0
    %254 = vmatpush1.msra.mxu0 0.0
    %255 = vmatprep.subr.mxu0 0.0
    %256 = vmatpush1.msra.mxu0 0.0
    %257 = vmatprep.subr.mxu0 0.0
    %258 = vmatpush1.msra.mxu0 0.0
    %259 = vmatprep.subr.mxu0 0.0
    %260 = vmatpush1.msra.mxu0 0.0
    %261 = vmatprep.subr.mxu0 0.0
    %262 = vmatpush1.msra.mxu0 0.0
    %263 = vmatprep.subr.mxu0 0.0
    %264 = vmatpush1.msra.mxu0 0.0
    %265 = vmatprep.subr.mxu0 0.0
    %266 = vmatpush1.msra.mxu0 0.0
    %267 = vmatprep.subr.mxu0 0.0
    %268 = vmatpush1.msra.mxu0 0.0
    %269 = vmatprep.subr.mxu0 0.0
    %270 = vmatpush1.msra.mxu0 0.0
    %271 = vmatprep.subr.mxu0 0.0
    %272 = vmatpush1.msra.mxu0 0.0
    %273 = vmatprep.subr.mxu0 0.0
    %274 = vmatpush1.msra.mxu0 0.0
    %275 = vmatprep.subr.mxu0 0.0
    %276 = vmatpush1.msra.mxu0 0.0
    %277 = vmatprep.subr.mxu0 0.0
    %278 = vmatpush1.msra.mxu0 0.0
    %279 = vmatprep.subr.mxu0 0.0
    %280 = vmatpush1.msra.mxu0 0.0
    %281 = vmatprep.subr.mxu0 0.0
    %282 = vmatpush1.msra.mxu0 0.0
    %283 = vmatprep.subr.mxu0 0.0
    %284 = vmatpush1.msra.mxu0 0.0
    %285 = vmatprep.subr.mxu0 0.0
    %286 = vmatpush1.msra.mxu0 0.0
    %287 = vmatprep.subr.mxu0 0.0
    %288 = vmatpush1.msra.mxu0 0.0
    %289 = vmatprep.subr.mxu0 0.0
    %290 = vmatpush1.msra.mxu0 0.0
    %291 = vmatprep.subr.mxu0 0.0
    %292 = vmatpush1.msra.mxu0 0.0
    %293 = vmatprep.subr.mxu0 0.0
    %294 = vmatpush1.msra.mxu0 0.0
    %295 = vmatprep.subr.mxu0 0.0
    %296 = vmatpush1.msra.mxu0 0.0
    %297 = vmatprep.subr.mxu0 0.0
    %298 = vmatpush1.msra.mxu0 0.0
    %299 = vmatprep.mubr.f32.mxu0 0.0
    %300 = vmatmul.mubr.f32.gmra.mrb[0].mxu0 %v233
    %v301 = vpop.f32.mrb[0].mxu0
    %v302 = vadd.f32 0.0, %v301
    %v303 = vpop.f32.mrb[0].mxu0
    %304 = vdwg.mxu0
    %v306 = vsel %vm85, %v48, 0
    %308 = vmatprep.subr.mxu0 0.0
    %309 = vmatpush1.msra.mxu0 %v65
    %310 = vmatprep.subr.mxu0 0.0
    %311 = vmatpush1.msra.mxu0 %v66
    %312 = vmatprep.subr.mxu0 0.0
    %313 = vmatpush1.msra.mxu0 %v67
    %314 = vmatprep.subr.mxu0 0.0
    %315 = vmatpush1.msra.mxu0 %v68
    %316 = vmatprep.subr.mxu0 0.0
    %317 = vmatpush1.msra.mxu0 0.0
    %318 = vmatprep.subr.mxu0 0.0
    %319 = vmatpush1.msra.mxu0 0.0
    %320 = vmatprep.subr.mxu0 0.0
    %321 = vmatpush1.msra.mxu0 0.0
    %322 = vmatprep.subr.mxu0 0.0
    %323 = vmatpush1.msra.mxu0 0.0
    %324 = vmatprep.subr.mxu0 0.0
    %325 = vmatpush1.msra.mxu0 0.0
    %326 = vmatprep.subr.mxu0 0.0
    %327 = vmatpush1.msra.mxu0 0.0
    %328 = vmatprep.subr.mxu0 0.0
    %329 = vmatpush1.msra.mxu0 0.0
    %330 = vmatprep.subr.mxu0 0.0
    %331 = vmatpush1.msra.mxu0 0.0
    %332 = vmatprep.subr.mxu0 0.0
    %333 = vmatpush1.msra.mxu0 0.0
    %334 = vmatprep.subr.mxu0 0.0
    %335 = vmatpush1.msra.mxu0 0.0
    %336 = vmatprep.subr.mxu0 0.0
    %337 = vmatpush1.msra.mxu0 0.0
    %338 = vmatprep.subr.mxu0 0.0
    %339 = vmatpush1.msra.mxu0 0.0
    %340 = vmatprep.subr.mxu0 0.0
    %341 = vmatpush1.msra.mxu0 0.0
    %342 = vmatprep.subr.mxu0 0.0
    %343 = vmatpush1.msra.mxu0 0.0
    %344 = vmatprep.subr.mxu0 0.0
    %345 = vmatpush1.msra.mxu0 0.0
    %346 = vmatprep.subr.mxu0 0.0
    %347 = vmatpush1.msra.mxu0 0.0
    %348 = vmatprep.subr.mxu0 0.0
    %349 = vmatpush1.msra.mxu0 0.0
    %350 = vmatprep.subr.mxu0 0.0
    %351 = vmatpush1.msra.mxu0 0.0
    %352 = vmatprep.subr.mxu0 0.0
    %353 = vmatpush1.msra.mxu0 0.0
    %354 = vmatprep.subr.mxu0 0.0
    %355 = vmatpush1.msra.mxu0 0.0
    %356 = vmatprep.subr.mxu0 0.0
    %357 = vmatpush1.msra.mxu0 0.0
    %358 = vmatprep.subr.mxu0 0.0
    %359 = vmatpush1.msra.mxu0 0.0
    %360 = vmatprep.subr.mxu0 0.0
    %361 = vmatpush1.msra.mxu0 0.0
    %362 = vmatprep.subr.mxu0 0.0
    %363 = vmatpush1.msra.mxu0 0.0
    %364 = vmatprep.subr.mxu0 0.0
    %365 = vmatpush1.msra.mxu0 0.0
    %366 = vmatprep.subr.mxu0 0.0
    %367 = vmatpush1.msra.mxu0 0.0
    %368 = vmatprep.subr.mxu0 0.0
    %369 = vmatpush1.msra.mxu0 0.0
    %370 = vmatprep.subr.mxu0 0.0
    %371 = vmatpush1.msra.mxu0 0.0
    %372 = vmatprep.mubr.f32.mxu0 0.0
    %373 = vmatmul.mubr.f32.gmra.mrb[0].mxu0 %v306
    %v374 = vpop.f32.mrb[0].mxu0
    %v375 = vadd.f32 0.0, %v374
    %v376 = vpop.f32.mrb[0].mxu0
    %377 = vdwg.mxu0
    %v379 = vsel %vm85, %v49, 0
    %381 = vmatprep.subr.mxu0 0.0
    %382 = vmatpush1.msra.mxu0 %v69
    %383 = vmatprep.subr.mxu0 0.0
    %384 = vmatpush1.msra.mxu0 %v70
    %385 = vmatprep.subr.mxu0 0.0
    %386 = vmatpush1.msra.mxu0 %v71
    %387 = vmatprep.subr.mxu0 0.0
    %388 = vmatpush1.msra.mxu0 %v72
    %389 = vmatprep.subr.mxu0 0.0
    %390 = vmatpush1.msra.mxu0 0.0
    %391 = vmatprep.subr.mxu0 0.0
    %392 = vmatpush1.msra.mxu0 0.0
    %393 = vmatprep.subr.mxu0 0.0
    %394 = vmatpush1.msra.mxu0 0.0
    %395 = vmatprep.subr.mxu0 0.0
    %396 = vmatpush1.msra.mxu0 0.0
    %397 = vmatprep.subr.mxu0 0.0
    %398 = vmatpush1.msra.mxu0 0.0
    %399 = vmatprep.subr.mxu0 0.0
    %400 = vmatpush1.msra.mxu0 0.0
    %401 = vmatprep.subr.mxu0 0.0
    %402 = vmatpush1.msra.mxu0 0.0
    %403 = vmatprep.subr.mxu0 0.0
    %404 = vmatpush1.msra.mxu0 0.0
    %405 = vmatprep.subr.mxu0 0.0
    %406 = vmatpush1.msra.mxu0 0.0
    %407 = vmatprep.subr.mxu0 0.0
    %408 = vmatpush1.msra.mxu0 0.0
    %409 = vmatprep.subr.mxu0 0.0
    %410 = vmatpush1.msra.mxu0 0.0
    %411 = vmatprep.subr.mxu0 0.0
    %412 = vmatpush1.msra.mxu0 0.0
    %413 = vmatprep.subr.mxu0 0.0
    %414 = vmatpush1.msra.mxu0 0.0
    %415 = vmatprep.subr.mxu0 0.0
    %416 = vmatpush1.msra.mxu0 0.0
    %417 = vmatprep.subr.mxu0 0.0
    %418 = vmatpush1.msra.mxu0 0.0
    %419 = vmatprep.subr.mxu0 0.0
    %420 = vmatpush1.msra.mxu0 0.0
    %421 = vmatprep.subr.mxu0 0.0
    %422 = vmatpush1.msra.mxu0 0.0
    %423 = vmatprep.subr.mxu0 0.0
    %424 = vmatpush1.msra.mxu0 0.0
    %425 = vmatprep.subr.mxu0 0.0
    %426 = vmatpush1.msra.mxu0 0.0
    %427 = vmatprep.subr.mxu0 0.0
    %428 = vmatpush1.msra.mxu0 0.0
    %429 = vmatprep.subr.mxu0 0.0
    %430 = vmatpush1.msra.mxu0 0.0
    %431 = vmatprep.subr.mxu0 0.0
    %432 = vmatpush1.msra.mxu0 0.0
    %433 = vmatprep.subr.mxu0 0.0
    %434 = vmatpush1.msra.mxu0 0.0
    %435 = vmatprep.subr.mxu0 0.0
    %436 = vmatpush1.msra.mxu0 0.0
    %437 = vmatprep.subr.mxu0 0.0
    %438 = vmatpush1.msra.mxu0 0.0
    %439 = vmatprep.subr.mxu0 0.0
    %440 = vmatpush1.msra.mxu0 0.0
    %441 = vmatprep.subr.mxu0 0.0
    %442 = vmatpush1.msra.mxu0 0.0
    %443 = vmatprep.subr.mxu0 0.0
    %444 = vmatpush1.msra.mxu0 0.0
    %445 = vmatprep.mubr.f32.mxu0 0.0
    %446 = vmatmul.mubr.f32.gmra.mrb[0].mxu0 %v379
    %v447 = vpop.f32.mrb[0].mxu0
    %v448 = vadd.f32 0.0, %v447
    %v449 = vpop.f32.mrb[0].mxu0
    %450 = vdwg.mxu0
    %v452 = vsel %vm85, %v50, 0
    %454 = vmatprep.subr.mxu0 0.0
    %455 = vmatpush1.msra.mxu0 %v73
    %456 = vmatprep.subr.mxu0 0.0
    %457 = vmatpush1.msra.mxu0 %v74
    %458 = vmatprep.subr.mxu0 0.0
    %459 = vmatpush1.msra.mxu0 %v75
    %460 = vmatprep.subr.mxu0 0.0
    %461 = vmatpush1.msra.mxu0 %v76
    %462 = vmatprep.subr.mxu0 0.0
    %463 = vmatpush1.msra.mxu0 0.0
    %464 = vmatprep.subr.mxu0 0.0
    %465 = vmatpush1.msra.mxu0 0.0
    %466 = vmatprep.subr.mxu0 0.0
    %467 = vmatpush1.msra.mxu0 0.0
    %468 = vmatprep.subr.mxu0 0.0
    %469 = vmatpush1.msra.mxu0 0.0
    %470 = vmatprep.subr.mxu0 0.0
    %471 = vmatpush1.msra.mxu0 0.0
    %472 = vmatprep.subr.mxu0 0.0
    %473 = vmatpush1.msra.mxu0 0.0
    %474 = vmatprep.subr.mxu0 0.0
    %475 = vmatpush1.msra.mxu0 0.0
    %476 = vmatprep.subr.mxu0 0.0
    %477 = vmatpush1.msra.mxu0 0.0
    %478 = vmatprep.subr.mxu0 0.0
    %479 = vmatpush1.msra.mxu0 0.0
    %480 = vmatprep.subr.mxu0 0.0
    %481 = vmatpush1.msra.mxu0 0.0
    %482 = vmatprep.subr.mxu0 0.0
    %483 = vmatpush1.msra.mxu0 0.0
    %484 = vmatprep.subr.mxu0 0.0
    %485 = vmatpush1.msra.mxu0 0.0
    %486 = vmatprep.subr.mxu0 0.0
    %487 = vmatpush1.msra.mxu0 0.0
    %488 = vmatprep.subr.mxu0 0.0
    %489 = vmatpush1.msra.mxu0 0.0
    %490 = vmatprep.subr.mxu0 0.0
    %491 = vmatpush1.msra.mxu0 0.0
    %492 = vmatprep.subr.mxu0 0.0
    %493 = vmatpush1.msra.mxu0 0.0
    %494 = vmatprep.subr.mxu0 0.0
    %495 = vmatpush1.msra.mxu0 0.0
    %496 = vmatprep.subr.mxu0 0.0
    %497 = vmatpush1.msra.mxu0 0.0
    %498 = vmatprep.subr.mxu0 0.0
    %499 = vmatpush1.msra.mxu0 0.0
    %500 = vmatprep.subr.mxu0 0.0
    %501 = vmatpush1.msra.mxu0 0.0
    %502 = vmatprep.subr.mxu0 0.0
    %503 = vmatpush1.msra.mxu0 0.0
    %504 = vmatprep.subr.mxu0 0.0
    %505 = vmatpush1.msra.mxu0 0.0
    %506 = vmatprep.subr.mxu0 0.0
    %507 = vmatpush1.msra.mxu0 0.0
    %508 = vmatprep.subr.mxu0 0.0
    %509 = vmatpush1.msra.mxu0 0.0
    %510 = vmatprep.subr.mxu0 0.0
    %511 = vmatpush1.msra.mxu0 0.0
    %512 = vmatprep.subr.mxu0 0.0
    %513 = vmatpush1.msra.mxu0 0.0
    %514 = vmatprep.subr.mxu0 0.0
    %515 = vmatpush1.msra.mxu0 0.0
    %516 = vmatprep.subr.mxu0 0.0
    %517 = vmatpush1.msra.mxu0 0.0
    %518 = vmatprep.mubr.f32.mxu0 0.0
    %519 = vmatmul.mubr.f32.gmra.mrb[0].mxu0 %v452
    %v520 = vpop.f32.mrb[0].mxu0
    %v521 = vadd.f32 0.0, %v520
    %v522 = vpop.f32.mrb[0].mxu0
    %523 = vdwg.mxu0
    %v525 = vsel %vm85, %v51, 0
    %527 = vmatprep.subr.mxu0 0.0
    %528 = vmatpush1.msra.mxu0 %v77
    %529 = vmatprep.subr.mxu0 0.0
    %530 = vmatpush1.msra.mxu0 %v78
    %531 = vmatprep.subr.mxu0 0.0
    %532 = vmatpush1.msra.mxu0 %v79
    %533 = vmatprep.subr.mxu0 0.0
    %534 = vmatpush1.msra.mxu0 %v80
    %535 = vmatprep.subr.mxu0 0.0
    %536 = vmatpush1.msra.mxu0 0.0
    %537 = vmatprep.subr.mxu0 0.0
    %538 = vmatpush1.msra.mxu0 0.0
    %539 = vmatprep.subr.mxu0 0.0
    %540 = vmatpush1.msra.mxu0 0.0
    %541 = vmatprep.subr.mxu0 0.0
    %542 = vmatpush1.msra.mxu0 0.0
    %543 = vmatprep.subr.mxu0 0.0
    %544 = vmatpush1.msra.mxu0 0.0
    %545 = vmatprep.subr.mxu0 0.0
    %546 = vmatpush1.msra.mxu0 0.0
    %547 = vmatprep.subr.mxu0 0.0
    %548 = vmatpush1.msra.mxu0 0.0
    %549 = vmatprep.subr.mxu0 0.0
    %550 = vmatpush1.msra.mxu0 0.0
    %551 = vmatprep.subr.mxu0 0.0
    %552 = vmatpush1.msra.mxu0 0.0
    %553 = vmatprep.subr.mxu0 0.0
    %554 = vmatpush1.msra.mxu0 0.0
    %555 = vmatprep.subr.mxu0 0.0
    %556 = vmatpush1.msra.mxu0 0.0
    %557 = vmatprep.subr.mxu0 0.0
    %558 = vmatpush1.msra.mxu0 0.0
    %559 = vmatprep.subr.mxu0 0.0
    %560 = vmatpush1.msra.mxu0 0.0
    %561 = vmatprep.subr.mxu0 0.0
    %562 = vmatpush1.msra.mxu0 0.0
    %563 = vmatprep.subr.mxu0 0.0
    %564 = vmatpush1.msra.mxu0 0.0
    %565 = vmatprep.subr.mxu0 0.0
    %566 = vmatpush1.msra.mxu0 0.0
    %567 = vmatprep.subr.mxu0 0.0
    %568 = vmatpush1.msra.mxu0 0.0
    %569 = vmatprep.subr.mxu0 0.0
    %570 = vmatpush1.msra.mxu0 0.0
    %571 = vmatprep.subr.mxu0 0.0
    %572 = vmatpush1.msra.mxu0 0.0
    %573 = vmatprep.subr.mxu0 0.0
    %574 = vmatpush1.msra.mxu0 0.0
    %575 = vmatprep.subr.mxu0 0.0
    %576 = vmatpush1.msra.mxu0 0.0
    %577 = vmatprep.subr.mxu0 0.0
    %578 = vmatpush1.msra.mxu0 0.0
    %579 = vmatprep.subr.mxu0 0.0
    %580 = vmatpush1.msra.mxu0 0.0
    %581 = vmatprep.subr.mxu0 0.0
    %582 = vmatpush1.msra.mxu0 0.0
    %583 = vmatprep.subr.mxu0 0.0
    %584 = vmatpush1.msra.mxu0 0.0
    %585 = vmatprep.subr.mxu0 0.0
    %586 = vmatpush1.msra.mxu0 0.0
    %587 = vmatprep.subr.mxu0 0.0
    %588 = vmatpush1.msra.mxu0 0.0
    %589 = vmatprep.subr.mxu0 0.0
    %590 = vmatpush1.msra.mxu0 0.0
    %591 = vmatprep.mubr.f32.mxu0 0.0
    %592 = vmatmul.mubr.f32.gmra.mrb[0].mxu0 %v525
    %v593 = vpop.f32.mrb[0].mxu0
    %v594 = vadd.f32 0.0, %v593
    %v595 = vpop.f32.mrb[0].mxu0
    %596 = vdwg.mxu0
    %v598 = vsel %vm85, %v52, 0
    %600 = vmatprep.subr.mxu0 0.0
    %601 = vmatpush1.msra.mxu0 %v81
    %602 = vmatprep.subr.mxu0 0.0
    %603 = vmatpush1.msra.mxu0 %v82
    %604 = vmatprep.subr.mxu0 0.0
    %605 = vmatpush1.msra.mxu0 %v83
    %606 = vmatprep.subr.mxu0 0.0
    %607 = vmatpush1.msra.mxu0 %v84
    %608 = vmatprep.subr.mxu0 0.0
    %609 = vmatpush1.msra.mxu0 0.0
    %610 = vmatprep.subr.mxu0 0.0
    %611 = vmatpush1.msra.mxu0 0.0
    %612 = vmatprep.subr.mxu0 0.0
    %613 = vmatpush1.msra.mxu0 0.0
    %614 = vmatprep.subr.mxu0 0.0
    %615 = vmatpush1.msra.mxu0 0.0
    %616 = vmatprep.subr.mxu0 0.0
    %617 = vmatpush1.msra.mxu0 0.0
    %618 = vmatprep.subr.mxu0 0.0
    %619 = vmatpush1.msra.mxu0 0.0
    %620 = vmatprep.subr.mxu0 0.0
    %621 = vmatpush1.msra.mxu0 0.0
    %622 = vmatprep.subr.mxu0 0.0
    %623 = vmatpush1.msra.mxu0 0.0
    %624 = vmatprep.subr.mxu0 0.0
    %625 = vmatpush1.msra.mxu0 0.0
    %626 = vmatprep.subr.mxu0 0.0
    %627 = vmatpush1.msra.mxu0 0.0
    %628 = vmatprep.subr.mxu0 0.0
    %629 = vmatpush1.msra.mxu0 0.0
    %630 = vmatprep.subr.mxu0 0.0
    %631 = vmatpush1.msra.mxu0 0.0
    %632 = vmatprep.subr.mxu0 0.0
    %633 = vmatpush1.msra.mxu0 0.0
    %634 = vmatprep.subr.mxu0 0.0
    %635 = vmatpush1.msra.mxu0 0.0
    %636 = vmatprep.subr.mxu0 0.0
    %637 = vmatpush1.msra.mxu0 0.0
    %638 = vmatprep.subr.mxu0 0.0
    %639 = vmatpush1.msra.mxu0 0.0
    %640 = vmatprep.subr.mxu0 0.0
    %641 = vmatpush1.msra.mxu0 0.0
    %642 = vmatprep.subr.mxu0 0.0
    %643 = vmatpush1.msra.mxu0 0.0
    %644 = vmatprep.subr.mxu0 0.0
    %645 = vmatpush1.msra.mxu0 0.0
    %646 = vmatprep.subr.mxu0 0.0
    %647 = vmatpush1.msra.mxu0 0.0
    %648 = vmatprep.subr.mxu0 0.0
    %649 = vmatpush1.msra.mxu0 0.0
    %650 = vmatprep.subr.mxu0 0.0
    %651 = vmatpush1.msra.mxu0 0.0
    %652 = vmatprep.subr.mxu0 0.0
    %653 = vmatpush1.msra.mxu0 0.0
    %654 = vmatprep.subr.mxu0 0.0
    %655 = vmatpush1.msra.mxu0 0.0
    %656 = vmatprep.subr.mxu0 0.0
    %657 = vmatpush1.msra.mxu0 0.0
    %658 = vmatprep.subr.mxu0 0.0
    %659 = vmatpush1.msra.mxu0 0.0
    %660 = vmatprep.subr.mxu0 0.0
    %661 = vmatpush1.msra.mxu0 0.0
    %662 = vmatprep.subr.mxu0 0.0
    %663 = vmatpush1.msra.mxu0 0.0
    %664 = vmatprep.mubr.f32.mxu0 0.0
    %665 = vmatmul.mubr.f32.gmra.mrb[0].mxu0 %v598
    %v666 = vpop.f32.mrb[0].mxu0
    %v667 = vadd.f32 0.0, %v666
    %v668 = vpop.f32.mrb[0].mxu0
    %669 = vdwg.mxu0
    %671 = vrot.lane.b32.xlu0 %v156, 120
    %v672 = vpop.permute.xlu0 %671
    %vm673 = vcmask 64512
    %v674 = vsel %vm673, %v156, 0
    %v676 = vsel %vm673, %v672, 0
    %678 = vmatprep.subr.mxu0 0.0
    %679 = vmatpush1.xpose.msra.mxu0 %v676
    %680 = vmatprep.subr.mxu0 0.0
    %681 = vmatpush1.xpose.msra.mxu0 0.0
    %682 = vmatprep.subr.mxu0 0.0
    %683 = vmatpush1.xpose.msra.mxu0 0.0
    %684 = vmatprep.subr.mxu0 0.0
    %685 = vmatpush1.xpose.msra.mxu0 0.0
    %686 = vmatprep.subr.mxu0 0.0
    %687 = vmatpush1.xpose.msra.mxu0 0.0
    %688 = vmatprep.subr.mxu0 0.0
    %689 = vmatpush1.xpose.msra.mxu0 0.0
    %690 = vmatprep.subr.mxu0 0.0
    %691 = vmatpush1.xpose.msra.mxu0 0.0
    %692 = vmatprep.subr.mxu0 0.0
    %693 = vmatpush1.xpose.msra.mxu0 0.0
    %694 = vmatprep.subr.mxu0 0.0
    %695 = vmatpush1.xpose.msra.mxu0 0.0
    %696 = vmatprep.subr.mxu0 0.0
    %697 = vmatpush1.xpose.msra.mxu0 0.0
    %698 = vmatprep.subr.mxu0 0.0
    %699 = vmatpush1.xpose.msra.mxu0 0.0
    %700 = vmatprep.subr.mxu0 0.0
    %701 = vmatpush1.xpose.msra.mxu0 0.0
    %702 = vmatprep.subr.mxu0 0.0
    %703 = vmatpush1.xpose.msra.mxu0 0.0
    %704 = vmatprep.subr.mxu0 0.0
    %705 = vmatpush1.xpose.msra.mxu0 0.0
    %706 = vmatprep.subr.mxu0 0.0
    %707 = vmatpush1.xpose.msra.mxu0 0.0
    %708 = vmatprep.subr.mxu0 0.0
    %709 = vmatpush1.xpose.msra.mxu0 0.0
    %710 = vmatprep.subr.mxu0 0.0
    %711 = vmatpush1.xpose.msra.mxu0 0.0
    %712 = vmatprep.subr.mxu0 0.0
    %713 = vmatpush1.xpose.msra.mxu0 0.0
    %714 = vmatprep.subr.mxu0 0.0
    %715 = vmatpush1.xpose.msra.mxu0 0.0
    %716 = vmatprep.subr.mxu0 0.0
    %717 = vmatpush1.xpose.msra.mxu0 0.0
    %718 = vmatprep.subr.mxu0 0.0
    %719 = vmatpush1.xpose.msra.mxu0 0.0
    %720 = vmatprep.subr.mxu0 0.0
    %721 = vmatpush1.xpose.msra.mxu0 0.0
    %722 = vmatprep.subr.mxu0 0.0
    %723 = vmatpush1.xpose.msra.mxu0 0.0
    %724 = vmatprep.subr.mxu0 0.0
    %725 = vmatpush1.xpose.msra.mxu0 0.0
    %726 = vmatprep.subr.mxu0 0.0
    %727 = vmatpush1.xpose.msra.mxu0 0.0
    %728 = vmatprep.subr.mxu0 0.0
    %729 = vmatpush1.xpose.msra.mxu0 0.0
    %730 = vmatprep.subr.mxu0 0.0
    %731 = vmatpush1.xpose.msra.mxu0 0.0
    %732 = vmatprep.subr.mxu0 0.0
    %733 = vmatpush1.xpose.msra.mxu0 0.0
    %734 = vmatprep.subr.mxu0 0.0
    %735 = vmatpush1.xpose.msra.mxu0 0.0
    %736 = vmatprep.subr.mxu0 0.0
    %737 = vmatpush1.xpose.msra.mxu0 0.0
    %738 = vmatprep.subr.mxu0 0.0
    %739 = vmatpush1.xpose.msra.mxu0 0.0
    %740 = vmatprep.subr.mxu0 0.0
    %741 = vmatpush1.xpose.msra.mxu0 0.0
    %742 = vmatprep.mubr.f32.mxu0 0.0
    %743 = vmatmul.mubr.f32.gmra.mrb[0].mxu0 %v674
    %v744 = vpop.f32.mrb[0].mxu0
    %v745 = vadd.f32 0.0, %v744
    %v746 = vpop.f32.mrb[0].mxu0
    %747 = vdwg.mxu0
    %749 = vrot.lane.b32.xlu0 %v229, 120
    %v750 = vpop.permute.xlu0 %749
    %v751 = vsel %vm673, %v229, 0
    %v753 = vsel %vm673, %v750, 0
    %755 = vmatprep.subr.mxu0 0.0
    %756 = vmatpush1.xpose.msra.mxu0 %v753
    %757 = vmatprep.subr.mxu0 0.0
    %758 = vmatpush1.xpose.msra.mxu0 0.0
    %759 = vmatprep.subr.mxu0 0.0
    %760 = vmatpush1.xpose.msra.mxu0 0.0
    %761 = vmatprep.subr.mxu0 0.0
    %762 = vmatpush1.xpose.msra.mxu0 0.0
    %763 = vmatprep.subr.mxu0 0.0
    %764 = vmatpush1.xpose.msra.mxu0 0.0
    %765 = vmatprep.subr.mxu0 0.0
    %766 = vmatpush1.xpose.msra.mxu0 0.0
    %767 = vmatprep.subr.mxu0 0.0
    %768 = vmatpush1.xpose.msra.mxu0 0.0
    %769 = vmatprep.subr.mxu0 0.0
    %770 = vmatpush1.xpose.msra.mxu0 0.0
    %771 = vmatprep.subr.mxu0 0.0
    %772 = vmatpush1.xpose.msra.mxu0 0.0
    %773 = vmatprep.subr.mxu0 0.0
    %774 = vmatpush1.xpose.msra.mxu0 0.0
    %775 = vmatprep.subr.mxu0 0.0
    %776 = vmatpush1.xpose.msra.mxu0 0.0
    %777 = vmatprep.subr.mxu0 0.0
    %778 = vmatpush1.xpose.msra.mxu0 0.0
    %779 = vmatprep.subr.mxu0 0.0
    %780 = vmatpush1.xpose.msra.mxu0 0.0
    %781 = vmatprep.subr.mxu0 0.0
    %782 = vmatpush1.xpose.msra.mxu0 0.0
    %783 = vmatprep.subr.mxu0 0.0
    %784 = vmatpush1.xpose.msra.mxu0 0.0
    %785 = vmatprep.subr.mxu0 0.0
    %786 = vmatpush1.xpose.msra.mxu0 0.0
    %787 = vmatprep.subr.mxu0 0.0
    %788 = vmatpush1.xpose.msra.mxu0 0.0
    %789 = vmatprep.subr.mxu0 0.0
    %790 = vmatpush1.xpose.msra.mxu0 0.0
    %791 = vmatprep.subr.mxu0 0.0
    %792 = vmatpush1.xpose.msra.mxu0 0.0
    %793 = vmatprep.subr.mxu0 0.0
    %794 = vmatpush1.xpose.msra.mxu0 0.0
    %795 = vmatprep.subr.mxu0 0.0
    %796 = vmatpush1.xpose.msra.mxu0 0.0
    %797 = vmatprep.subr.mxu0 0.0
    %798 = vmatpush1.xpose.msra.mxu0 0.0
    %799 = vmatprep.subr.mxu0 0.0
    %800 = vmatpush1.xpose.msra.mxu0 0.0
    %801 = vmatprep.subr.mxu0 0.0
    %802 = vmatpush1.xpose.msra.mxu0 0.0
    %803 = vmatprep.subr.mxu0 0.0
    %804 = vmatpush1.xpose.msra.mxu0 0.0
    %805 = vmatprep.subr.mxu0 0.0
    %806 = vmatpush1.xpose.msra.mxu0 0.0
    %807 = vmatprep.subr.mxu0 0.0
    %808 = vmatpush1.xpose.msra.mxu0 0.0
    %809 = vmatprep.subr.mxu0 0.0
    %810 = vmatpush1.xpose.msra.mxu0 0.0
    %811 = vmatprep.subr.mxu0 0.0
    %812 = vmatpush1.xpose.msra.mxu0 0.0
    %813 = vmatprep.subr.mxu0 0.0
    %814 = vmatpush1.xpose.msra.mxu0 0.0
    %815 = vmatprep.subr.mxu0 0.0
    %816 = vmatpush1.xpose.msra.mxu0 0.0
    %817 = vmatprep.subr.mxu0 0.0
    %818 = vmatpush1.xpose.msra.mxu0 0.0
    %819 = vmatprep.mubr.f32.mxu0 0.0
    %820 = vmatmul.mubr.f32.gmra.mrb[0].mxu0 %v751
    %v821 = vpop.f32.mrb[0].mxu0
    %v822 = vadd.f32 0.0, %v821
    %v823 = vpop.f32.mrb[0].mxu0
    %824 = vdwg.mxu0
    %826 = vrot.lane.b32.xlu0 %v302, 120
    %v827 = vpop.permute.xlu0 %826
    %v828 = vsel %vm673, %v302, 0
    %v830 = vsel %vm673, %v827, 0
    %832 = vmatprep.subr.mxu0 0.0
    %833 = vmatpush1.xpose.msra.mxu0 %v830
    %834 = vmatprep.subr.mxu0 0.0
    %835 = vmatpush1.xpose.msra.mxu0 0.0
    %836 = vmatprep.subr.mxu0 0.0
    %837 = vmatpush1.xpose.msra.mxu0 0.0
    %838 = vmatprep.subr.mxu0 0.0
    %839 = vmatpush1.xpose.msra.mxu0 0.0
    %840 = vmatprep.subr.mxu0 0.0
    %841 = vmatpush1.xpose.msra.mxu0 0.0
    %842 = vmatprep.subr.mxu0 0.0
    %843 = vmatpush1.xpose.msra.mxu0 0.0
    %844 = vmatprep.subr.mxu0 0.0
    %845 = vmatpush1.xpose.msra.mxu0 0.0
    %846 = vmatprep.subr.mxu0 0.0
    %847 = vmatpush1.xpose.msra.mxu0 0.0
    %848 = vmatprep.subr.mxu0 0.0
    %849 = vmatpush1.xpose.msra.mxu0 0.0
    %850 = vmatprep.subr.mxu0 0.0
    %851 = vmatpush1.xpose.msra.mxu0 0.0
    %852 = vmatprep.subr.mxu0 0.0
    %853 = vmatpush1.xpose.msra.mxu0 0.0
    %854 = vmatprep.subr.mxu0 0.0
    %855 = vmatpush1.xpose.msra.mxu0 0.0
    %856 = vmatprep.subr.mxu0 0.0
    %857 = vmatpush1.xpose.msra.mxu0 0.0
    %858 = vmatprep.subr.mxu0 0.0
    %859 = vmatpush1.xpose.msra.mxu0 0.0
    %860 = vmatprep.subr.mxu0 0.0
    %861 = vmatpush1.xpose.msra.mxu0 0.0
    %862 = vmatprep.subr.mxu0 0.0
    %863 = vmatpush1.xpose.msra.mxu0 0.0
    %864 = vmatprep.subr.mxu0 0.0
    %865 = vmatpush1.xpose.msra.mxu0 0.0
    %866 = vmatprep.subr.mxu0 0.0
    %867 = vmatpush1.xpose.msra.mxu0 0.0
    %868 = vmatprep.subr.mxu0 0.0
    %869 = vmatpush1.xpose.msra.mxu0 0.0
    %870 = vmatprep.subr.mxu0 0.0
    %871 = vmatpush1.xpose.msra.mxu0 0.0
    %872 = vmatprep.subr.mxu0 0.0
    %873 = vmatpush1.xpose.msra.mxu0 0.0
    %874 = vmatprep.subr.mxu0 0.0
    %875 = vmatpush1.xpose.msra.mxu0 0.0
    %876 = vmatprep.subr.mxu0 0.0
    %877 = vmatpush1.xpose.msra.mxu0 0.0
    %878 = vmatprep.subr.mxu0 0.0
    %879 = vmatpush1.xpose.msra.mxu0 0.0
    %880 = vmatprep.subr.mxu0 0.0
    %881 = vmatpush1.xpose.msra.mxu0 0.0
    %882 = vmatprep.subr.mxu0 0.0
    %883 = vmatpush1.xpose.msra.mxu0 0.0
    %884 = vmatprep.subr.mxu0 0.0
    %885 = vmatpush1.xpose.msra.mxu0 0.0
    %886 = vmatprep.subr.mxu0 0.0
    %887 = vmatpush1.xpose.msra.mxu0 0.0
    %888 = vmatprep.subr.mxu0 0.0
    %889 = vmatpush1.xpose.msra.mxu0 0.0
    %890 = vmatprep.subr.mxu0 0.0
    %891 = vmatpush1.xpose.msra.mxu0 0.0
    %892 = vmatprep.subr.mxu0 0.0
    %893 = vmatpush1.xpose.msra.mxu0 0.0
    %894 = vmatprep.subr.mxu0 0.0
    %895 = vmatpush1.xpose.msra.mxu0 0.0
    %896 = vmatprep.mubr.f32.mxu0 0.0
    %897 = vmatmul.mubr.f32.gmra.mrb[0].mxu0 %v828
    %v898 = vpop.f32.mrb[0].mxu0
    %v899 = vadd.f32 0.0, %v898
    %v900 = vpop.f32.mrb[0].mxu0
    %901 = vdwg.mxu0
    %903 = vrot.lane.b32.xlu0 %v375, 120
    %v904 = vpop.permute.xlu0 %903
    %v905 = vsel %vm673, %v375, 0
    %v907 = vsel %vm673, %v904, 0
    %909 = vmatprep.subr.mxu0 0.0
    %910 = vmatpush1.xpose.msra.mxu0 %v907
    %911 = vmatprep.subr.mxu0 0.0
    %912 = vmatpush1.xpose.msra.mxu0 0.0
    %913 = vmatprep.subr.mxu0 0.0
    %914 = vmatpush1.xpose.msra.mxu0 0.0
    %915 = vmatprep.subr.mxu0 0.0
    %916 = vmatpush1.xpose.msra.mxu0 0.0
    %917 = vmatprep.subr.mxu0 0.0
    %918 = vmatpush1.xpose.msra.mxu0 0.0
    %919 = vmatprep.subr.mxu0 0.0
    %920 = vmatpush1.xpose.msra.mxu0 0.0
    %921 = vmatprep.subr.mxu0 0.0
    %922 = vmatpush1.xpose.msra.mxu0 0.0
    %923 = vmatprep.subr.mxu0 0.0
    %924 = vmatpush1.xpose.msra.mxu0 0.0
    %925 = vmatprep.subr.mxu0 0.0
    %926 = vmatpush1.xpose.msra.mxu0 0.0
    %927 = vmatprep.subr.mxu0 0.0
    %928 = vmatpush1.xpose.msra.mxu0 0.0
    %929 = vmatprep.subr.mxu0 0.0
    %930 = vmatpush1.xpose.msra.mxu0 0.0
    %931 = vmatprep.subr.mxu0 0.0
    %932 = vmatpush1.xpose.msra.mxu0 0.0
    %933 = vmatprep.subr.mxu0 0.0
    %934 = vmatpush1.xpose.msra.mxu0 0.0
    %935 = vmatprep.subr.mxu0 0.0
    %936 = vmatpush1.xpose.msra.mxu0 0.0
    %937 = vmatprep.subr.mxu0 0.0
    %938 = vmatpush1.xpose.msra.mxu0 0.0
    %939 = vmatprep.subr.mxu0 0.0
    %940 = vmatpush1.xpose.msra.mxu0 0.0
    %941 = vmatprep.subr.mxu0 0.0
    %942 = vmatpush1.xpose.msra.mxu0 0.0
    %943 = vmatprep.subr.mxu0 0.0
    %944 = vmatpush1.xpose.msra.mxu0 0.0
    %945 = vmatprep.subr.mxu0 0.0
    %946 = vmatpush1.xpose.msra.mxu0 0.0
    %947 = vmatprep.subr.mxu0 0.0
    %948 = vmatpush1.xpose.msra.mxu0 0.0
    %949 = vmatprep.subr.mxu0 0.0
    %950 = vmatpush1.xpose.msra.mxu0 0.0
    %951 = vmatprep.subr.mxu0 0.0
    %952 = vmatpush1.xpose.msra.mxu0 0.0
    %953 = vmatprep.subr.mxu0 0.0
    %954 = vmatpush1.xpose.msra.mxu0 0.0
    %955 = vmatprep.subr.mxu0 0.0
    %956 = vmatpush1.xpose.msra.mxu0 0.0
    %957 = vmatprep.subr.mxu0 0.0
    %958 = vmatpush1.xpose.msra.mxu0 0.0
    %959 = vmatprep.subr.mxu0 0.0
    %960 = vmatpush1.xpose.msra.mxu0 0.0
    %961 = vmatprep.subr.mxu0 0.0
    %962 = vmatpush1.xpose.msra.mxu0 0.0
    %963 = vmatprep.subr.mxu0 0.0
    %964 = vmatpush1.xpose.msra.mxu0 0.0
    %965 = vmatprep.subr.mxu0 0.0
    %966 = vmatpush1.xpose.msra.mxu0 0.0
    %967 = vmatprep.subr.mxu0 0.0
    %968 = vmatpush1.xpose.msra.mxu0 0.0
    %969 = vmatprep.subr.mxu0 0.0
    %970 = vmatpush1.xpose.msra.mxu0 0.0
    %971 = vmatprep.subr.mxu0 0.0
    %972 = vmatpush1.xpose.msra.mxu0 0.0
    %973 = vmatprep.mubr.f32.mxu0 0.0
    %974 = vmatmul.mubr.f32.gmra.mrb[0].mxu0 %v905
    %v975 = vpop.f32.mrb[0].mxu0
    %v976 = vadd.f32 0.0, %v975
    %v977 = vpop.f32.mrb[0].mxu0
    %978 = vdwg.mxu0
    %980 = vrot.lane.b32.xlu0 %v448, 120
    %v981 = vpop.permute.xlu0 %980
    %v982 = vsel %vm673, %v448, 0
    %v984 = vsel %vm673, %v981, 0
    %986 = vmatprep.subr.mxu0 0.0
    %987 = vmatpush1.xpose.msra.mxu0 %v984
    %988 = vmatprep.subr.mxu0 0.0
    %989 = vmatpush1.xpose.msra.mxu0 0.0
    %990 = vmatprep.subr.mxu0 0.0
    %991 = vmatpush1.xpose.msra.mxu0 0.0
    %992 = vmatprep.subr.mxu0 0.0
    %993 = vmatpush1.xpose.msra.mxu0 0.0
    %994 = vmatprep.subr.mxu0 0.0
    %995 = vmatpush1.xpose.msra.mxu0 0.0
    %996 = vmatprep.subr.mxu0 0.0
    %997 = vmatpush1.xpose.msra.mxu0 0.0
    %998 = vmatprep.subr.mxu0 0.0
    %999 = vmatpush1.xpose.msra.mxu0 0.0
    %1000 = vmatprep.subr.mxu0 0.0
    %1001 = vmatpush1.xpose.msra.mxu0 0.0
    %1002 = vmatprep.subr.mxu0 0.0
    %1003 = vmatpush1.xpose.msra.mxu0 0.0
    %1004 = vmatprep.subr.mxu0 0.0
    %1005 = vmatpush1.xpose.msra.mxu0 0.0
    %1006 = vmatprep.subr.mxu0 0.0
    %1007 = vmatpush1.xpose.msra.mxu0 0.0
    %1008 = vmatprep.subr.mxu0 0.0
    %1009 = vmatpush1.xpose.msra.mxu0 0.0
    %1010 = vmatprep.subr.mxu0 0.0
    %1011 = vmatpush1.xpose.msra.mxu0 0.0
    %1012 = vmatprep.subr.mxu0 0.0
    %1013 = vmatpush1.xpose.msra.mxu0 0.0
    %1014 = vmatprep.subr.mxu0 0.0
    %1015 = vmatpush1.xpose.msra.mxu0 0.0
    %1016 = vmatprep.subr.mxu0 0.0
    %1017 = vmatpush1.xpose.msra.mxu0 0.0
    %1018 = vmatprep.subr.mxu0 0.0
    %1019 = vmatpush1.xpose.msra.mxu0 0.0
    %1020 = vmatprep.subr.mxu0 0.0
    %1021 = vmatpush1.xpose.msra.mxu0 0.0
    %1022 = vmatprep.subr.mxu0 0.0
    %1023 = vmatpush1.xpose.msra.mxu0 0.0
    %1024 = vmatprep.subr.mxu0 0.0
    %1025 = vmatpush1.xpose.msra.mxu0 0.0
    %1026 = vmatprep.subr.mxu0 0.0
    %1027 = vmatpush1.xpose.msra.mxu0 0.0
    %1028 = vmatprep.subr.mxu0 0.0
    %1029 = vmatpush1.xpose.msra.mxu0 0.0
    %1030 = vmatprep.subr.mxu0 0.0
    %1031 = vmatpush1.xpose.msra.mxu0 0.0
    %1032 = vmatprep.subr.mxu0 0.0
    %1033 = vmatpush1.xpose.msra.mxu0 0.0
    %1034 = vmatprep.subr.mxu0 0.0
    %1035 = vmatpush1.xpose.msra.mxu0 0.0
    %1036 = vmatprep.subr.mxu0 0.0
    %1037 = vmatpush1.xpose.msra.mxu0 0.0
    %1038 = vmatprep.subr.mxu0 0.0
    %1039 = vmatpush1.xpose.msra.mxu0 0.0
    %1040 = vmatprep.subr.mxu0 0.0
    %1041 = vmatpush1.xpose.msra.mxu0 0.0
    %1042 = vmatprep.subr.mxu0 0.0
    %1043 = vmatpush1.xpose.msra.mxu0 0.0
    %1044 = vmatprep.subr.mxu0 0.0
    %1045 = vmatpush1.xpose.msra.mxu0 0.0
    %1046 = vmatprep.subr.mxu0 0.0
    %1047 = vmatpush1.xpose.msra.mxu0 0.0
    %1048 = vmatprep.subr.mxu0 0.0
    %1049 = vmatpush1.xpose.msra.mxu0 0.0
    %1050 = vmatprep.mubr.f32.mxu0 0.0
    %1051 = vmatmul.mubr.f32.gmra.mrb[0].mxu0 %v982
    %v1052 = vpop.f32.mrb[0].mxu0
    %v1053 = vadd.f32 0.0, %v1052
    %v1054 = vpop.f32.mrb[0].mxu0
    %1055 = vdwg.mxu0
    %1057 = vrot.lane.b32.xlu0 %v521, 120
    %v1058 = vpop.permute.xlu0 %1057
    %v1059 = vsel %vm673, %v521, 0
    %v1061 = vsel %vm673, %v1058, 0
    %1063 = vmatprep.subr.mxu0 0.0
    %1064 = vmatpush1.xpose.msra.mxu0 %v1061
    %1065 = vmatprep.subr.mxu0 0.0
    %1066 = vmatpush1.xpose.msra.mxu0 0.0
    %1067 = vmatprep.subr.mxu0 0.0
    %1068 = vmatpush1.xpose.msra.mxu0 0.0
    %1069 = vmatprep.subr.mxu0 0.0
    %1070 = vmatpush1.xpose.msra.mxu0 0.0
    %1071 = vmatprep.subr.mxu0 0.0
    %1072 = vmatpush1.xpose.msra.mxu0 0.0
    %1073 = vmatprep.subr.mxu0 0.0
    %1074 = vmatpush1.xpose.msra.mxu0 0.0
    %1075 = vmatprep.subr.mxu0 0.0
    %1076 = vmatpush1.xpose.msra.mxu0 0.0
    %1077 = vmatprep.subr.mxu0 0.0
    %1078 = vmatpush1.xpose.msra.mxu0 0.0
    %1079 = vmatprep.subr.mxu0 0.0
    %1080 = vmatpush1.xpose.msra.mxu0 0.0
    %1081 = vmatprep.subr.mxu0 0.0
    %1082 = vmatpush1.xpose.msra.mxu0 0.0
    %1083 = vmatprep.subr.mxu0 0.0
    %1084 = vmatpush1.xpose.msra.mxu0 0.0
    %1085 = vmatprep.subr.mxu0 0.0
    %1086 = vmatpush1.xpose.msra.mxu0 0.0
    %1087 = vmatprep.subr.mxu0 0.0
    %1088 = vmatpush1.xpose.msra.mxu0 0.0
    %1089 = vmatprep.subr.mxu0 0.0
    %1090 = vmatpush1.xpose.msra.mxu0 0.0
    %1091 = vmatprep.subr.mxu0 0.0
    %1092 = vmatpush1.xpose.msra.mxu0 0.0
    %1093 = vmatprep.subr.mxu0 0.0
    %1094 = vmatpush1.xpose.msra.mxu0 0.0
    %1095 = vmatprep.subr.mxu0 0.0
    %1096 = vmatpush1.xpose.msra.mxu0 0.0
    %1097 = vmatprep.subr.mxu0 0.0
    %1098 = vmatpush1.xpose.msra.mxu0 0.0
    %1099 = vmatprep.subr.mxu0 0.0
    %1100 = vmatpush1.xpose.msra.mxu0 0.0
    %1101 = vmatprep.subr.mxu0 0.0
    %1102 = vmatpush1.xpose.msra.mxu0 0.0
    %1103 = vmatprep.subr.mxu0 0.0
    %1104 = vmatpush1.xpose.msra.mxu0 0.0
    %1105 = vmatprep.subr.mxu0 0.0
    %1106 = vmatpush1.xpose.msra.mxu0 0.0
    %1107 = vmatprep.subr.mxu0 0.0
    %1108 = vmatpush1.xpose.msra.mxu0 0.0
    %1109 = vmatprep.subr.mxu0 0.0
    %1110 = vmatpush1.xpose.msra.mxu0 0.0
    %1111 = vmatprep.subr.mxu0 0.0
    %1112 = vmatpush1.xpose.msra.mxu0 0.0
    %1113 = vmatprep.subr.mxu0 0.0
    %1114 = vmatpush1.xpose.msra.mxu0 0.0
    %1115 = vmatprep.subr.mxu0 0.0
    %1116 = vmatpush1.xpose.msra.mxu0 0.0
    %1117 = vmatprep.subr.mxu0 0.0
    %1118 = vmatpush1.xpose.msra.mxu0 0.0
    %1119 = vmatprep.subr.mxu0 0.0
    %1120 = vmatpush1.xpose.msra.mxu0 0.0
    %1121 = vmatprep.subr.mxu0 0.0
    %1122 = vmatpush1.xpose.msra.mxu0 0.0
    %1123 = vmatprep.subr.mxu0 0.0
    %1124 = vmatpush1.xpose.msra.mxu0 0.0
    %1125 = vmatprep.subr.mxu0 0.0
    %1126 = vmatpush1.xpose.msra.mxu0 0.0
    %1127 = vmatprep.mubr.f32.mxu0 0.0
    %1128 = vmatmul.mubr.f32.gmra.mrb[0].mxu0 %v1059
    %v1129 = vpop.f32.mrb[0].mxu0
    %v1130 = vadd.f32 0.0, %v1129
    %v1131 = vpop.f32.mrb[0].mxu0
    %1132 = vdwg.mxu0
    %1134 = vrot.lane.b32.xlu0 %v594, 120
    %v1135 = vpop.permute.xlu0 %1134
    %v1136 = vsel %vm673, %v594, 0
    %v1138 = vsel %vm673, %v1135, 0
    %1140 = vmatprep.subr.mxu0 0.0
    %1141 = vmatpush1.xpose.msra.mxu0 %v1138
    %1142 = vmatprep.subr.mxu0 0.0
    %1143 = vmatpush1.xpose.msra.mxu0 0.0
    %1144 = vmatprep.subr.mxu0 0.0
    %1145 = vmatpush1.xpose.msra.mxu0 0.0
    %1146 = vmatprep.subr.mxu0 0.0
    %1147 = vmatpush1.xpose.msra.mxu0 0.0
    %1148 = vmatprep.subr.mxu0 0.0
    %1149 = vmatpush1.xpose.msra.mxu0 0.0
    %1150 = vmatprep.subr.mxu0 0.0
    %1151 = vmatpush1.xpose.msra.mxu0 0.0
    %1152 = vmatprep.subr.mxu0 0.0
    %1153 = vmatpush1.xpose.msra.mxu0 0.0
    %1154 = vmatprep.subr.mxu0 0.0
    %1155 = vmatpush1.xpose.msra.mxu0 0.0
    %1156 = vmatprep.subr.mxu0 0.0
    %1157 = vmatpush1.xpose.msra.mxu0 0.0
    %1158 = vmatprep.subr.mxu0 0.0
    %1159 = vmatpush1.xpose.msra.mxu0 0.0
    %1160 = vmatprep.subr.mxu0 0.0
    %1161 = vmatpush1.xpose.msra.mxu0 0.0
    %1162 = vmatprep.subr.mxu0 0.0
    %1163 = vmatpush1.xpose.msra.mxu0 0.0
    %1164 = vmatprep.subr.mxu0 0.0
    %1165 = vmatpush1.xpose.msra.mxu0 0.0
    %1166 = vmatprep.subr.mxu0 0.0
    %1167 = vmatpush1.xpose.msra.mxu0 0.0
    %1168 = vmatprep.subr.mxu0 0.0
    %1169 = vmatpush1.xpose.msra.mxu0 0.0
    %1170 = vmatprep.subr.mxu0 0.0
    %1171 = vmatpush1.xpose.msra.mxu0 0.0
    %1172 = vmatprep.subr.mxu0 0.0
    %1173 = vmatpush1.xpose.msra.mxu0 0.0
    %1174 = vmatprep.subr.mxu0 0.0
    %1175 = vmatpush1.xpose.msra.mxu0 0.0
    %1176 = vmatprep.subr.mxu0 0.0
    %1177 = vmatpush1.xpose.msra.mxu0 0.0
    %1178 = vmatprep.subr.mxu0 0.0
    %1179 = vmatpush1.xpose.msra.mxu0 0.0
    %1180 = vmatprep.subr.mxu0 0.0
    %1181 = vmatpush1.xpose.msra.mxu0 0.0
    %1182 = vmatprep.subr.mxu0 0.0
    %1183 = vmatpush1.xpose.msra.mxu0 0.0
    %1184 = vmatprep.subr.mxu0 0.0
    %1185 = vmatpush1.xpose.msra.mxu0 0.0
    %1186 = vmatprep.subr.mxu0 0.0
    %1187 = vmatpush1.xpose.msra.mxu0 0.0
    %1188 = vmatprep.subr.mxu0 0.0
    %1189 = vmatpush1.xpose.msra.mxu0 0.0
    %1190 = vmatprep.subr.mxu0 0.0
    %1191 = vmatpush1.xpose.msra.mxu0 0.0
    %1192 = vmatprep.subr.mxu0 0.0
    %1193 = vmatpush1.xpose.msra.mxu0 0.0
    %1194 = vmatprep.subr.mxu0 0.0
    %1195 = vmatpush1.xpose.msra.mxu0 0.0
    %1196 = vmatprep.subr.mxu0 0.0
    %1197 = vmatpush1.xpose.msra.mxu0 0.0
    %1198 = vmatprep.subr.mxu0 0.0
    %1199 = vmatpush1.xpose.msra.mxu0 0.0
    %1200 = vmatprep.subr.mxu0 0.0
    %1201 = vmatpush1.xpose.msra.mxu0 0.0
    %1202 = vmatprep.subr.mxu0 0.0
    %1203 = vmatpush1.xpose.msra.mxu0 0.0
    %1204 = vmatprep.mubr.f32.mxu0 0.0
    %1205 = vmatmul.mubr.f32.gmra.mrb[0].mxu0 %v1136
    %v1206 = vpop.f32.mrb[0].mxu0
    %v1207 = vadd.f32 0.0, %v1206
    %v1208 = vpop.f32.mrb[0].mxu0
    %1209 = vdwg.mxu0
    %1211 = vrot.lane.b32.xlu0 %v667, 120
    %v1212 = vpop.permute.xlu0 %1211
    %v1213 = vsel %vm673, %v667, 0
    %v1215 = vsel %vm673, %v1212, 0
    %1217 = vmatprep.subr.mxu0 0.0
    %1218 = vmatpush1.xpose.msra.mxu0 %v1215
    %1219 = vmatprep.subr.mxu0 0.0
    %1220 = vmatpush1.xpose.msra.mxu0 0.0
    %1221 = vmatprep.subr.mxu0 0.0
    %1222 = vmatpush1.xpose.msra.mxu0 0.0
    %1223 = vmatprep.subr.mxu0 0.0
    %1224 = vmatpush1.xpose.msra.mxu0 0.0
    %1225 = vmatprep.subr.mxu0 0.0
    %1226 = vmatpush1.xpose.msra.mxu0 0.0
    %1227 = vmatprep.subr.mxu0 0.0
    %1228 = vmatpush1.xpose.msra.mxu0 0.0
    %1229 = vmatprep.subr.mxu0 0.0
    %1230 = vmatpush1.xpose.msra.mxu0 0.0
    %1231 = vmatprep.subr.mxu0 0.0
    %1232 = vmatpush1.xpose.msra.mxu0 0.0
    %1233 = vmatprep.subr.mxu0 0.0
    %1234 = vmatpush1.xpose.msra.mxu0 0.0
    %1235 = vmatprep.subr.mxu0 0.0
    %1236 = vmatpush1.xpose.msra.mxu0 0.0
    %1237 = vmatprep.subr.mxu0 0.0
    %1238 = vmatpush1.xpose.msra.mxu0 0.0
    %1239 = vmatprep.subr.mxu0 0.0
    %1240 = vmatpush1.xpose.msra.mxu0 0.0
    %1241 = vmatprep.subr.mxu0 0.0
    %1242 = vmatpush1.xpose.msra.mxu0 0.0
    %1243 = vmatprep.subr.mxu0 0.0
    %1244 = vmatpush1.xpose.msra.mxu0 0.0
    %1245 = vmatprep.subr.mxu0 0.0
    %1246 = vmatpush1.xpose.msra.mxu0 0.0
    %1247 = vmatprep.subr.mxu0 0.0
    %1248 = vmatpush1.xpose.msra.mxu0 0.0
    %1249 = vmatprep.subr.mxu0 0.0
    %1250 = vmatpush1.xpose.msra.mxu0 0.0
    %1251 = vmatprep.subr.mxu0 0.0
    %1252 = vmatpush1.xpose.msra.mxu0 0.0
    %1253 = vmatprep.subr.mxu0 0.0
    %1254 = vmatpush1.xpose.msra.mxu0 0.0
    %1255 = vmatprep.subr.mxu0 0.0
    %1256 = vmatpush1.xpose.msra.mxu0 0.0
    %1257 = vmatprep.subr.mxu0 0.0
    %1258 = vmatpush1.xpose.msra.mxu0 0.0
    %1259 = vmatprep.subr.mxu0 0.0
    %1260 = vmatpush1.xpose.msra.mxu0 0.0
    %1261 = vmatprep.subr.mxu0 0.0
    %1262 = vmatpush1.xpose.msra.mxu0 0.0
    %1263 = vmatprep.subr.mxu0 0.0
    %1264 = vmatpush1.xpose.msra.mxu0 0.0
    %1265 = vmatprep.subr.mxu0 0.0
    %1266 = vmatpush1.xpose.msra.mxu0 0.0
    %1267 = vmatprep.subr.mxu0 0.0
    %1268 = vmatpush1.xpose.msra.mxu0 0.0
    %1269 = vmatprep.subr.mxu0 0.0
    %1270 = vmatpush1.xpose.msra.mxu0 0.0
    %1271 = vmatprep.subr.mxu0 0.0
    %1272 = vmatpush1.xpose.msra.mxu0 0.0
    %1273 = vmatprep.subr.mxu0 0.0
    %1274 = vmatpush1.xpose.msra.mxu0 0.0
    %1275 = vmatprep.subr.mxu0 0.0
    %1276 = vmatpush1.xpose.msra.mxu0 0.0
    %1277 = vmatprep.subr.mxu0 0.0
    %1278 = vmatpush1.xpose.msra.mxu0 0.0
    %1279 = vmatprep.subr.mxu0 0.0
    %1280 = vmatpush1.xpose.msra.mxu0 0.0
    %1281 = vmatprep.mubr.f32.mxu0 0.0
    %1282 = vmatmul.mubr.f32.gmra.mrb[0].mxu0 %v1213
    %v1283 = vpop.f32.mrb[0].mxu0
    %v1284 = vadd.f32 0.0, %v1283
    %v1285 = vpop.f32.mrb[0].mxu0
    %1286 = vdwg.mxu0
    %v1287 = vlaneseq
    %v1288 = vand.u32 %v1287, 127
    %v1289 = vld [vmem:[%s2] sm:$0x1]
    %v1290 = vld [vmem:[%s2 + $0x1] sm:$0x1]
    %v1291 = vld [vmem:[%s2 + $0x2] sm:$0x1]
    %v1292 = vld [vmem:[%s2 + $0x3] sm:$0x1]
    %v1293 = vld [vmem:[%s2 + $0x4] sm:$0x1]
    %v1294 = vld [vmem:[%s2 + $0x5] sm:$0x1]
    %v1295 = vld [vmem:[%s2 + $0x6] sm:$0x1]
    %v1296 = vld [vmem:[%s2 + $0x7] sm:$0x1]
    %v1297 = vlaneseq
    %v1298 = vshrl.u32 %v1297, 7
    %v1299 = vsub.s32 0, %v1298
    %v1300 = vrot.slane %v1289, %v1299
    %v1301 = vlaneseq
    %v1302 = vshrl.u32 %v1301, 7
    %v1303 = vsub.s32 0, %v1302
    %v1304 = vrot.slane %v1290, %v1303
    %v1305 = vlaneseq
    %v1306 = vshrl.u32 %v1305, 7
    %v1307 = vsub.s32 0, %v1306
    %v1308 = vrot.slane %v1291, %v1307
    %v1309 = vlaneseq
    %v1310 = vshrl.u32 %v1309, 7
    %v1311 = vsub.s32 0, %v1310
    %v1312 = vrot.slane %v1292, %v1311
    %v1313 = vlaneseq
    %v1314 = vshrl.u32 %v1313, 7
    %v1315 = vsub.s32 0, %v1314
    %v1316 = vrot.slane %v1293, %v1315
    %v1317 = vlaneseq
    %v1318 = vshrl.u32 %v1317, 7
    %v1319 = vsub.s32 0, %v1318
    %v1320 = vrot.slane %v1294, %v1319
    %v1321 = vlaneseq
    %v1322 = vshrl.u32 %v1321, 7
    %v1323 = vsub.s32 0, %v1322
    %v1324 = vrot.slane %v1295, %v1323
    %v1325 = vlaneseq
    %v1326 = vshrl.u32 %v1325, 7
    %v1327 = vsub.s32 0, %v1326
    %v1328 = vrot.slane %v1296, %v1327
    %1329 = vset.pattern.permute.xlu0 0
    %1330 = vperm.xlu0 %1329, %v1300
    %v1331 = vpop.permute.xlu0 %1330
    %1332 = vset.pattern.permute.xlu0 0
    %1333 = vperm.xlu0 %1332, %v1304
    %v1334 = vpop.permute.xlu0 %1333
    %1335 = vset.pattern.permute.xlu0 0
    %1336 = vperm.xlu0 %1335, %v1308
    %v1337 = vpop.permute.xlu0 %1336
    %1338 = vset.pattern.permute.xlu0 0
    %1339 = vperm.xlu0 %1338, %v1312
    %v1340 = vpop.permute.xlu0 %1339
    %1341 = vset.pattern.permute.xlu0 0
    %1342 = vperm.xlu0 %1341, %v1316
    %v1343 = vpop.permute.xlu0 %1342
    %1344 = vset.pattern.permute.xlu0 0
    %1345 = vperm.xlu0 %1344, %v1320
    %v1346 = vpop.permute.xlu0 %1345
    %1347 = vset.pattern.permute.xlu0 0
    %1348 = vperm.xlu0 %1347, %v1324
    %v1349 = vpop.permute.xlu0 %1348
    %1350 = vset.pattern.permute.xlu0 0
    %1351 = vperm.xlu0 %1350, %v1328
    %v1352 = vpop.permute.xlu0 %1351
    %vm1353 = vcmp.lt.s32.totalorder %v1288, %v1331
    %vm1354 = vcmp.lt.s32.totalorder %v1288, %v1334
    %vm1355 = vcmp.lt.s32.totalorder %v1288, %v1337
    %vm1356 = vcmp.lt.s32.totalorder %v1288, %v1340
    %vm1357 = vcmp.lt.s32.totalorder %v1288, %v1343
    %vm1358 = vcmp.lt.s32.totalorder %v1288, %v1346
    %vm1359 = vcmp.lt.s32.totalorder %v1288, %v1349
    %vm1360 = vcmp.lt.s32.totalorder %v1288, %v1352
    %v1361 = vsel %vm1353, %v745, -1000000.0
    %v1362 = vsel %vm1354, %v822, -1000000.0
    %v1363 = vsel %vm1355, %v899, -1000000.0
    %v1364 = vsel %vm1356, %v976, -1000000.0
    %v1365 = vsel %vm1357, %v1053, -1000000.0
    %v1366 = vsel %vm1358, %v1130, -1000000.0
    %v1367 = vsel %vm1359, %v1207, -1000000.0
    %v1368 = vsel %vm1360, %v1284, -1000000.0
    %v1369 = vsel %vm673, %v1361, -inf
    %1370 = vmax.xlane.f32.xlu0 %v1369
    %v1371 = vpop.xlane.xlu0 %1370
    %v1372 = vsel %vm673, %v1362, -inf
    %1373 = vmax.xlane.f32.xlu0 %v1372
    %v1374 = vpop.xlane.xlu0 %1373
    %v1375 = vsel %vm673, %v1363, -inf
    %1376 = vmax.xlane.f32.xlu0 %v1375
    %v1377 = vpop.xlane.xlu0 %1376
    %v1378 = vsel %vm673, %v1364, -inf
    %1379 = vmax.xlane.f32.xlu0 %v1378
    %v1380 = vpop.xlane.xlu0 %1379
    %v1381 = vsel %vm673, %v1365, -inf
    %1382 = vmax.xlane.f32.xlu0 %v1381
    %v1383 = vpop.xlane.xlu0 %1382
    %v1384 = vsel %vm673, %v1366, -inf
    %1385 = vmax.xlane.f32.xlu0 %v1384
    %v1386 = vpop.xlane.xlu0 %1385
    %v1387 = vsel %vm673, %v1367, -inf
    %1388 = vmax.xlane.f32.xlu0 %v1387
    %v1389 = vpop.xlane.xlu0 %1388
    %v1390 = vsel %vm673, %v1368, -inf
    %1391 = vmax.xlane.f32.xlu0 %v1390
    %v1392 = vpop.xlane.xlu0 %1391
    %v1393 = vsub.f32 %v1361, %v1371
    %v1394 = vsub.f32 %v1362, %v1374
    %v1395 = vsub.f32 %v1363, %v1377
    %v1396 = vsub.f32 %v1364, %v1380
    %v1397 = vsub.f32 %v1365, %v1383
    %v1398 = vsub.f32 %v1366, %v1386
    %v1399 = vsub.f32 %v1367, %v1389
    %v1400 = vsub.f32 %v1368, %v1392
    %v1401 = vmul.f32 %v1393, 1.442695
    %v1402 = vpow.pop %v1401
    %v1403 = vmul.f32 %v1394, 1.442695
    %v1404 = vpow.pop %v1403
    %v1405 = vmul.f32 %v1395, 1.442695
    %v1406 = vpow.pop %v1405
    %v1407 = vmul.f32 %v1396, 1.442695
    %v1408 = vpow.pop %v1407
    %v1409 = vmul.f32 %v1397, 1.442695
    %v1410 = vpow.pop %v1409
    %v1411 = vmul.f32 %v1398, 1.442695
    %v1412 = vpow.pop %v1411
    %v1413 = vmul.f32 %v1399, 1.442695
    %v1414 = vpow.pop %v1413
    %v1415 = vmul.f32 %v1400, 1.442695
    %v1416 = vpow.pop %v1415
    %v1417 = vsel %vm673, %v1402, 0.0
    %1418 = vadd.xlane.f32.xlu0 %v1417
    %v1419 = vpop.xlane.xlu0 %1418
    %v1420 = vsel %vm673, %v1404, 0.0
    %1421 = vadd.xlane.f32.xlu0 %v1420
    %v1422 = vpop.xlane.xlu0 %1421
    %v1423 = vsel %vm673, %v1406, 0.0
    %1424 = vadd.xlane.f32.xlu0 %v1423
    %v1425 = vpop.xlane.xlu0 %1424
    %v1426 = vsel %vm673, %v1408, 0.0
    %1427 = vadd.xlane.f32.xlu0 %v1426
    %v1428 = vpop.xlane.xlu0 %1427
    %v1429 = vsel %vm673, %v1410, 0.0
    %1430 = vadd.xlane.f32.xlu0 %v1429
    %v1431 = vpop.xlane.xlu0 %1430
    %v1432 = vsel %vm673, %v1412, 0.0
    %1433 = vadd.xlane.f32.xlu0 %v1432
    %v1434 = vpop.xlane.xlu0 %1433
    %v1435 = vsel %vm673, %v1414, 0.0
    %1436 = vadd.xlane.f32.xlu0 %v1435
    %v1437 = vpop.xlane.xlu0 %1436
    %v1438 = vsel %vm673, %v1416, 0.0
    %1439 = vadd.xlane.f32.xlu0 %v1438
    %v1440 = vpop.xlane.xlu0 %1439
    %v1441 = vrcp.pop %v1419
    %v1442 = vrcp.pop %v1422
    %v1443 = vrcp.pop %v1425
    %v1444 = vrcp.pop %v1428
    %v1445 = vrcp.pop %v1431
    %v1446 = vrcp.pop %v1434
    %v1447 = vrcp.pop %v1437
    %v1448 = vrcp.pop %v1440
    %v1449 = vmul.f32 %v1402, %v1441
    %v1450 = vmul.f32 %v1404, %v1442
    %v1451 = vmul.f32 %v1406, %v1443
    %v1452 = vmul.f32 %v1408, %v1444
    %v1453 = vmul.f32 %v1410, %v1445
    %v1454 = vmul.f32 %v1412, %v1446
    %v1455 = vmul.f32 %v1414, %v1447
    %v1456 = vmul.f32 %v1416, %v1448
    %1457 = vrot.lane.b32.xlu0 %v156, 112
    %v1458 = vpop.permute.xlu0 %1457
    %v1461 = vsel %vm673, %v1449, 0
    %1463 = vmatprep.subr.mxu0 0.0
    %1464 = vmatpush1.msra.mxu0 %v1458
    %1465 = vmatprep.subr.mxu0 0.0
    %1466 = vmatpush1.msra.mxu0 0.0
    %1467 = vmatprep.subr.mxu0 0.0
    %1468 = vmatpush1.msra.mxu0 0.0
    %1469 = vmatprep.subr.mxu0 0.0
    %1470 = vmatpush1.msra.mxu0 0.0
    %1471 = vmatprep.subr.mxu0 0.0
    %1472 = vmatpush1.msra.mxu0 0.0
    %1473 = vmatprep.subr.mxu0 0.0
    %1474 = vmatpush1.msra.mxu0 0.0
    %1475 = vmatprep.subr.mxu0 0.0
    %1476 = vmatpush1.msra.mxu0 0.0
    %1477 = vmatprep.subr.mxu0 0.0
    %1478 = vmatpush1.msra.mxu0 0.0
    %1479 = vmatprep.subr.mxu0 0.0
    %1480 = vmatpush1.msra.mxu0 0.0
    %1481 = vmatprep.subr.mxu0 0.0
    %1482 = vmatpush1.msra.mxu0 0.0
    %1483 = vmatprep.subr.mxu0 0.0
    %1484 = vmatpush1.msra.mxu0 0.0
    %1485 = vmatprep.subr.mxu0 0.0
    %1486 = vmatpush1.msra.mxu0 0.0
    %1487 = vmatprep.subr.mxu0 0.0
    %1488 = vmatpush1.msra.mxu0 0.0
    %1489 = vmatprep.subr.mxu0 0.0
    %1490 = vmatpush1.msra.mxu0 0.0
    %1491 = vmatprep.subr.mxu0 0.0
    %1492 = vmatpush1.msra.mxu0 0.0
    %1493 = vmatprep.subr.mxu0 0.0
    %1494 = vmatpush1.msra.mxu0 0.0
    %1495 = vmatprep.subr.mxu0 0.0
    %1496 = vmatpush1.msra.mxu0 0.0
    %1497 = vmatprep.subr.mxu0 0.0
    %1498 = vmatpush1.msra.mxu0 0.0
    %1499 = vmatprep.subr.mxu0 0.0
    %1500 = vmatpush1.msra.mxu0 0.0
    %1501 = vmatprep.subr.mxu0 0.0
    %1502 = vmatpush1.msra.mxu0 0.0
    %1503 = vmatprep.subr.mxu0 0.0
    %1504 = vmatpush1.msra.mxu0 0.0
    %1505 = vmatprep.subr.mxu0 0.0
    %1506 = vmatpush1.msra.mxu0 0.0
    %1507 = vmatprep.subr.mxu0 0.0
    %1508 = vmatpush1.msra.mxu0 0.0
    %1509 = vmatprep.subr.mxu0 0.0
    %1510 = vmatpush1.msra.mxu0 0.0
    %1511 = vmatprep.subr.mxu0 0.0
    %1512 = vmatpush1.msra.mxu0 0.0
    %1513 = vmatprep.subr.mxu0 0.0
    %1514 = vmatpush1.msra.mxu0 0.0
    %1515 = vmatprep.subr.mxu0 0.0
    %1516 = vmatpush1.msra.mxu0 0.0
    %1517 = vmatprep.subr.mxu0 0.0
    %1518 = vmatpush1.msra.mxu0 0.0
    %1519 = vmatprep.subr.mxu0 0.0
    %1520 = vmatpush1.msra.mxu0 0.0
    %1521 = vmatprep.subr.mxu0 0.0
    %1522 = vmatpush1.msra.mxu0 0.0
    %1523 = vmatprep.subr.mxu0 0.0
    %1524 = vmatpush1.msra.mxu0 0.0
    %1525 = vmatprep.subr.mxu0 0.0
    %1526 = vmatpush1.msra.mxu0 0.0
    %1527 = vmatprep.mubr.f32.mxu0 0.0
    %1528 = vmatmul.mubr.f32.gmra.mrb[0].mxu0 %v1461
    %v1529 = vpop.f32.mrb[0].mxu0
    %v1530 = vadd.f32 0.0, %v1529
    %v1531 = vpop.f32.mrb[0].mxu0
    %1532 = vdwg.mxu0
    %1533 = vrot.lane.b32.xlu0 %v229, 112
    %v1534 = vpop.permute.xlu0 %1533
    %v1537 = vsel %vm673, %v1450, 0
    %1539 = vmatprep.subr.mxu0 0.0
    %1540 = vmatpush1.msra.mxu0 %v1534
    %1541 = vmatprep.subr.mxu0 0.0
    %1542 = vmatpush1.msra.mxu0 0.0
    %1543 = vmatprep.subr.mxu0 0.0
    %1544 = vmatpush1.msra.mxu0 0.0
    %1545 = vmatprep.subr.mxu0 0.0
    %1546 = vmatpush1.msra.mxu0 0.0
    %1547 = vmatprep.subr.mxu0 0.0
    %1548 = vmatpush1.msra.mxu0 0.0
    %1549 = vmatprep.subr.mxu0 0.0
    %1550 = vmatpush1.msra.mxu0 0.0
    %1551 = vmatprep.subr.mxu0 0.0
    %1552 = vmatpush1.msra.mxu0 0.0
    %1553 = vmatprep.subr.mxu0 0.0
    %1554 = vmatpush1.msra.mxu0 0.0
    %1555 = vmatprep.subr.mxu0 0.0
    %1556 = vmatpush1.msra.mxu0 0.0
    %1557 = vmatprep.subr.mxu0 0.0
    %1558 = vmatpush1.msra.mxu0 0.0
    %1559 = vmatprep.subr.mxu0 0.0
    %1560 = vmatpush1.msra.mxu0 0.0
    %1561 = vmatprep.subr.mxu0 0.0
    %1562 = vmatpush1.msra.mxu0 0.0
    %1563 = vmatprep.subr.mxu0 0.0
    %1564 = vmatpush1.msra.mxu0 0.0
    %1565 = vmatprep.subr.mxu0 0.0
    %1566 = vmatpush1.msra.mxu0 0.0
    %1567 = vmatprep.subr.mxu0 0.0
    %1568 = vmatpush1.msra.mxu0 0.0
    %1569 = vmatprep.subr.mxu0 0.0
    %1570 = vmatpush1.msra.mxu0 0.0
    %1571 = vmatprep.subr.mxu0 0.0
    %1572 = vmatpush1.msra.mxu0 0.0
    %1573 = vmatprep.subr.mxu0 0.0
    %1574 = vmatpush1.msra.mxu0 0.0
    %1575 = vmatprep.subr.mxu0 0.0
    %1576 = vmatpush1.msra.mxu0 0.0
    %1577 = vmatprep.subr.mxu0 0.0
    %1578 = vmatpush1.msra.mxu0 0.0
    %1579 = vmatprep.subr.mxu0 0.0
    %1580 = vmatpush1.msra.mxu0 0.0
    %1581 = vmatprep.subr.mxu0 0.0
    %1582 = vmatpush1.msra.mxu0 0.0
    %1583 = vmatprep.subr.mxu0 0.0
    %1584 = vmatpush1.msra.mxu0 0.0
    %1585 = vmatprep.subr.mxu0 0.0
    %1586 = vmatpush1.msra.mxu0 0.0
    %1587 = vmatprep.subr.mxu0 0.0
    %1588 = vmatpush1.msra.mxu0 0.0
    %1589 = vmatprep.subr.mxu0 0.0
    %1590 = vmatpush1.msra.mxu0 0.0
    %1591 = vmatprep.subr.mxu0 0.0
    %1592 = vmatpush1.msra.mxu0 0.0
    %1593 = vmatprep.subr.mxu0 0.0
    %1594 = vmatpush1.msra.mxu0 0.0
    %1595 = vmatprep.subr.mxu0 0.0
    %1596 = vmatpush1.msra.mxu0 0.0
    %1597 = vmatprep.subr.mxu0 0.0
    %1598 = vmatpush1.msra.mxu0 0.0
    %1599 = vmatprep.subr.mxu0 0.0
    %1600 = vmatpush1.msra.mxu0 0.0
    %1601 = vmatprep.subr.mxu0 0.0
    %1602 = vmatpush1.msra.mxu0 0.0
    %1603 = vmatprep.mubr.f32.mxu0 0.0
    %1604 = vmatmul.mubr.f32.gmra.mrb[0].mxu0 %v1537
    %v1605 = vpop.f32.mrb[0].mxu0
    %v1606 = vadd.f32 0.0, %v1605
    %v1607 = vpop.f32.mrb[0].mxu0
    %1608 = vdwg.mxu0
    %1609 = vrot.lane.b32.xlu0 %v302, 112
    %v1610 = vpop.permute.xlu0 %1609
    %v1613 = vsel %vm673, %v1451, 0
    %1615 = vmatprep.subr.mxu0 0.0
    %1616 = vmatpush1.msra.mxu0 %v1610
    %1617 = vmatprep.subr.mxu0 0.0
    %1618 = vmatpush1.msra.mxu0 0.0
    %1619 = vmatprep.subr.mxu0 0.0
    %1620 = vmatpush1.msra.mxu0 0.0
    %1621 = vmatprep.subr.mxu0 0.0
    %1622 = vmatpush1.msra.mxu0 0.0
    %1623 = vmatprep.subr.mxu0 0.0
    %1624 = vmatpush1.msra.mxu0 0.0
    %1625 = vmatprep.subr.mxu0 0.0
    %1626 = vmatpush1.msra.mxu0 0.0
    %1627 = vmatprep.subr.mxu0 0.0
    %1628 = vmatpush1.msra.mxu0 0.0
    %1629 = vmatprep.subr.mxu0 0.0
    %1630 = vmatpush1.msra.mxu0 0.0
    %1631 = vmatprep.subr.mxu0 0.0
    %1632 = vmatpush1.msra.mxu0 0.0
    %1633 = vmatprep.subr.mxu0 0.0
    %1634 = vmatpush1.msra.mxu0 0.0
    %1635 = vmatprep.subr.mxu0 0.0
    %1636 = vmatpush1.msra.mxu0 0.0
    %1637 = vmatprep.subr.mxu0 0.0
    %1638 = vmatpush1.msra.mxu0 0.0
    %1639 = vmatprep.subr.mxu0 0.0
    %1640 = vmatpush1.msra.mxu0 0.0
    %1641 = vmatprep.subr.mxu0 0.0
    %1642 = vmatpush1.msra.mxu0 0.0
    %1643 = vmatprep.subr.mxu0 0.0
    %1644 = vmatpush1.msra.mxu0 0.0
    %1645 = vmatprep.subr.mxu0 0.0
    %1646 = vmatpush1.msra.mxu0 0.0
    %1647 = vmatprep.subr.mxu0 0.0
    %1648 = vmatpush1.msra.mxu0 0.0
    %1649 = vmatprep.subr.mxu0 0.0
    %1650 = vmatpush1.msra.mxu0 0.0
    %1651 = vmatprep.subr.mxu0 0.0
    %1652 = vmatpush1.msra.mxu0 0.0
    %1653 = vmatprep.subr.mxu0 0.0
    %1654 = vmatpush1.msra.mxu0 0.0
    %1655 = vmatprep.subr.mxu0 0.0
    %1656 = vmatpush1.msra.mxu0 0.0
    %1657 = vmatprep.subr.mxu0 0.0
    %1658 = vmatpush1.msra.mxu0 0.0
    %1659 = vmatprep.subr.mxu0 0.0
    %1660 = vmatpush1.msra.mxu0 0.0
    %1661 = vmatprep.subr.mxu0 0.0
    %1662 = vmatpush1.msra.mxu0 0.0
    %1663 = vmatprep.subr.mxu0 0.0
    %1664 = vmatpush1.msra.mxu0 0.0
    %1665 = vmatprep.subr.mxu0 0.0
    %1666 = vmatpush1.msra.mxu0 0.0
    %1667 = vmatprep.subr.mxu0 0.0
    %1668 = vmatpush1.msra.mxu0 0.0
    %1669 = vmatprep.subr.mxu0 0.0
    %1670 = vmatpush1.msra.mxu0 0.0
    %1671 = vmatprep.subr.mxu0 0.0
    %1672 = vmatpush1.msra.mxu0 0.0
    %1673 = vmatprep.subr.mxu0 0.0
    %1674 = vmatpush1.msra.mxu0 0.0
    %1675 = vmatprep.subr.mxu0 0.0
    %1676 = vmatpush1.msra.mxu0 0.0
    %1677 = vmatprep.subr.mxu0 0.0
    %1678 = vmatpush1.msra.mxu0 0.0
    %1679 = vmatprep.mubr.f32.mxu0 0.0
    %1680 = vmatmul.mubr.f32.gmra.mrb[0].mxu0 %v1613
    %v1681 = vpop.f32.mrb[0].mxu0
    %v1682 = vadd.f32 0.0, %v1681
    %v1683 = vpop.f32.mrb[0].mxu0
    %1684 = vdwg.mxu0
    %1685 = vrot.lane.b32.xlu0 %v375, 112
    %v1686 = vpop.permute.xlu0 %1685
    %v1689 = vsel %vm673, %v1452, 0
    %1691 = vmatprep.subr.mxu0 0.0
    %1692 = vmatpush1.msra.mxu0 %v1686
    %1693 = vmatprep.subr.mxu0 0.0
    %1694 = vmatpush1.msra.mxu0 0.0
    %1695 = vmatprep.subr.mxu0 0.0
    %1696 = vmatpush1.msra.mxu0 0.0
    %1697 = vmatprep.subr.mxu0 0.0
    %1698 = vmatpush1.msra.mxu0 0.0
    %1699 = vmatprep.subr.mxu0 0.0
    %1700 = vmatpush1.msra.mxu0 0.0
    %1701 = vmatprep.subr.mxu0 0.0
    %1702 = vmatpush1.msra.mxu0 0.0
    %1703 = vmatprep.subr.mxu0 0.0
    %1704 = vmatpush1.msra.mxu0 0.0
    %1705 = vmatprep.subr.mxu0 0.0
    %1706 = vmatpush1.msra.mxu0 0.0
    %1707 = vmatprep.subr.mxu0 0.0
    %1708 = vmatpush1.msra.mxu0 0.0
    %1709 = vmatprep.subr.mxu0 0.0
    %1710 = vmatpush1.msra.mxu0 0.0
    %1711 = vmatprep.subr.mxu0 0.0
    %1712 = vmatpush1.msra.mxu0 0.0
    %1713 = vmatprep.subr.mxu0 0.0
    %1714 = vmatpush1.msra.mxu0 0.0
    %1715 = vmatprep.subr.mxu0 0.0
    %1716 = vmatpush1.msra.mxu0 0.0
    %1717 = vmatprep.subr.mxu0 0.0
    %1718 = vmatpush1.msra.mxu0 0.0
    %1719 = vmatprep.subr.mxu0 0.0
    %1720 = vmatpush1.msra.mxu0 0.0
    %1721 = vmatprep.subr.mxu0 0.0
    %1722 = vmatpush1.msra.mxu0 0.0
    %1723 = vmatprep.subr.mxu0 0.0
    %1724 = vmatpush1.msra.mxu0 0.0
    %1725 = vmatprep.subr.mxu0 0.0
    %1726 = vmatpush1.msra.mxu0 0.0
    %1727 = vmatprep.subr.mxu0 0.0
    %1728 = vmatpush1.msra.mxu0 0.0
    %1729 = vmatprep.subr.mxu0 0.0
    %1730 = vmatpush1.msra.mxu0 0.0
    %1731 = vmatprep.subr.mxu0 0.0
    %1732 = vmatpush1.msra.mxu0 0.0
    %1733 = vmatprep.subr.mxu0 0.0
    %1734 = vmatpush1.msra.mxu0 0.0
    %1735 = vmatprep.subr.mxu0 0.0
    %1736 = vmatpush1.msra.mxu0 0.0
    %1737 = vmatprep.subr.mxu0 0.0
    %1738 = vmatpush1.msra.mxu0 0.0
    %1739 = vmatprep.subr.mxu0 0.0
    %1740 = vmatpush1.msra.mxu0 0.0
    %1741 = vmatprep.subr.mxu0 0.0
    %1742 = vmatpush1.msra.mxu0 0.0
    %1743 = vmatprep.subr.mxu0 0.0
    %1744 = vmatpush1.msra.mxu0 0.0
    %1745 = vmatprep.subr.mxu0 0.0
    %1746 = vmatpush1.msra.mxu0 0.0
    %1747 = vmatprep.subr.mxu0 0.0
    %1748 = vmatpush1.msra.mxu0 0.0
    %1749 = vmatprep.subr.mxu0 0.0
    %1750 = vmatpush1.msra.mxu0 0.0
    %1751 = vmatprep.subr.mxu0 0.0
    %1752 = vmatpush1.msra.mxu0 0.0
    %1753 = vmatprep.subr.mxu0 0.0
    %1754 = vmatpush1.msra.mxu0 0.0
    %1755 = vmatprep.mubr.f32.mxu0 0.0
    %1756 = vmatmul.mubr.f32.gmra.mrb[0].mxu0 %v1689
    %v1757 = vpop.f32.mrb[0].mxu0
    %v1758 = vadd.f32 0.0, %v1757
    %v1759 = vpop.f32.mrb[0].mxu0
    %1760 = vdwg.mxu0
    %1761 = vrot.lane.b32.xlu0 %v448, 112
    %v1762 = vpop.permute.xlu0 %1761
    %v1765 = vsel %vm673, %v1453, 0
    %1767 = vmatprep.subr.mxu0 0.0
    %1768 = vmatpush1.msra.mxu0 %v1762
    %1769 = vmatprep.subr.mxu0 0.0
    %1770 = vmatpush1.msra.mxu0 0.0
    %1771 = vmatprep.subr.mxu0 0.0
    %1772 = vmatpush1.msra.mxu0 0.0
    %1773 = vmatprep.subr.mxu0 0.0
    %1774 = vmatpush1.msra.mxu0 0.0
    %1775 = vmatprep.subr.mxu0 0.0
    %1776 = vmatpush1.msra.mxu0 0.0
    %1777 = vmatprep.subr.mxu0 0.0
    %1778 = vmatpush1.msra.mxu0 0.0
    %1779 = vmatprep.subr.mxu0 0.0
    %1780 = vmatpush1.msra.mxu0 0.0
    %1781 = vmatprep.subr.mxu0 0.0
    %1782 = vmatpush1.msra.mxu0 0.0
    %1783 = vmatprep.subr.mxu0 0.0
    %1784 = vmatpush1.msra.mxu0 0.0
    %1785 = vmatprep.subr.mxu0 0.0
    %1786 = vmatpush1.msra.mxu0 0.0
    %1787 = vmatprep.subr.mxu0 0.0
    %1788 = vmatpush1.msra.mxu0 0.0
    %1789 = vmatprep.subr.mxu0 0.0
    %1790 = vmatpush1.msra.mxu0 0.0
    %1791 = vmatprep.subr.mxu0 0.0
    %1792 = vmatpush1.msra.mxu0 0.0
    %1793 = vmatprep.subr.mxu0 0.0
    %1794 = vmatpush1.msra.mxu0 0.0
    %1795 = vmatprep.subr.mxu0 0.0
    %1796 = vmatpush1.msra.mxu0 0.0
    %1797 = vmatprep.subr.mxu0 0.0
    %1798 = vmatpush1.msra.mxu0 0.0
    %1799 = vmatprep.subr.mxu0 0.0
    %1800 = vmatpush1.msra.mxu0 0.0
    %1801 = vmatprep.subr.mxu0 0.0
    %1802 = vmatpush1.msra.mxu0 0.0
    %1803 = vmatprep.subr.mxu0 0.0
    %1804 = vmatpush1.msra.mxu0 0.0
    %1805 = vmatprep.subr.mxu0 0.0
    %1806 = vmatpush1.msra.mxu0 0.0
    %1807 = vmatprep.subr.mxu0 0.0
    %1808 = vmatpush1.msra.mxu0 0.0
    %1809 = vmatprep.subr.mxu0 0.0
    %1810 = vmatpush1.msra.mxu0 0.0
    %1811 = vmatprep.subr.mxu0 0.0
    %1812 = vmatpush1.msra.mxu0 0.0
    %1813 = vmatprep.subr.mxu0 0.0
    %1814 = vmatpush1.msra.mxu0 0.0
    %1815 = vmatprep.subr.mxu0 0.0
    %1816 = vmatpush1.msra.mxu0 0.0
    %1817 = vmatprep.subr.mxu0 0.0
    %1818 = vmatpush1.msra.mxu0 0.0
    %1819 = vmatprep.subr.mxu0 0.0
    %1820 = vmatpush1.msra.mxu0 0.0
    %1821 = vmatprep.subr.mxu0 0.0
    %1822 = vmatpush1.msra.mxu0 0.0
    %1823 = vmatprep.subr.mxu0 0.0
    %1824 = vmatpush1.msra.mxu0 0.0
    %1825 = vmatprep.subr.mxu0 0.0
    %1826 = vmatpush1.msra.mxu0 0.0
    %1827 = vmatprep.subr.mxu0 0.0
    %1828 = vmatpush1.msra.mxu0 0.0
    %1829 = vmatprep.subr.mxu0 0.0
    %1830 = vmatpush1.msra.mxu0 0.0
    %1831 = vmatprep.mubr.f32.mxu0 0.0
    %1832 = vmatmul.mubr.f32.gmra.mrb[0].mxu0 %v1765
    %v1833 = vpop.f32.mrb[0].mxu0
    %v1834 = vadd.f32 0.0, %v1833
    %v1835 = vpop.f32.mrb[0].mxu0
    %1836 = vdwg.mxu0
    %1837 = vrot.lane.b32.xlu0 %v521, 112
    %v1838 = vpop.permute.xlu0 %1837
    %v1841 = vsel %vm673, %v1454, 0
    %1843 = vmatprep.subr.mxu0 0.0
    %1844 = vmatpush1.msra.mxu0 %v1838
    %1845 = vmatprep.subr.mxu0 0.0
    %1846 = vmatpush1.msra.mxu0 0.0
    %1847 = vmatprep.subr.mxu0 0.0
    %1848 = vmatpush1.msra.mxu0 0.0
    %1849 = vmatprep.subr.mxu0 0.0
    %1850 = vmatpush1.msra.mxu0 0.0
    %1851 = vmatprep.subr.mxu0 0.0
    %1852 = vmatpush1.msra.mxu0 0.0
    %1853 = vmatprep.subr.mxu0 0.0
    %1854 = vmatpush1.msra.mxu0 0.0
    %1855 = vmatprep.subr.mxu0 0.0
    %1856 = vmatpush1.msra.mxu0 0.0
    %1857 = vmatprep.subr.mxu0 0.0
    %1858 = vmatpush1.msra.mxu0 0.0
    %1859 = vmatprep.subr.mxu0 0.0
    %1860 = vmatpush1.msra.mxu0 0.0
    %1861 = vmatprep.subr.mxu0 0.0
    %1862 = vmatpush1.msra.mxu0 0.0
    %1863 = vmatprep.subr.mxu0 0.0
    %1864 = vmatpush1.msra.mxu0 0.0
    %1865 = vmatprep.subr.mxu0 0.0
    %1866 = vmatpush1.msra.mxu0 0.0
    %1867 = vmatprep.subr.mxu0 0.0
    %1868 = vmatpush1.msra.mxu0 0.0
    %1869 = vmatprep.subr.mxu0 0.0
    %1870 = vmatpush1.msra.mxu0 0.0
    %1871 = vmatprep.subr.mxu0 0.0
    %1872 = vmatpush1.msra.mxu0 0.0
    %1873 = vmatprep.subr.mxu0 0.0
    %1874 = vmatpush1.msra.mxu0 0.0
    %1875 = vmatprep.subr.mxu0 0.0
    %1876 = vmatpush1.msra.mxu0 0.0
    %1877 = vmatprep.subr.mxu0 0.0
    %1878 = vmatpush1.msra.mxu0 0.0
    %1879 = vmatprep.subr.mxu0 0.0
    %1880 = vmatpush1.msra.mxu0 0.0
    %1881 = vmatprep.subr.mxu0 0.0
    %1882 = vmatpush1.msra.mxu0 0.0
    %1883 = vmatprep.subr.mxu0 0.0
    %1884 = vmatpush1.msra.mxu0 0.0
    %1885 = vmatprep.subr.mxu0 0.0
    %1886 = vmatpush1.msra.mxu0 0.0
    %1887 = vmatprep.subr.mxu0 0.0
    %1888 = vmatpush1.msra.mxu0 0.0
    %1889 = vmatprep.subr.mxu0 0.0
    %1890 = vmatpush1.msra.mxu0 0.0
    %1891 = vmatprep.subr.mxu0 0.0
    %1892 = vmatpush1.msra.mxu0 0.0
    %1893 = vmatprep.subr.mxu0 0.0
    %1894 = vmatpush1.msra.mxu0 0.0
    %1895 = vmatprep.subr.mxu0 0.0
    %1896 = vmatpush1.msra.mxu0 0.0
    %1897 = vmatprep.subr.mxu0 0.0
    %1898 = vmatpush1.msra.mxu0 0.0
    %1899 = vmatprep.subr.mxu0 0.0
    %1900 = vmatpush1.msra.mxu0 0.0
    %1901 = vmatprep.subr.mxu0 0.0
    %1902 = vmatpush1.msra.mxu0 0.0
    %1903 = vmatprep.subr.mxu0 0.0
    %1904 = vmatpush1.msra.mxu0 0.0
    %1905 = vmatprep.subr.mxu0 0.0
    %1906 = vmatpush1.msra.mxu0 0.0
    %1907 = vmatprep.mubr.f32.mxu0 0.0
    %1908 = vmatmul.mubr.f32.gmra.mrb[0].mxu0 %v1841
    %v1909 = vpop.f32.mrb[0].mxu0
    %v1910 = vadd.f32 0.0, %v1909
    %v1911 = vpop.f32.mrb[0].mxu0
    %1912 = vdwg.mxu0
    %1913 = vrot.lane.b32.xlu0 %v594, 112
    %v1914 = vpop.permute.xlu0 %1913
    %v1917 = vsel %vm673, %v1455, 0
    %1919 = vmatprep.subr.mxu0 0.0
    %1920 = vmatpush1.msra.mxu0 %v1914
    %1921 = vmatprep.subr.mxu0 0.0
    %1922 = vmatpush1.msra.mxu0 0.0
    %1923 = vmatprep.subr.mxu0 0.0
    %1924 = vmatpush1.msra.mxu0 0.0
    %1925 = vmatprep.subr.mxu0 0.0
    %1926 = vmatpush1.msra.mxu0 0.0
    %1927 = vmatprep.subr.mxu0 0.0
    %1928 = vmatpush1.msra.mxu0 0.0
    %1929 = vmatprep.subr.mxu0 0.0
    %1930 = vmatpush1.msra.mxu0 0.0
    %1931 = vmatprep.subr.mxu0 0.0
    %1932 = vmatpush1.msra.mxu0 0.0
    %1933 = vmatprep.subr.mxu0 0.0
    %1934 = vmatpush1.msra.mxu0 0.0
    %1935 = vmatprep.subr.mxu0 0.0
    %1936 = vmatpush1.msra.mxu0 0.0
    %1937 = vmatprep.subr.mxu0 0.0
    %1938 = vmatpush1.msra.mxu0 0.0
    %1939 = vmatprep.subr.mxu0 0.0
    %1940 = vmatpush1.msra.mxu0 0.0
    %1941 = vmatprep.subr.mxu0 0.0
    %1942 = vmatpush1.msra.mxu0 0.0
    %1943 = vmatprep.subr.mxu0 0.0
    %1944 = vmatpush1.msra.mxu0 0.0
    %1945 = vmatprep.subr.mxu0 0.0
    %1946 = vmatpush1.msra.mxu0 0.0
    %1947 = vmatprep.subr.mxu0 0.0
    %1948 = vmatpush1.msra.mxu0 0.0
    %1949 = vmatprep.subr.mxu0 0.0
    %1950 = vmatpush1.msra.mxu0 0.0
    %1951 = vmatprep.subr.mxu0 0.0
    %1952 = vmatpush1.msra.mxu0 0.0
    %1953 = vmatprep.subr.mxu0 0.0
    %1954 = vmatpush1.msra.mxu0 0.0
    %1955 = vmatprep.subr.mxu0 0.0
    %1956 = vmatpush1.msra.mxu0 0.0
    %1957 = vmatprep.subr.mxu0 0.0
    %1958 = vmatpush1.msra.mxu0 0.0
    %1959 = vmatprep.subr.mxu0 0.0
    %1960 = vmatpush1.msra.mxu0 0.0
    %1961 = vmatprep.subr.mxu0 0.0
    %1962 = vmatpush1.msra.mxu0 0.0
    %1963 = vmatprep.subr.mxu0 0.0
    %1964 = vmatpush1.msra.mxu0 0.0
    %1965 = vmatprep.subr.mxu0 0.0
    %1966 = vmatpush1.msra.mxu0 0.0
    %1967 = vmatprep.subr.mxu0 0.0
    %1968 = vmatpush1.msra.mxu0 0.0
    %1969 = vmatprep.subr.mxu0 0.0
    %1970 = vmatpush1.msra.mxu0 0.0
    %1971 = vmatprep.subr.mxu0 0.0
    %1972 = vmatpush1.msra.mxu0 0.0
    %1973 = vmatprep.subr.mxu0 0.0
    %1974 = vmatpush1.msra.mxu0 0.0
    %1975 = vmatprep.subr.mxu0 0.0
    %1976 = vmatpush1.msra.mxu0 0.0
    %1977 = vmatprep.subr.mxu0 0.0
    %1978 = vmatpush1.msra.mxu0 0.0
    %1979 = vmatprep.subr.mxu0 0.0
    %1980 = vmatpush1.msra.mxu0 0.0
    %1981 = vmatprep.subr.mxu0 0.0
    %1982 = vmatpush1.msra.mxu0 0.0
    %1983 = vmatprep.mubr.f32.mxu0 0.0
    %1984 = vmatmul.mubr.f32.gmra.mrb[0].mxu0 %v1917
    %v1985 = vpop.f32.mrb[0].mxu0
    %v1986 = vadd.f32 0.0, %v1985
    %v1987 = vpop.f32.mrb[0].mxu0
    %1988 = vdwg.mxu0
    %1989 = vrot.lane.b32.xlu0 %v667, 112
    %v1990 = vpop.permute.xlu0 %1989
    %v1993 = vsel %vm673, %v1456, 0
    %1995 = vmatprep.subr.mxu0 0.0
    %1996 = vmatpush1.msra.mxu0 %v1990
    %1997 = vmatprep.subr.mxu0 0.0
    %1998 = vmatpush1.msra.mxu0 0.0
    %1999 = vmatprep.subr.mxu0 0.0
    %2000 = vmatpush1.msra.mxu0 0.0
    %2001 = vmatprep.subr.mxu0 0.0
    %2002 = vmatpush1.msra.mxu0 0.0
    %2003 = vmatprep.subr.mxu0 0.0
    %2004 = vmatpush1.msra.mxu0 0.0
    %2005 = vmatprep.subr.mxu0 0.0
    %2006 = vmatpush1.msra.mxu0 0.0
    %2007 = vmatprep.subr.mxu0 0.0
    %2008 = vmatpush1.msra.mxu0 0.0
    %2009 = vmatprep.subr.mxu0 0.0
    %2010 = vmatpush1.msra.mxu0 0.0
    %2011 = vmatprep.subr.mxu0 0.0
    %2012 = vmatpush1.msra.mxu0 0.0
    %2013 = vmatprep.subr.mxu0 0.0
    %2014 = vmatpush1.msra.mxu0 0.0
    %2015 = vmatprep.subr.mxu0 0.0
    %2016 = vmatpush1.msra.mxu0 0.0
    %2017 = vmatprep.subr.mxu0 0.0
    %2018 = vmatpush1.msra.mxu0 0.0
    %2019 = vmatprep.subr.mxu0 0.0
    %2020 = vmatpush1.msra.mxu0 0.0
    %2021 = vmatprep.subr.mxu0 0.0
    %2022 = vmatpush1.msra.mxu0 0.0
    %2023 = vmatprep.subr.mxu0 0.0
    %2024 = vmatpush1.msra.mxu0 0.0
    %2025 = vmatprep.subr.mxu0 0.0
    %2026 = vmatpush1.msra.mxu0 0.0
    %2027 = vmatprep.subr.mxu0 0.0
    %2028 = vmatpush1.msra.mxu0 0.0
    %2029 = vmatprep.subr.mxu0 0.0
    %2030 = vmatpush1.msra.mxu0 0.0
    %2031 = vmatprep.subr.mxu0 0.0
    %2032 = vmatpush1.msra.mxu0 0.0
    %2033 = vmatprep.subr.mxu0 0.0
    %2034 = vmatpush1.msra.mxu0 0.0
    %2035 = vmatprep.subr.mxu0 0.0
    %2036 = vmatpush1.msra.mxu0 0.0
    %2037 = vmatprep.subr.mxu0 0.0
    %2038 = vmatpush1.msra.mxu0 0.0
    %2039 = vmatprep.subr.mxu0 0.0
    %2040 = vmatpush1.msra.mxu0 0.0
    %2041 = vmatprep.subr.mxu0 0.0
    %2042 = vmatpush1.msra.mxu0 0.0
    %2043 = vmatprep.subr.mxu0 0.0
    %2044 = vmatpush1.msra.mxu0 0.0
    %2045 = vmatprep.subr.mxu0 0.0
    %2046 = vmatpush1.msra.mxu0 0.0
    %2047 = vmatprep.subr.mxu0 0.0
    %2048 = vmatpush1.msra.mxu0 0.0
    %2049 = vmatprep.subr.mxu0 0.0
    %2050 = vmatpush1.msra.mxu0 0.0
    %2051 = vmatprep.subr.mxu0 0.0
    %2052 = vmatpush1.msra.mxu0 0.0
    %2053 = vmatprep.subr.mxu0 0.0
    %2054 = vmatpush1.msra.mxu0 0.0
    %2055 = vmatprep.subr.mxu0 0.0
    %2056 = vmatpush1.msra.mxu0 0.0
    %2057 = vmatprep.subr.mxu0 0.0
    %2058 = vmatpush1.msra.mxu0 0.0
    %2059 = vmatprep.mubr.f32.mxu0 0.0
    %2060 = vmatmul.mubr.f32.gmra.mrb[0].mxu0 %v1993
    %v2061 = vpop.f32.mrb[0].mxu0
    %v2062 = vadd.f32 0.0, %v2061
    %v2063 = vpop.f32.mrb[0].mxu0
    %2064 = vdwg.mxu0
    %v2065 = vld [vmem:[%s4] sm:$0xff]
    %v2066 = vld [vmem:[%s4 + $0x8] sm:$0xff]
    %v2067 = vld [vmem:[%s4 + $0x10] sm:$0xff]
    %v2068 = vld [vmem:[%s4 + $0x18] sm:$0xff]
    %v2069 = vld [vmem:[%s4 + $0x20] sm:$0xff]
    %v2070 = vld [vmem:[%s4 + $0x28] sm:$0xff]
    %v2071 = vld [vmem:[%s4 + $0x30] sm:$0xff]
    %v2072 = vld [vmem:[%s4 + $0x38] sm:$0xff]
    %v2074 = vsel %vm673, %v1530, 0
    %2076 = vmatprep.subr.mxu0 0.0
    %2077 = vmatpush1.msra.mxu0 %v2065
    %2078 = vmatprep.subr.mxu0 0.0
    %2079 = vmatpush1.msra.mxu0 0.0
    %2080 = vmatprep.subr.mxu0 0.0
    %2081 = vmatpush1.msra.mxu0 0.0
    %2082 = vmatprep.subr.mxu0 0.0
    %2083 = vmatpush1.msra.mxu0 0.0
    %2084 = vmatprep.subr.mxu0 0.0
    %2085 = vmatpush1.msra.mxu0 0.0
    %2086 = vmatprep.subr.mxu0 0.0
    %2087 = vmatpush1.msra.mxu0 0.0
    %2088 = vmatprep.subr.mxu0 0.0
    %2089 = vmatpush1.msra.mxu0 0.0
    %2090 = vmatprep.subr.mxu0 0.0
    %2091 = vmatpush1.msra.mxu0 0.0
    %2092 = vmatprep.subr.mxu0 0.0
    %2093 = vmatpush1.msra.mxu0 0.0
    %2094 = vmatprep.subr.mxu0 0.0
    %2095 = vmatpush1.msra.mxu0 0.0
    %2096 = vmatprep.subr.mxu0 0.0
    %2097 = vmatpush1.msra.mxu0 0.0
    %2098 = vmatprep.subr.mxu0 0.0
    %2099 = vmatpush1.msra.mxu0 0.0
    %2100 = vmatprep.subr.mxu0 0.0
    %2101 = vmatpush1.msra.mxu0 0.0
    %2102 = vmatprep.subr.mxu0 0.0
    %2103 = vmatpush1.msra.mxu0 0.0
    %2104 = vmatprep.subr.mxu0 0.0
    %2105 = vmatpush1.msra.mxu0 0.0
    %2106 = vmatprep.subr.mxu0 0.0
    %2107 = vmatpush1.msra.mxu0 0.0
    %2108 = vmatprep.subr.mxu0 0.0
    %2109 = vmatpush1.msra.mxu0 0.0
    %2110 = vmatprep.subr.mxu0 0.0
    %2111 = vmatpush1.msra.mxu0 0.0
    %2112 = vmatprep.subr.mxu0 0.0
    %2113 = vmatpush1.msra.mxu0 0.0
    %2114 = vmatprep.subr.mxu0 0.0
    %2115 = vmatpush1.msra.mxu0 0.0
    %2116 = vmatprep.subr.mxu0 0.0
    %2117 = vmatpush1.msra.mxu0 0.0
    %2118 = vmatprep.subr.mxu0 0.0
    %2119 = vmatpush1.msra.mxu0 0.0
    %2120 = vmatprep.subr.mxu0 0.0
    %2121 = vmatpush1.msra.mxu0 0.0
    %2122 = vmatprep.subr.mxu0 0.0
    %2123 = vmatpush1.msra.mxu0 0.0
    %2124 = vmatprep.subr.mxu0 0.0
    %2125 = vmatpush1.msra.mxu0 0.0
    %2126 = vmatprep.subr.mxu0 0.0
    %2127 = vmatpush1.msra.mxu0 0.0
    %2128 = vmatprep.subr.mxu0 0.0
    %2129 = vmatpush1.msra.mxu0 0.0
    %2130 = vmatprep.subr.mxu0 0.0
    %2131 = vmatpush1.msra.mxu0 0.0
    %2132 = vmatprep.subr.mxu0 0.0
    %2133 = vmatpush1.msra.mxu0 0.0
    %2134 = vmatprep.subr.mxu0 0.0
    %2135 = vmatpush1.msra.mxu0 0.0
    %2136 = vmatprep.subr.mxu0 0.0
    %2137 = vmatpush1.msra.mxu0 0.0
    %2138 = vmatprep.subr.mxu0 0.0
    %2139 = vmatpush1.msra.mxu0 0.0
    %2140 = vmatprep.mubr.f32.mxu0 0.0
    %2141 = vmatmul.mubr.f32.gmra.mrb[0].mxu0 %v2074
    %v2142 = vpop.f32.mrb[0].mxu0
    %v2143 = vadd.f32 0.0, %v2142
    %v2144 = vpop.f32.mrb[0].mxu0
    %2145 = vdwg.mxu0
    %v2147 = vsel %vm673, %v1606, 0
    %2149 = vmatprep.subr.mxu0 0.0
    %2150 = vmatpush1.msra.mxu0 %v2066
    %2151 = vmatprep.subr.mxu0 0.0
    %2152 = vmatpush1.msra.mxu0 0.0
    %2153 = vmatprep.subr.mxu0 0.0
    %2154 = vmatpush1.msra.mxu0 0.0
    %2155 = vmatprep.subr.mxu0 0.0
    %2156 = vmatpush1.msra.mxu0 0.0
    %2157 = vmatprep.subr.mxu0 0.0
    %2158 = vmatpush1.msra.mxu0 0.0
    %2159 = vmatprep.subr.mxu0 0.0
    %2160 = vmatpush1.msra.mxu0 0.0
    %2161 = vmatprep.subr.mxu0 0.0
    %2162 = vmatpush1.msra.mxu0 0.0
    %2163 = vmatprep.subr.mxu0 0.0
    %2164 = vmatpush1.msra.mxu0 0.0
    %2165 = vmatprep.subr.mxu0 0.0
    %2166 = vmatpush1.msra.mxu0 0.0
    %2167 = vmatprep.subr.mxu0 0.0
    %2168 = vmatpush1.msra.mxu0 0.0
    %2169 = vmatprep.subr.mxu0 0.0
    %2170 = vmatpush1.msra.mxu0 0.0
    %2171 = vmatprep.subr.mxu0 0.0
    %2172 = vmatpush1.msra.mxu0 0.0
    %2173 = vmatprep.subr.mxu0 0.0
    %2174 = vmatpush1.msra.mxu0 0.0
    %2175 = vmatprep.subr.mxu0 0.0
    %2176 = vmatpush1.msra.mxu0 0.0
    %2177 = vmatprep.subr.mxu0 0.0
    %2178 = vmatpush1.msra.mxu0 0.0
    %2179 = vmatprep.subr.mxu0 0.0
    %2180 = vmatpush1.msra.mxu0 0.0
    %2181 = vmatprep.subr.mxu0 0.0
    %2182 = vmatpush1.msra.mxu0 0.0
    %2183 = vmatprep.subr.mxu0 0.0
    %2184 = vmatpush1.msra.mxu0 0.0
    %2185 = vmatprep.subr.mxu0 0.0
    %2186 = vmatpush1.msra.mxu0 0.0
    %2187 = vmatprep.subr.mxu0 0.0
    %2188 = vmatpush1.msra.mxu0 0.0
    %2189 = vmatprep.subr.mxu0 0.0
    %2190 = vmatpush1.msra.mxu0 0.0
    %2191 = vmatprep.subr.mxu0 0.0
    %2192 = vmatpush1.msra.mxu0 0.0
    %2193 = vmatprep.subr.mxu0 0.0
    %2194 = vmatpush1.msra.mxu0 0.0
    %2195 = vmatprep.subr.mxu0 0.0
    %2196 = vmatpush1.msra.mxu0 0.0
    %2197 = vmatprep.subr.mxu0 0.0
    %2198 = vmatpush1.msra.mxu0 0.0
    %2199 = vmatprep.subr.mxu0 0.0
    %2200 = vmatpush1.msra.mxu0 0.0
    %2201 = vmatprep.subr.mxu0 0.0
    %2202 = vmatpush1.msra.mxu0 0.0
    %2203 = vmatprep.subr.mxu0 0.0
    %2204 = vmatpush1.msra.mxu0 0.0
    %2205 = vmatprep.subr.mxu0 0.0
    %2206 = vmatpush1.msra.mxu0 0.0
    %2207 = vmatprep.subr.mxu0 0.0
    %2208 = vmatpush1.msra.mxu0 0.0
    %2209 = vmatprep.subr.mxu0 0.0
    %2210 = vmatpush1.msra.mxu0 0.0
    %2211 = vmatprep.subr.mxu0 0.0
    %2212 = vmatpush1.msra.mxu0 0.0
    %2213 = vmatprep.mubr.f32.mxu0 0.0
    %2214 = vmatmul.mubr.f32.gmra.mrb[0].mxu0 %v2147
    %v2215 = vpop.f32.mrb[0].mxu0
    %v2216 = vadd.f32 0.0, %v2215
    %v2217 = vpop.f32.mrb[0].mxu0
    %2218 = vdwg.mxu0
    %v2220 = vsel %vm673, %v1682, 0
    %2222 = vmatprep.subr.mxu0 0.0
    %2223 = vmatpush1.msra.mxu0 %v2067
    %2224 = vmatprep.subr.mxu0 0.0
    %2225 = vmatpush1.msra.mxu0 0.0
    %2226 = vmatprep.subr.mxu0 0.0
    %2227 = vmatpush1.msra.mxu0 0.0
    %2228 = vmatprep.subr.mxu0 0.0
    %2229 = vmatpush1.msra.mxu0 0.0
    %2230 = vmatprep.subr.mxu0 0.0
    %2231 = vmatpush1.msra.mxu0 0.0
    %2232 = vmatprep.subr.mxu0 0.0
    %2233 = vmatpush1.msra.mxu0 0.0
    %2234 = vmatprep.subr.mxu0 0.0
    %2235 = vmatpush1.msra.mxu0 0.0
    %2236 = vmatprep.subr.mxu0 0.0
    %2237 = vmatpush1.msra.mxu0 0.0
    %2238 = vmatprep.subr.mxu0 0.0
    %2239 = vmatpush1.msra.mxu0 0.0
    %2240 = vmatprep.subr.mxu0 0.0
    %2241 = vmatpush1.msra.mxu0 0.0
    %2242 = vmatprep.subr.mxu0 0.0
    %2243 = vmatpush1.msra.mxu0 0.0
    %2244 = vmatprep.subr.mxu0 0.0
    %2245 = vmatpush1.msra.mxu0 0.0
    %2246 = vmatprep.subr.mxu0 0.0
    %2247 = vmatpush1.msra.mxu0 0.0
    %2248 = vmatprep.subr.mxu0 0.0
    %2249 = vmatpush1.msra.mxu0 0.0
    %2250 = vmatprep.subr.mxu0 0.0
    %2251 = vmatpush1.msra.mxu0 0.0
    %2252 = vmatprep.subr.mxu0 0.0
    %2253 = vmatpush1.msra.mxu0 0.0
    %2254 = vmatprep.subr.mxu0 0.0
    %2255 = vmatpush1.msra.mxu0 0.0
    %2256 = vmatprep.subr.mxu0 0.0
    %2257 = vmatpush1.msra.mxu0 0.0
    %2258 = vmatprep.subr.mxu0 0.0
    %2259 = vmatpush1.msra.mxu0 0.0
    %2260 = vmatprep.subr.mxu0 0.0
    %2261 = vmatpush1.msra.mxu0 0.0
    %2262 = vmatprep.subr.mxu0 0.0
    %2263 = vmatpush1.msra.mxu0 0.0
    %2264 = vmatprep.subr.mxu0 0.0
    %2265 = vmatpush1.msra.mxu0 0.0
    %2266 = vmatprep.subr.mxu0 0.0
    %2267 = vmatpush1.msra.mxu0 0.0
    %2268 = vmatprep.subr.mxu0 0.0
    %2269 = vmatpush1.msra.mxu0 0.0
    %2270 = vmatprep.subr.mxu0 0.0
    %2271 = vmatpush1.msra.mxu0 0.0
    %2272 = vmatprep.subr.mxu0 0.0
    %2273 = vmatpush1.msra.mxu0 0.0
    %2274 = vmatprep.subr.mxu0 0.0
    %2275 = vmatpush1.msra.mxu0 0.0
    %2276 = vmatprep.subr.mxu0 0.0
    %2277 = vmatpush1.msra.mxu0 0.0
    %2278 = vmatprep.subr.mxu0 0.0
    %2279 = vmatpush1.msra.mxu0 0.0
    %2280 = vmatprep.subr.mxu0 0.0
    %2281 = vmatpush1.msra.mxu0 0.0
    %2282 = vmatprep.subr.mxu0 0.0
    %2283 = vmatpush1.msra.mxu0 0.0
    %2284 = vmatprep.subr.mxu0 0.0
    %2285 = vmatpush1.msra.mxu0 0.0
    %2286 = vmatprep.mubr.f32.mxu0 0.0
    %2287 = vmatmul.mubr.f32.gmra.mrb[0].mxu0 %v2220
    %v2288 = vpop.f32.mrb[0].mxu0
    %v2289 = vadd.f32 0.0, %v2288
    %v2290 = vpop.f32.mrb[0].mxu0
    %2291 = vdwg.mxu0
    %v2293 = vsel %vm673, %v1758, 0
    %2295 = vmatprep.subr.mxu0 0.0
    %2296 = vmatpush1.msra.mxu0 %v2068
    %2297 = vmatprep.subr.mxu0 0.0
    %2298 = vmatpush1.msra.mxu0 0.0
    %2299 = vmatprep.subr.mxu0 0.0
    %2300 = vmatpush1.msra.mxu0 0.0
    %2301 = vmatprep.subr.mxu0 0.0
    %2302 = vmatpush1.msra.mxu0 0.0
    %2303 = vmatprep.subr.mxu0 0.0
    %2304 = vmatpush1.msra.mxu0 0.0
    %2305 = vmatprep.subr.mxu0 0.0
    %2306 = vmatpush1.msra.mxu0 0.0
    %2307 = vmatprep.subr.mxu0 0.0
    %2308 = vmatpush1.msra.mxu0 0.0
    %2309 = vmatprep.subr.mxu0 0.0
    %2310 = vmatpush1.msra.mxu0 0.0
    %2311 = vmatprep.subr.mxu0 0.0
    %2312 = vmatpush1.msra.mxu0 0.0
    %2313 = vmatprep.subr.mxu0 0.0
    %2314 = vmatpush1.msra.mxu0 0.0
    %2315 = vmatprep.subr.mxu0 0.0
    %2316 = vmatpush1.msra.mxu0 0.0
    %2317 = vmatprep.subr.mxu0 0.0
    %2318 = vmatpush1.msra.mxu0 0.0
    %2319 = vmatprep.subr.mxu0 0.0
    %2320 = vmatpush1.msra.mxu0 0.0
    %2321 = vmatprep.subr.mxu0 0.0
    %2322 = vmatpush1.msra.mxu0 0.0
    %2323 = vmatprep.subr.mxu0 0.0
    %2324 = vmatpush1.msra.mxu0 0.0
    %2325 = vmatprep.subr.mxu0 0.0
    %2326 = vmatpush1.msra.mxu0 0.0
    %2327 = vmatprep.subr.mxu0 0.0
    %2328 = vmatpush1.msra.mxu0 0.0
    %2329 = vmatprep.subr.mxu0 0.0
    %2330 = vmatpush1.msra.mxu0 0.0
    %2331 = vmatprep.subr.mxu0 0.0
    %2332 = vmatpush1.msra.mxu0 0.0
    %2333 = vmatprep.subr.mxu0 0.0
    %2334 = vmatpush1.msra.mxu0 0.0
    %2335 = vmatprep.subr.mxu0 0.0
    %2336 = vmatpush1.msra.mxu0 0.0
    %2337 = vmatprep.subr.mxu0 0.0
    %2338 = vmatpush1.msra.mxu0 0.0
    %2339 = vmatprep.subr.mxu0 0.0
    %2340 = vmatpush1.msra.mxu0 0.0
    %2341 = vmatprep.subr.mxu0 0.0
    %2342 = vmatpush1.msra.mxu0 0.0
    %2343 = vmatprep.subr.mxu0 0.0
    %2344 = vmatpush1.msra.mxu0 0.0
    %2345 = vmatprep.subr.mxu0 0.0
    %2346 = vmatpush1.msra.mxu0 0.0
    %2347 = vmatprep.subr.mxu0 0.0
    %2348 = vmatpush1.msra.mxu0 0.0
    %2349 = vmatprep.subr.mxu0 0.0
    %2350 = vmatpush1.msra.mxu0 0.0
    %2351 = vmatprep.subr.mxu0 0.0
    %2352 = vmatpush1.msra.mxu0 0.0
    %2353 = vmatprep.subr.mxu0 0.0
    %2354 = vmatpush1.msra.mxu0 0.0
    %2355 = vmatprep.subr.mxu0 0.0
    %2356 = vmatpush1.msra.mxu0 0.0
    %2357 = vmatprep.subr.mxu0 0.0
    %2358 = vmatpush1.msra.mxu0 0.0
    %2359 = vmatprep.mubr.f32.mxu0 0.0
    %2360 = vmatmul.mubr.f32.gmra.mrb[0].mxu0 %v2293
    %v2361 = vpop.f32.mrb[0].mxu0
    %v2362 = vadd.f32 0.0, %v2361
    %v2363 = vpop.f32.mrb[0].mxu0
    %2364 = vdwg.mxu0
    %v2366 = vsel %vm673, %v1834, 0
    %2368 = vmatprep.subr.mxu0 0.0
    %2369 = vmatpush1.msra.mxu0 %v2069
    %2370 = vmatprep.subr.mxu0 0.0
    %2371 = vmatpush1.msra.mxu0 0.0
    %2372 = vmatprep.subr.mxu0 0.0
    %2373 = vmatpush1.msra.mxu0 0.0
    %2374 = vmatprep.subr.mxu0 0.0
    %2375 = vmatpush1.msra.mxu0 0.0
    %2376 = vmatprep.subr.mxu0 0.0
    %2377 = vmatpush1.msra.mxu0 0.0
    %2378 = vmatprep.subr.mxu0 0.0
    %2379 = vmatpush1.msra.mxu0 0.0
    %2380 = vmatprep.subr.mxu0 0.0
    %2381 = vmatpush1.msra.mxu0 0.0
    %2382 = vmatprep.subr.mxu0 0.0
    %2383 = vmatpush1.msra.mxu0 0.0
    %2384 = vmatprep.subr.mxu0 0.0
    %2385 = vmatpush1.msra.mxu0 0.0
    %2386 = vmatprep.subr.mxu0 0.0
    %2387 = vmatpush1.msra.mxu0 0.0
    %2388 = vmatprep.subr.mxu0 0.0
    %2389 = vmatpush1.msra.mxu0 0.0
    %2390 = vmatprep.subr.mxu0 0.0
    %2391 = vmatpush1.msra.mxu0 0.0
    %2392 = vmatprep.subr.mxu0 0.0
    %2393 = vmatpush1.msra.mxu0 0.0
    %2394 = vmatprep.subr.mxu0 0.0
    %2395 = vmatpush1.msra.mxu0 0.0
    %2396 = vmatprep.subr.mxu0 0.0
    %2397 = vmatpush1.msra.mxu0 0.0
    %2398 = vmatprep.subr.mxu0 0.0
    %2399 = vmatpush1.msra.mxu0 0.0
    %2400 = vmatprep.subr.mxu0 0.0
    %2401 = vmatpush1.msra.mxu0 0.0
    %2402 = vmatprep.subr.mxu0 0.0
    %2403 = vmatpush1.msra.mxu0 0.0
    %2404 = vmatprep.subr.mxu0 0.0
    %2405 = vmatpush1.msra.mxu0 0.0
    %2406 = vmatprep.subr.mxu0 0.0
    %2407 = vmatpush1.msra.mxu0 0.0
    %2408 = vmatprep.subr.mxu0 0.0
    %2409 = vmatpush1.msra.mxu0 0.0
    %2410 = vmatprep.subr.mxu0 0.0
    %2411 = vmatpush1.msra.mxu0 0.0
    %2412 = vmatprep.subr.mxu0 0.0
    %2413 = vmatpush1.msra.mxu0 0.0
    %2414 = vmatprep.subr.mxu0 0.0
    %2415 = vmatpush1.msra.mxu0 0.0
    %2416 = vmatprep.subr.mxu0 0.0
    %2417 = vmatpush1.msra.mxu0 0.0
    %2418 = vmatprep.subr.mxu0 0.0
    %2419 = vmatpush1.msra.mxu0 0.0
    %2420 = vmatprep.subr.mxu0 0.0
    %2421 = vmatpush1.msra.mxu0 0.0
    %2422 = vmatprep.subr.mxu0 0.0
    %2423 = vmatpush1.msra.mxu0 0.0
    %2424 = vmatprep.subr.mxu0 0.0
    %2425 = vmatpush1.msra.mxu0 0.0
    %2426 = vmatprep.subr.mxu0 0.0
    %2427 = vmatpush1.msra.mxu0 0.0
    %2428 = vmatprep.subr.mxu0 0.0
    %2429 = vmatpush1.msra.mxu0 0.0
    %2430 = vmatprep.subr.mxu0 0.0
    %2431 = vmatpush1.msra.mxu0 0.0
    %2432 = vmatprep.mubr.f32.mxu0 0.0
    %2433 = vmatmul.mubr.f32.gmra.mrb[0].mxu0 %v2366
    %v2434 = vpop.f32.mrb[0].mxu0
    %v2435 = vadd.f32 0.0, %v2434
    %v2436 = vpop.f32.mrb[0].mxu0
    %2437 = vdwg.mxu0
    %v2439 = vsel %vm673, %v1910, 0
    %2441 = vmatprep.subr.mxu0 0.0
    %2442 = vmatpush1.msra.mxu0 %v2070
    %2443 = vmatprep.subr.mxu0 0.0
    %2444 = vmatpush1.msra.mxu0 0.0
    %2445 = vmatprep.subr.mxu0 0.0
    %2446 = vmatpush1.msra.mxu0 0.0
    %2447 = vmatprep.subr.mxu0 0.0
    %2448 = vmatpush1.msra.mxu0 0.0
    %2449 = vmatprep.subr.mxu0 0.0
    %2450 = vmatpush1.msra.mxu0 0.0
    %2451 = vmatprep.subr.mxu0 0.0
    %2452 = vmatpush1.msra.mxu0 0.0
    %2453 = vmatprep.subr.mxu0 0.0
    %2454 = vmatpush1.msra.mxu0 0.0
    %2455 = vmatprep.subr.mxu0 0.0
    %2456 = vmatpush1.msra.mxu0 0.0
    %2457 = vmatprep.subr.mxu0 0.0
    %2458 = vmatpush1.msra.mxu0 0.0
    %2459 = vmatprep.subr.mxu0 0.0
    %2460 = vmatpush1.msra.mxu0 0.0
    %2461 = vmatprep.subr.mxu0 0.0
    %2462 = vmatpush1.msra.mxu0 0.0
    %2463 = vmatprep.subr.mxu0 0.0
    %2464 = vmatpush1.msra.mxu0 0.0
    %2465 = vmatprep.subr.mxu0 0.0
    %2466 = vmatpush1.msra.mxu0 0.0
    %2467 = vmatprep.subr.mxu0 0.0
    %2468 = vmatpush1.msra.mxu0 0.0
    %2469 = vmatprep.subr.mxu0 0.0
    %2470 = vmatpush1.msra.mxu0 0.0
    %2471 = vmatprep.subr.mxu0 0.0
    %2472 = vmatpush1.msra.mxu0 0.0
    %2473 = vmatprep.subr.mxu0 0.0
    %2474 = vmatpush1.msra.mxu0 0.0
    %2475 = vmatprep.subr.mxu0 0.0
    %2476 = vmatpush1.msra.mxu0 0.0
    %2477 = vmatprep.subr.mxu0 0.0
    %2478 = vmatpush1.msra.mxu0 0.0
    %2479 = vmatprep.subr.mxu0 0.0
    %2480 = vmatpush1.msra.mxu0 0.0
    %2481 = vmatprep.subr.mxu0 0.0
    %2482 = vmatpush1.msra.mxu0 0.0
    %2483 = vmatprep.subr.mxu0 0.0
    %2484 = vmatpush1.msra.mxu0 0.0
    %2485 = vmatprep.subr.mxu0 0.0
    %2486 = vmatpush1.msra.mxu0 0.0
    %2487 = vmatprep.subr.mxu0 0.0
    %2488 = vmatpush1.msra.mxu0 0.0
    %2489 = vmatprep.subr.mxu0 0.0
    %2490 = vmatpush1.msra.mxu0 0.0
    %2491 = vmatprep.subr.mxu0 0.0
    %2492 = vmatpush1.msra.mxu0 0.0
    %2493 = vmatprep.subr.mxu0 0.0
    %2494 = vmatpush1.msra.mxu0 0.0
    %2495 = vmatprep.subr.mxu0 0.0
    %2496 = vmatpush1.msra.mxu0 0.0
    %2497 = vmatprep.subr.mxu0 0.0
    %2498 = vmatpush1.msra.mxu0 0.0
    %2499 = vmatprep.subr.mxu0 0.0
    %2500 = vmatpush1.msra.mxu0 0.0
    %2501 = vmatprep.subr.mxu0 0.0
    %2502 = vmatpush1.msra.mxu0 0.0
    %2503 = vmatprep.subr.mxu0 0.0
    %2504 = vmatpush1.msra.mxu0 0.0
    %2505 = vmatprep.mubr.f32.mxu0 0.0
    %2506 = vmatmul.mubr.f32.gmra.mrb[0].mxu0 %v2439
    %v2507 = vpop.f32.mrb[0].mxu0
    %v2508 = vadd.f32 0.0, %v2507
    %v2509 = vpop.f32.mrb[0].mxu0
    %2510 = vdwg.mxu0
    %v2512 = vsel %vm673, %v1986, 0
    %2514 = vmatprep.subr.mxu0 0.0
    %2515 = vmatpush1.msra.mxu0 %v2071
    %2516 = vmatprep.subr.mxu0 0.0
    %2517 = vmatpush1.msra.mxu0 0.0
    %2518 = vmatprep.subr.mxu0 0.0
    %2519 = vmatpush1.msra.mxu0 0.0
    %2520 = vmatprep.subr.mxu0 0.0
    %2521 = vmatpush1.msra.mxu0 0.0
    %2522 = vmatprep.subr.mxu0 0.0
    %2523 = vmatpush1.msra.mxu0 0.0
    %2524 = vmatprep.subr.mxu0 0.0
    %2525 = vmatpush1.msra.mxu0 0.0
    %2526 = vmatprep.subr.mxu0 0.0
    %2527 = vmatpush1.msra.mxu0 0.0
    %2528 = vmatprep.subr.mxu0 0.0
    %2529 = vmatpush1.msra.mxu0 0.0
    %2530 = vmatprep.subr.mxu0 0.0
    %2531 = vmatpush1.msra.mxu0 0.0
    %2532 = vmatprep.subr.mxu0 0.0
    %2533 = vmatpush1.msra.mxu0 0.0
    %2534 = vmatprep.subr.mxu0 0.0
    %2535 = vmatpush1.msra.mxu0 0.0
    %2536 = vmatprep.subr.mxu0 0.0
    %2537 = vmatpush1.msra.mxu0 0.0
    %2538 = vmatprep.subr.mxu0 0.0
    %2539 = vmatpush1.msra.mxu0 0.0
    %2540 = vmatprep.subr.mxu0 0.0
    %2541 = vmatpush1.msra.mxu0 0.0
    %2542 = vmatprep.subr.mxu0 0.0
    %2543 = vmatpush1.msra.mxu0 0.0
    %2544 = vmatprep.subr.mxu0 0.0
    %2545 = vmatpush1.msra.mxu0 0.0
    %2546 = vmatprep.subr.mxu0 0.0
    %2547 = vmatpush1.msra.mxu0 0.0
    %2548 = vmatprep.subr.mxu0 0.0
    %2549 = vmatpush1.msra.mxu0 0.0
    %2550 = vmatprep.subr.mxu0 0.0
    %2551 = vmatpush1.msra.mxu0 0.0
    %2552 = vmatprep.subr.mxu0 0.0
    %2553 = vmatpush1.msra.mxu0 0.0
    %2554 = vmatprep.subr.mxu0 0.0
    %2555 = vmatpush1.msra.mxu0 0.0
    %2556 = vmatprep.subr.mxu0 0.0
    %2557 = vmatpush1.msra.mxu0 0.0
    %2558 = vmatprep.subr.mxu0 0.0
    %2559 = vmatpush1.msra.mxu0 0.0
    %2560 = vmatprep.subr.mxu0 0.0
    %2561 = vmatpush1.msra.mxu0 0.0
    %2562 = vmatprep.subr.mxu0 0.0
    %2563 = vmatpush1.msra.mxu0 0.0
    %2564 = vmatprep.subr.mxu0 0.0
    %2565 = vmatpush1.msra.mxu0 0.0
    %2566 = vmatprep.subr.mxu0 0.0
    %2567 = vmatpush1.msra.mxu0 0.0
    %2568 = vmatprep.subr.mxu0 0.0
    %2569 = vmatpush1.msra.mxu0 0.0
    %2570 = vmatprep.subr.mxu0 0.0
    %2571 = vmatpush1.msra.mxu0 0.0
    %2572 = vmatprep.subr.mxu0 0.0
    %2573 = vmatpush1.msra.mxu0 0.0
    %2574 = vmatprep.subr.mxu0 0.0
    %2575 = vmatpush1.msra.mxu0 0.0
    %2576 = vmatprep.subr.mxu0 0.0
    %2577 = vmatpush1.msra.mxu0 0.0
    %2578 = vmatprep.mubr.f32.mxu0 0.0
    %2579 = vmatmul.mubr.f32.gmra.mrb[0].mxu0 %v2512
    %v2580 = vpop.f32.mrb[0].mxu0
    %v2581 = vadd.f32 0.0, %v2580
    %v2582 = vpop.f32.mrb[0].mxu0
    %2583 = vdwg.mxu0
    %v2585 = vsel %vm673, %v2062, 0
    %2587 = vmatprep.subr.mxu0 0.0
    %2588 = vmatpush1.msra.mxu0 %v2072
    %2589 = vmatprep.subr.mxu0 0.0
    %2590 = vmatpush1.msra.mxu0 0.0
    %2591 = vmatprep.subr.mxu0 0.0
    %2592 = vmatpush1.msra.mxu0 0.0
    %2593 = vmatprep.subr.mxu0 0.0
    %2594 = vmatpush1.msra.mxu0 0.0
    %2595 = vmatprep.subr.mxu0 0.0
    %2596 = vmatpush1.msra.mxu0 0.0
    %2597 = vmatprep.subr.mxu0 0.0
    %2598 = vmatpush1.msra.mxu0 0.0
    %2599 = vmatprep.subr.mxu0 0.0
    %2600 = vmatpush1.msra.mxu0 0.0
    %2601 = vmatprep.subr.mxu0 0.0
    %2602 = vmatpush1.msra.mxu0 0.0
    %2603 = vmatprep.subr.mxu0 0.0
    %2604 = vmatpush1.msra.mxu0 0.0
    %2605 = vmatprep.subr.mxu0 0.0
    %2606 = vmatpush1.msra.mxu0 0.0
    %2607 = vmatprep.subr.mxu0 0.0
    %2608 = vmatpush1.msra.mxu0 0.0
    %2609 = vmatprep.subr.mxu0 0.0
    %2610 = vmatpush1.msra.mxu0 0.0
    %2611 = vmatprep.subr.mxu0 0.0
    %2612 = vmatpush1.msra.mxu0 0.0
    %2613 = vmatprep.subr.mxu0 0.0
    %2614 = vmatpush1.msra.mxu0 0.0
    %2615 = vmatprep.subr.mxu0 0.0
    %2616 = vmatpush1.msra.mxu0 0.0
    %2617 = vmatprep.subr.mxu0 0.0
    %2618 = vmatpush1.msra.mxu0 0.0
    %2619 = vmatprep.subr.mxu0 0.0
    %2620 = vmatpush1.msra.mxu0 0.0
    %2621 = vmatprep.subr.mxu0 0.0
    %2622 = vmatpush1.msra.mxu0 0.0
    %2623 = vmatprep.subr.mxu0 0.0
    %2624 = vmatpush1.msra.mxu0 0.0
    %2625 = vmatprep.subr.mxu0 0.0
    %2626 = vmatpush1.msra.mxu0 0.0
    %2627 = vmatprep.subr.mxu0 0.0
    %2628 = vmatpush1.msra.mxu0 0.0
    %2629 = vmatprep.subr.mxu0 0.0
    %2630 = vmatpush1.msra.mxu0 0.0
    %2631 = vmatprep.subr.mxu0 0.0
    %2632 = vmatpush1.msra.mxu0 0.0
    %2633 = vmatprep.subr.mxu0 0.0
    %2634 = vmatpush1.msra.mxu0 0.0
    %2635 = vmatprep.subr.mxu0 0.0
    %2636 = vmatpush1.msra.mxu0 0.0
    %2637 = vmatprep.subr.mxu0 0.0
    %2638 = vmatpush1.msra.mxu0 0.0
    %2639 = vmatprep.subr.mxu0 0.0
    %2640 = vmatpush1.msra.mxu0 0.0
    %2641 = vmatprep.subr.mxu0 0.0
    %2642 = vmatpush1.msra.mxu0 0.0
    %2643 = vmatprep.subr.mxu0 0.0
    %2644 = vmatpush1.msra.mxu0 0.0
    %2645 = vmatprep.subr.mxu0 0.0
    %2646 = vmatpush1.msra.mxu0 0.0
    %2647 = vmatprep.subr.mxu0 0.0
    %2648 = vmatpush1.msra.mxu0 0.0
    %2649 = vmatprep.subr.mxu0 0.0
    %2650 = vmatpush1.msra.mxu0 0.0
    %2651 = vmatprep.mubr.f32.mxu0 0.0
    %2652 = vmatmul.mubr.f32.gmra.mrb[0].mxu0 %v2585
    %v2653 = vpop.f32.mrb[0].mxu0
    %v2654 = vadd.f32 0.0, %v2653
    %v2655 = vpop.f32.mrb[0].mxu0
    %2656 = vdwg.mxu0
    %v2657 = vadd.f32 %v2143, %v2289
    %v2658 = vadd.f32 %v2216, %v2362
    %v2659 = vadd.f32 %v2657, %v2435
    %v2660 = vadd.f32 %v2658, %v2508
    %v2661 = vadd.f32 %v2659, %v2581
    %v2662 = vadd.f32 %v2660, %v2654
    %v2663 = vld [vmem:[%s0] sm:$0xff]
    %v2664 = vld [vmem:[%s0 + $0x8] sm:$0xff]
    %v2665 = vadd.f32 %v2661, %v2663
    %v2666 = vadd.f32 %v2662, %v2664
    %v2667 = vld [vmem:[%s5] sm:$0x1]
    %v2668 = vld [vmem:[%s6] sm:$0x1]
    %v2669 = vsel %vm85, %v2665, 0.0
    %2670 = vadd.xlane.f32.xlu0 %v2669
    %v2671 = vpop.xlane.xlu0 %2670
    %v2672 = vsel %vm85, %v2666, 0.0
    %2673 = vadd.xlane.f32.xlu0 %v2672
    %v2674 = vpop.xlane.xlu0 %2673
    %v2675 = vrcp.pop 32.0
    %v2676 = vmul.f32 %v2671, %v2675
    %v2677 = vmul.f32 %v2674, %v2675
    %v2678 = vsub.f32 %v2665, %v2676
    %v2679 = vsub.f32 %v2666, %v2677
    %v2680 = vmul.f32 %v2678, %v2678
    %v2681 = vmul.f32 %v2679, %v2679
    %v2682 = vsel %vm85, %v2680, 0.0
    %2683 = vadd.xlane.f32.xlu0 %v2682
    %v2684 = vpop.xlane.xlu0 %2683
    %v2685 = vsel %vm85, %v2681, 0.0
    %2686 = vadd.xlane.f32.xlu0 %v2685
    %v2687 = vpop.xlane.xlu0 %2686
    %v2688 = vmul.f32 %v2684, %v2675
    %v2689 = vmul.f32 %v2687, %v2675
    %v2690 = vadd.f32 %v2688, 1e-05
    %v2691 = vadd.f32 %v2689, 1e-05
    %v2692 = vrsqrt.pop %v2690
    %v2693 = vrsqrt.pop %v2691
    %v2694 = vmul.f32 %v2678, %v2692
    %v2695 = vmul.f32 %v2679, %v2693
    %v2697 = vlaneseq
    %v2698 = vshrl.u32 %v2697, 7
    %v2699 = vsub.s32 0, %v2698
    %v2700 = vrot.slane %v2667, %v2699
    %v2702 = vmul.f32 %v2694, %v2700
    %v2703 = vmul.f32 %v2695, %v2700
    %v2705 = vlaneseq
    %v2706 = vshrl.u32 %v2705, 7
    %v2707 = vsub.s32 0, %v2706
    %v2708 = vrot.slane %v2668, %v2707
    %v2710 = vadd.f32 %v2702, %v2708
    %v2711 = vadd.f32 %v2703, %v2708
    %v2712 = vld [vmem:[%s7] sm:$0xff]
    %v2713 = vld [vmem:[%s7 + $0x8] sm:$0xff]
    %v2714 = vld [vmem:[%s7 + $0x10] sm:$0xff]
    %v2715 = vld [vmem:[%s7 + $0x18] sm:$0xff]
    %v2716 = vld [vmem:[%s8] sm:$0x1]
    %v2718 = vlaneseq
    %v2719 = vshrl.u32 %v2718, 7
    %v2720 = vsub.s32 0, %v2719
    %v2721 = vrot.slane %v2716, %v2720
    %v2724 = vsel %vm85, %v2710, 0
    %v2727 = vsel %vm85, %v2711, 0
    %2729 = vmatprep.subr.mxu0 0.0
    %2730 = vmatpush1.msra.mxu0 %v2712
    %2731 = vmatprep.subr.mxu0 0.0
    %2732 = vmatpush1.msra.mxu0 %v2713
    %2733 = vmatprep.subr.mxu0 0.0
    %2734 = vmatpush1.msra.mxu0 %v2714
    %2735 = vmatprep.subr.mxu0 0.0
    %2736 = vmatpush1.msra.mxu0 %v2715
    %2737 = vmatprep.subr.mxu0 0.0
    %2738 = vmatpush1.msra.mxu0 0.0
    %2739 = vmatprep.subr.mxu0 0.0
    %2740 = vmatpush1.msra.mxu0 0.0
    %2741 = vmatprep.subr.mxu0 0.0
    %2742 = vmatpush1.msra.mxu0 0.0
    %2743 = vmatprep.subr.mxu0 0.0
    %2744 = vmatpush1.msra.mxu0 0.0
    %2745 = vmatprep.subr.mxu0 0.0
    %2746 = vmatpush1.msra.mxu0 0.0
    %2747 = vmatprep.subr.mxu0 0.0
    %2748 = vmatpush1.msra.mxu0 0.0
    %2749 = vmatprep.subr.mxu0 0.0
    %2750 = vmatpush1.msra.mxu0 0.0
    %2751 = vmatprep.subr.mxu0 0.0
    %2752 = vmatpush1.msra.mxu0 0.0
    %2753 = vmatprep.subr.mxu0 0.0
    %2754 = vmatpush1.msra.mxu0 0.0
    %2755 = vmatprep.subr.mxu0 0.0
    %2756 = vmatpush1.msra.mxu0 0.0
    %2757 = vmatprep.subr.mxu0 0.0
    %2758 = vmatpush1.msra.mxu0 0.0
    %2759 = vmatprep.subr.mxu0 0.0
    %2760 = vmatpush1.msra.mxu0 0.0
    %2761 = vmatprep.subr.mxu0 0.0
    %2762 = vmatpush1.msra.mxu0 0.0
    %2763 = vmatprep.subr.mxu0 0.0
    %2764 = vmatpush1.msra.mxu0 0.0
    %2765 = vmatprep.subr.mxu0 0.0
    %2766 = vmatpush1.msra.mxu0 0.0
    %2767 = vmatprep.subr.mxu0 0.0
    %2768 = vmatpush1.msra.mxu0 0.0
    %2769 = vmatprep.subr.mxu0 0.0
    %2770 = vmatpush1.msra.mxu0 0.0
    %2771 = vmatprep.subr.mxu0 0.0
    %2772 = vmatpush1.msra.mxu0 0.0
    %2773 = vmatprep.subr.mxu0 0.0
    %2774 = vmatpush1.msra.mxu0 0.0
    %2775 = vmatprep.subr.mxu0 0.0
    %2776 = vmatpush1.msra.mxu0 0.0
    %2777 = vmatprep.subr.mxu0 0.0
    %2778 = vmatpush1.msra.mxu0 0.0
    %2779 = vmatprep.subr.mxu0 0.0
    %2780 = vmatpush1.msra.mxu0 0.0
    %2781 = vmatprep.subr.mxu0 0.0
    %2782 = vmatpush1.msra.mxu0 0.0
    %2783 = vmatprep.subr.mxu0 0.0
    %2784 = vmatpush1.msra.mxu0 0.0
    %2785 = vmatprep.subr.mxu0 0.0
    %2786 = vmatpush1.msra.mxu0 0.0
    %2787 = vmatprep.subr.mxu0 0.0
    %2788 = vmatpush1.msra.mxu0 0.0
    %2789 = vmatprep.subr.mxu0 0.0
    %2790 = vmatpush1.msra.mxu0 0.0
    %2791 = vmatprep.subr.mxu0 0.0
    %2792 = vmatpush1.msra.mxu0 0.0
    %2793 = vmatprep.mubr.f32.mxu0 0.0
    %2794 = vmatmul.mubr.f32.gmra.mrb[0].mxu0 %v2724
    %v2795 = vpop.f32.mrb[0].mxu0
    %v2796 = vadd.f32 %v2721, %v2795
    %v2797 = vpop.f32.mrb[0].mxu0
    %2798 = vmatprep.mubr.f32.mxu0 0.0
    %2799 = vmatmul.mubr.f32.gmra.mrb[0].mxu0 %v2727
    %v2800 = vpop.f32.mrb[0].mxu0
    %v2801 = vadd.f32 %v2721, %v2800
    %v2802 = vpop.f32.mrb[0].mxu0
    %2803 = vdwg.mxu0
    %v2804 = vmax.f32 %v2796, 0.0
    %v2805 = vmax.f32 %v2801, 0.0
    %v2806 = vld [vmem:[%s9] sm:$0xff]
    %v2807 = vld [vmem:[%s9 + $0x8] sm:$0xff]
    %v2808 = vld [vmem:[%s9 + $0x10] sm:$0xff]
    %v2809 = vld [vmem:[%s9 + $0x18] sm:$0xff]
    %v2810 = vld [vmem:[%s9 + $0x20] sm:$0xff]
    %v2811 = vld [vmem:[%s9 + $0x28] sm:$0xff]
    %v2812 = vld [vmem:[%s9 + $0x30] sm:$0xff]
    %v2813 = vld [vmem:[%s9 + $0x38] sm:$0xff]
    %v2814 = vld [vmem:[%s10] sm:$0x1]
    %v2816 = vlaneseq
    %v2817 = vshrl.u32 %v2816, 7
    %v2818 = vsub.s32 0, %v2817
    %v2819 = vrot.slane %v2814, %v2818
    %vm2821 = vcmask 523264
    %v2823 = vsel %vm2821, %v2804, 0
    %v2826 = vsel %vm2821, %v2805, 0
    %2828 = vmatprep.subr.mxu0 0.0
    %2829 = vmatpush1.msra.mxu0 %v2806
    %2830 = vmatprep.subr.mxu0 0.0
    %2831 = vmatpush1.msra.mxu0 %v2807
    %2832 = vmatprep.subr.mxu0 0.0
    %2833 = vmatpush1.msra.mxu0 %v2808
    %2834 = vmatprep.subr.mxu0 0.0
    %2835 = vmatpush1.msra.mxu0 %v2809
    %2836 = vmatprep.subr.mxu0 0.0
    %2837 = vmatpush1.msra.mxu0 %v2810
    %2838 = vmatprep.subr.mxu0 0.0
    %2839 = vmatpush1.msra.mxu0 %v2811
    %2840 = vmatprep.subr.mxu0 0.0
    %2841 = vmatpush1.msra.mxu0 %v2812
    %2842 = vmatprep.subr.mxu0 0.0
    %2843 = vmatpush1.msra.mxu0 %v2813
    %2844 = vmatprep.subr.mxu0 0.0
    %2845 = vmatpush1.msra.mxu0 0.0
    %2846 = vmatprep.subr.mxu0 0.0
    %2847 = vmatpush1.msra.mxu0 0.0
    %2848 = vmatprep.subr.mxu0 0.0
    %2849 = vmatpush1.msra.mxu0 0.0
    %2850 = vmatprep.subr.mxu0 0.0
    %2851 = vmatpush1.msra.mxu0 0.0
    %2852 = vmatprep.subr.mxu0 0.0
    %2853 = vmatpush1.msra.mxu0 0.0
    %2854 = vmatprep.subr.mxu0 0.0
    %2855 = vmatpush1.msra.mxu0 0.0
    %2856 = vmatprep.subr.mxu0 0.0
    %2857 = vmatpush1.msra.mxu0 0.0
    %2858 = vmatprep.subr.mxu0 0.0
    %2859 = vmatpush1.msra.mxu0 0.0
    %2860 = vmatprep.subr.mxu0 0.0
    %2861 = vmatpush1.msra.mxu0 0.0
    %2862 = vmatprep.subr.mxu0 0.0
    %2863 = vmatpush1.msra.mxu0 0.0
    %2864 = vmatprep.subr.mxu0 0.0
    %2865 = vmatpush1.msra.mxu0 0.0
    %2866 = vmatprep.subr.mxu0 0.0
    %2867 = vmatpush1.msra.mxu0 0.0
    %2868 = vmatprep.subr.mxu0 0.0
    %2869 = vmatpush1.msra.mxu0 0.0
    %2870 = vmatprep.subr.mxu0 0.0
    %2871 = vmatpush1.msra.mxu0 0.0
    %2872 = vmatprep.subr.mxu0 0.0
    %2873 = vmatpush1.msra.mxu0 0.0
    %2874 = vmatprep.subr.mxu0 0.0
    %2875 = vmatpush1.msra.mxu0 0.0
    %2876 = vmatprep.subr.mxu0 0.0
    %2877 = vmatpush1.msra.mxu0 0.0
    %2878 = vmatprep.subr.mxu0 0.0
    %2879 = vmatpush1.msra.mxu0 0.0
    %2880 = vmatprep.subr.mxu0 0.0
    %2881 = vmatpush1.msra.mxu0 0.0
    %2882 = vmatprep.subr.mxu0 0.0
    %2883 = vmatpush1.msra.mxu0 0.0
    %2884 = vmatprep.subr.mxu0 0.0
    %2885 = vmatpush1.msra.mxu0 0.0
    %2886 = vmatprep.subr.mxu0 0.0
    %2887 = vmatpush1.msra.mxu0 0.0
    %2888 = vmatprep.subr.mxu0 0.0
    %2889 = vmatpush1.msra.mxu0 0.0
    %2890 = vmatprep.subr.mxu0 0.0
    %2891 = vmatpush1.msra.mxu0 0.0
    %2892 = vmatprep.mubr.f32.mxu0 0.0
    %2893 = vmatmul.mubr.f32.gmra.mrb[0].mxu0 %v2823
    %v2894 = vpop.f32.mrb[0].mxu0
    %v2895 = vadd.f32 %v2819, %v2894
    %v2896 = vpop.f32.mrb[0].mxu0
    %2897 = vmatprep.mubr.f32.mxu0 0.0
    %2898 = vmatmul.mubr.f32.gmra.mrb[0].mxu0 %v2826
    %v2899 = vpop.f32.mrb[0].mxu0
    %v2900 = vadd.f32 %v2819, %v2899
    %v2901 = vpop.f32.mrb[0].mxu0
    %2902 = vdwg.mxu0
    %v2903 = vadd.f32 %v2895, %v2710
    %v2904 = vadd.f32 %v2900, %v2711
    %v2905 = vld [vmem:[%s11] sm:$0x1]
    %v2906 = vld [vmem:[%s12] sm:$0x1]
    %v2907 = vsel %vm85, %v2903, 0.0
    %2908 = vadd.xlane.f32.xlu0 %v2907
    %v2909 = vpop.xlane.xlu0 %2908
    %v2910 = vsel %vm85, %v2904, 0.0
    %2911 = vadd.xlane.f32.xlu0 %v2910
    %v2912 = vpop.xlane.xlu0 %2911
    %v2913 = vmul.f32 %v2909, %v2675
    %v2914 = vmul.f32 %v2912, %v2675
    %v2915 = vsub.f32 %v2903, %v2913
    %v2916 = vsub.f32 %v2904, %v2914
    %v2917 = vmul.f32 %v2915, %v2915
    %v2918 = vmul.f32 %v2916, %v2916
    %v2919 = vsel %vm85, %v2917, 0.0
    %2920 = vadd.xlane.f32.xlu0 %v2919
    %v2921 = vpop.xlane.xlu0 %2920
    %v2922 = vsel %vm85, %v2918, 0.0
    %2923 = vadd.xlane.f32.xlu0 %v2922
    %v2924 = vpop.xlane.xlu0 %2923
    %v2925 = vmul.f32 %v2921, %v2675
    %v2926 = vmul.f32 %v2924, %v2675
    %v2927 = vadd.f32 %v2925, 1e-05
    %v2928 = vadd.f32 %v2926, 1e-05
    %v2929 = vrsqrt.pop %v2927
    %v2930 = vrsqrt.pop %v2928
    %v2931 = vmul.f32 %v2915, %v2929
    %v2932 = vmul.f32 %v2916, %v2930
    %v2934 = vlaneseq
    %v2935 = vshrl.u32 %v2934, 7
    %v2936 = vsub.s32 0, %v2935
    %v2937 = vrot.slane %v2905, %v2936
    %v2939 = vmul.f32 %v2931, %v2937
    %v2940 = vmul.f32 %v2932, %v2937
    %v2942 = vlaneseq
    %v2943 = vshrl.u32 %v2942, 7
    %v2944 = vsub.s32 0, %v2943
    %v2945 = vrot.slane %v2906, %v2944
    %v2947 = vadd.f32 %v2939, %v2945
    %v2948 = vadd.f32 %v2940, %v2945
    %2949 = vst.msk [vmem:[#allocation2] sm:$0xff] %vm85, %v2947
    %2950 = vst.msk [vmem:[#allocation2 + $0x8] sm:$0xff] %vm85, %v2948
    // Predicated region
    $region54: #{encoder_block.1} parent=1 // pred_check
      _
    $region55: #{encoder_block.1} parent=1 // pred_check_branch
      %2952 = sbr.rel (0) target = $region57
    $region56: #{encoder_block.1} parent=1 // pred_region
      %s2954 = ssub.s32 256, 256
      %2955 = vsyncadd [#allocation3], %s2954
      %s2956 = sshll.u32 [#allocation2], 4
      %s2957 = int_to_ptr.vmem [resolvable:$true] %s2956
      %2962 = dma.vmem_to_hbm [thread:$0]  %s2957, 256, %s13, [#allocation3], 128, 128, 8
    $region57: #{encoder_block.1} parent=1 // pred_fallthru
      _
    // Predicated region
    $region58: #{encoder_block.1} parent=1 // pred_check
      _
    $region59: #{encoder_block.1} parent=1 // pred_check_branch
      %2964 = sbr.rel (0) target = $region61
    $region60: #{encoder_block.1} parent=1 // pred_region
      %2965 = dma.done [#allocation3], 256
    $region61: #{encoder_block.1} parent=1 // pred_fallthru
      _
    %2966 = vsyncpa [#allocation3], 1

</llo_original>
